<compile_context>
chip_gen: v7x
topology: tpu7x:2x2x1
jax: 0.10.0
libtpu: 0.0.40
codegen_flags: <defaults>
</compile_context>

<pallas_src>
import math
from functools import partial

import numpy as np

import jax
import jax.numpy as jnp
from jax import lax
from jax.experimental import pallas as pl
from jax.experimental.pallas import tpu as pltpu


def shift_offsets(kernels):
    """Mirror of ShifthWiseConv2dImplicit.shift()."""
    mink, maxk = min(kernels), max(kernels)
    nk = math.ceil(maxk / mink)
    padding = mink - 1
    mid = maxk // 2
    real_pad = [mid - i * mink - padding for i in range(nk)]
    return padding, real_pad


def build_effective_taps(Wm_g, real_pad, k, i_small, s1, b1, s2, b2, s3, b3, repN, C):
    """Fold grouped small conv -> (H-shift-add, W-shift-add, small) -> BN ->
    residual -> ghost passthrough into one per-channel sparse-tap filter.

    Returns (taps, coeff, bias): taps = sorted list of (row_off, col_off);
    coeff = f32 (n_taps, C) in permuted [rep..., ghost...] channel order; bias = f32 (C,).
    """
    Wm = np.asarray(Wm_g, dtype=np.float32)               # (repN, nk, k, k)
    s1, s2, s3 = (np.asarray(v, np.float32) for v in (s1, s2, s3))
    b1, b2, b3 = (np.asarray(v, np.float32) for v in (b1, b2, b3))
    nk = Wm.shape[1]
    p = k - 1                                             # conv padding used by the module
    kh = k // 2
    tapmap = {}

    def add(r, o, vec_rep):
        v = tapmap.setdefault((int(r), int(o)), np.zeros((C,), np.float32))
        v[:repN] += vec_rep

    for i in range(nk):
        rp = int(real_pad[i])
        for dy in range(k):
            for dx in range(k):
                wv = Wm[:, i, dy, dx]
                add(dy - p - rp, dx - kh, s1 * wv)        # lora1: shift along H
                add(dy - kh, dx - p - rp, s2 * wv)        # lora2: shift along W
    # TODO(synk): AddShift_mp_module source is not in the spec; the small path is taken
    # as the center group's plain 3x3 ("implicit" small conv), shifts from shift().
    for dy in range(k):
        for dx in range(k):
            add(dy - kh, dx - kh, s3 * Wm[:, i_small, dy, dx])

    # residual (+rep_inputs) on rep channels and identity passthrough on ghost channels
    v0 = tapmap.setdefault((0, 0), np.zeros((C,), np.float32))
    v0 += 1.0

    taps = sorted(tapmap.keys())
    coeff = np.stack([tapmap[t] for t in taps], axis=0)
    bias = np.zeros((C,), np.float32)
    bias[:repN] = b1 + b2 + b3
    return taps, coeff, bias


def _sw_kernel(x_ref, coeff_ref, bias_ref, out_ref, pad_ref, *, W, taps, pt):
    # x_ref / out_ref : (R, H*W)  lane-dense rows, R = block of (batch, channel) rows
    # coeff_ref       : (n_taps, R) per-lane tap coefficients
    # bias_ref        : (1, R)
    # pad_ref         : ((H + pt + pb) * W, R) f32 scratch (spatially zero-padded rows)
    R, HW = x_ref.shape
    PT = pt * W
    total = pad_ref.shape[0]
    CH = 128 if HW % 128 == 0 else HW                     # lane-aligned output chunks

    # Zero the halo rows, then deposit the tile transposed so (batch, channel) rows sit
    # on lanes and flattened spatial sits on sublanes -> every tap is sublane addressing.
    pad_ref[0:PT, :] = jnp.zeros((PT, R), jnp.float32)
    pad_ref[PT + HW:total, :] = jnp.zeros((total - PT - HW, R), jnp.float32)
    for c0 in range(0, HW, CH):
        pad_ref[PT + c0:PT + c0 + CH, :] = jnp.transpose(
            x_ref[:, c0:c0 + CH].astype(jnp.float32), (1, 0))

    # Group taps (static) by column offset: one boundary mask / select per distinct
    # nonzero offset instead of one per tap.
    groups = {}
    for t, (r, o) in enumerate(taps):
        groups.setdefault(int(o), []).append((t, int(r)))
    offsets = sorted(groups.keys())

    bias_v = bias_ref[...].astype(jnp.float32)            # (1, R)

    def make_masks(c0):
        col = (lax.broadcasted_iota(jnp.int32, (CH, 1), 0) + c0) % W
        return {o: (col >= -o) & (col <= W - 1 - o) for o in offsets if o != 0}

    hoist_masks = (CH % W == 0)                           # masks identical for all chunks
    masks0 = make_masks(0) if hoist_masks else None

    for c0 in range(0, HW, CH):
        masks = masks0 if hoist_masks else make_masks(c0)
        acc = jnp.broadcast_to(bias_v, (CH, R))
        for o in offsets:
            sub = None
            for t, r in groups[o]:
                start = (pt + r) * W + o + c0             # static sublane offset
                win = pad_ref[start:start + CH, :]
                term = coeff_ref[t:t + 1, :] * win
                sub = term if sub is None else sub + term
            if o != 0:
                sub = jnp.where(masks[o], sub, 0.0)
            acc = acc + sub
        out_ref[:, c0:c0 + CH] = jnp.transpose(acc, (1, 0)).astype(out_ref.dtype)


def _choose_row_block(nc):
    if nc <= 128:
        return nc
    for cand in (1024, 512, 256, 128):
        if nc % cand == 0:
            return cand
    return nc


def _shiftwise_pallas(x_rows, coeff, bias, *, H, W, taps, pt, pb, row_blk):
    NC, HW = x_rows.shape
    n_taps = coeff.shape[0]
    grid = (NC // row_blk,)
    kern = partial(_sw_kernel, W=W, taps=tuple(taps), pt=pt)
    return pl.pallas_call(
        kern,
        out_shape=jax.ShapeDtypeStruct((NC, HW), x_rows.dtype),
        grid_spec=pltpu.PrefetchScalarGridSpec(
            num_scalar_prefetch=0,
            grid=grid,
            in_specs=[
                pl.BlockSpec((row_blk, HW), lambda i: (i, 0)),
                pl.BlockSpec((n_taps, row_blk), lambda i: (0, i)),
                pl.BlockSpec((1, row_blk), lambda i: (0, i)),
            ],
            out_specs=pl.BlockSpec((row_blk, HW), lambda i: (i, 0)),
            scratch_shapes=[
                pltpu.VMEM(((H + pt + pb) * W, row_blk), jnp.float32),
            ],
        ),
        compiler_params=pltpu.CompilerParams(
            dimension_semantics=("parallel",),
            vmem_limit_bytes=32 * 1024 * 1024,
        ),
    )(x_rows, coeff, bias)


def shiftwise_conv2d_implicit(x, Wm_g, real_pad, rep, ghost,
                              s1, b1, s2, b2, s3, b3, small_kernel, i_small):
    """Full ShifthWiseConv2dImplicit forward as one fused Pallas kernel (NCHW in/out)."""
    # TODO(synk): stride > 1 and training-mode (Sync)BatchNorm batch statistics are not
    # implemented; BN is folded as an inference-mode per-channel affine.
    N, C, H, W = x.shape
    repN = len(rep)
    perm = list(rep) + list(ghost)

    taps, coeff_c, bias_c = build_effective_taps(
        Wm_g, real_pad, small_kernel, i_small, s1, b1, s2, b2, s3, b3, repN, C)
    rows = [r for r, _ in taps]
    cols = [o for _, o in taps]
    pt = max(0, -min(rows)) + (math.ceil(-min(cols) / W) if min(cols) < 0 else 0)
    pb = max(0, max(rows)) + (math.ceil(max(cols) / W) if max(cols) > 0 else 0)

    # Per-(batch, channel) row coefficients (rows of the flat view are (n, c), c fastest).
    NC = N * C
    coeff = jnp.asarray(np.tile(coeff_c, (1, N)))          # (n_taps, N*C)
    bias = jnp.asarray(np.tile(bias_c, N)[None, :])        # (1, N*C)

    # Channel gather into [rep..., ghost...] order (matches the module's concat order),
    # then FREE reshape to lane-dense rows.
    x_perm = jnp.take(x, jnp.asarray(perm, dtype=jnp.int32), axis=1)
    x_rows = x_perm.reshape(NC, H * W)

    row_blk = _choose_row_block(NC)
    out_rows = _shiftwise_pallas(x_rows, coeff, bias, H=H, W=W, taps=taps,
                                 pt=pt, pb=pb, row_blk=row_blk)
    return out_rows.reshape(N, C, H, W)                    # free reshape back to NCHW


def reference_forward(x, Wm_g, real_pad, rep, ghost,
                      s1, b1, s2, b2, s3, b3, k, i_small):
    """Plain-JAX reference of the same forward (grouped conv + shift-adds + BN)."""
    N, C, H, W = x.shape
    repN = len(rep)
    nk = Wm_g.shape[1]
    p = k - 1
    crop = p - k // 2
    xr = jnp.take(x, jnp.asarray(rep, dtype=jnp.int32), axis=1)
    xg = jnp.take(x, jnp.asarray(ghost, dtype=jnp.int32), axis=1)
    w = Wm_g.reshape(repN * nk, 1, k, k)
    y = lax.conv_general_dilated(
        xr, w, window_strides=(1, 1), padding=[(p, p), (p, p)],
        dimension_numbers=("NCHW", "OIHW", "NCHW"),
        feature_group_count=repN, precision=lax.Precision.HIGHEST)
    Hc, Wc = y.shape[-2], y.shape[-1]
    y = y.reshape(N, repN, nk, Hc, Wc)
    pad_amt = max(abs(int(v)) for v in real_pad) + k
    lora1 = jnp.zeros((N, repN, H, W), jnp.float32)
    lora2 = jnp.zeros((N, repN, H, W), jnp.float32)
    for i in range(nk):
        rp = int(real_pad[i])
        yi = y[:, :, i]
        yph = jnp.pad(yi, ((0, 0), (0, 0), (pad_amt, pad_amt), (0, 0)))
        rows = yph[:, :, pad_amt - rp:pad_amt - rp + H, :]
        lora1 = lora1 + rows[:, :, :, crop:crop + W]
        ypw = jnp.pad(yi, ((0, 0), (0, 0), (0, 0), (pad_amt, pad_amt)))
        colsl = ypw[:, :, :, pad_amt - rp:pad_amt - rp + W]
        lora2 = lora2 + colsl[:, :, crop:crop + H, :]
    small = y[:, :, i_small, crop:crop + H, crop:crop + W]

    def bn(v, s, b):
        return v * s.reshape(1, -1, 1, 1) + b.reshape(1, -1, 1, 1)

    x_rep = bn(lora1, s1, b1) + bn(lora2, s2, b2) + bn(small, s3, b3) + xr
    return jnp.concatenate([x_rep, xg], axis=1)


if __name__ == "__main__":
    # ShifthWiseConv2dImplicit(in_channels=4, big_kernel=7, small_kernel=3, stride=1,
    #                          ghost_ratio=0.23, N_path=2) on a (2, 4, 16, 16) NCHW input.
    in_channels = 4
    big_kernel, small_kernel = 7, 3
    N_path = 2
    ghost_ratio = 0.23
    N, H, W = 2, 4, 16
    N, H, W = 2, 16, 16
    eps = 1e-5

    nk = math.ceil(big_kernel / small_kernel)
    _, real_pad = shift_offsets((small_kernel, big_kernel))
    i_small = (big_kernel // 2) // small_kernel

    # rep / ghost channel split -- identical RNG to the torch module.
    repN = int(in_channels * (1 - ghost_ratio)) // 2 * 2
    ghostN = in_channels - repN
    np.random.seed(123)
    ghost = np.sort(np.random.choice(in_channels, ghostN, replace=False)).tolist()
    rep = sorted(set(range(in_channels)) - set(ghost))
    assert len(rep) == repN

    # Deterministic parameters / input.
    key = jax.random.PRNGKey(0)
    kx, kw = jax.random.split(key)
    x = jax.random.normal(kx, (N, in_channels, H, W), dtype=jnp.float32)
    lora_ws = [0.1 * jax.random.normal(k_, (repN * nk, 1, small_kernel, small_kernel),
                                       dtype=jnp.float32)
               for k_ in jax.random.split(kw, N_path)]
    # forward sums the N_path grouped convs == one conv with summed weights (merge_branches)
    Wm_g = sum(lora_ws).reshape(repN, nk, small_kernel, small_kernel)

    # Inference-mode BN (default init) folded to per-channel scale / shift.
    def fold_bn(gamma, beta, mean, var):
        s = gamma / jnp.sqrt(var + eps)
        return s, beta - mean * s

    ones = jnp.ones((repN,), jnp.float32)
    zeros = jnp.zeros((repN,), jnp.float32)
    s1, b1 = fold_bn(ones, zeros, zeros, ones)
    s2, b2 = fold_bn(ones, zeros, zeros, ones)
    s3, b3 = fold_bn(ones, zeros, zeros, ones)

    out = shiftwise_conv2d_implicit(x, Wm_g, real_pad, rep, ghost,
                                    s1, b1, s2, b2, s3, b3,
                                    small_kernel, i_small)
    out = jax.block_until_ready(out)

    ref = reference_forward(x, Wm_g, real_pad, rep, ghost,
                            s1, b1, s2, b2, s3, b3, small_kernel, i_small)
    assert out.shape == (N, in_channels, H, W), out.shape
    err = float(jnp.max(jnp.abs(out - ref)))
    assert err < 2e-4, f"max |err| = {err}"
    print("KERNEL_OK")
</pallas_src>

<mosaic_0001>
module attributes {stable_mosaic.version = 11 : i64} {
  func.func @_sw_kernel(%arg0: i32, %arg1: memref<8x256xf32, #tpu.memory_space<vmem>>, %arg2: memref<45x8xf32, #tpu.memory_space<vmem>>, %arg3: memref<1x8xf32, #tpu.memory_space<vmem>>, %arg4: memref<8x256xf32, #tpu.memory_space<vmem>>, %arg5: memref<416x8xf32, #tpu.memory_space<vmem>>) attributes {dimension_semantics = [#tpu.dimension_semantics<parallel>], iteration_bounds = array<i64: 1>, scalar_prefetch = 0 : i64, scratch_operands = 1 : i64, tpu.core_type = #tpu.core_type<tc>, window_params = [{transform_indices = @transform_0, window_bounds = array<i64: 8, 256>}, {transform_indices = @transform_1, window_bounds = array<i64: 45, 8>}, {transform_indices = @transform_2, window_bounds = array<i64: 1, 8>}, {transform_indices = @transform_3, window_bounds = array<i64: 8, 256>}]} {
    %cst = arith.constant 0.000000e+00 : f32
    %0 = vector.broadcast %cst : f32 to vector<64x8xf32>
    %c0 = arith.constant 0 : index
    %c0_0 = arith.constant 0 : index
    %1 = vector.load %arg5[%c0, %c0_0] : memref<416x8xf32, #tpu.memory_space<vmem>>, vector<64x8xf32>
    tpu.vector_store %arg5[%c0, %c0_0], %0 {strides = array<i32>} : memref<416x8xf32, #tpu.memory_space<vmem>>, vector<64x8xf32>,
    %cst_1 = arith.constant 0.000000e+00 : f32
    %2 = vector.broadcast %cst_1 : f32 to vector<96x8xf32>
    %c320 = arith.constant 320 : index
    %c0_2 = arith.constant 0 : index
    %3 = vector.load %arg5[%c320, %c0_2] : memref<416x8xf32, #tpu.memory_space<vmem>>, vector<96x8xf32>
    tpu.vector_store %arg5[%c320, %c0_2], %2 {strides = array<i32>} : memref<416x8xf32, #tpu.memory_space<vmem>>, vector<96x8xf32>,
    %c0_3 = arith.constant 0 : index
    %c0_4 = arith.constant 0 : index
    %4 = vector.load %arg1[%c0_3, %c0_4] : memref<8x256xf32, #tpu.memory_space<vmem>>, vector<8x128xf32>
    %5 = tpu.transpose %4, [1, 0] : vector<8x128xf32> -> vector<128x8xf32>
    %c64 = arith.constant 64 : index
    %c0_5 = arith.constant 0 : index
    %6 = vector.load %arg5[%c64, %c0_5] : memref<416x8xf32, #tpu.memory_space<vmem>>, vector<128x8xf32>
    tpu.vector_store %arg5[%c64, %c0_5], %5 {strides = array<i32>} : memref<416x8xf32, #tpu.memory_space<vmem>>, vector<128x8xf32>,
    %c0_6 = arith.constant 0 : index
    %c128 = arith.constant 128 : index
    %7 = vector.load %arg1[%c0_6, %c128] : memref<8x256xf32, #tpu.memory_space<vmem>>, vector<8x128xf32>
    %8 = tpu.transpose %7, [1, 0] : vector<8x128xf32> -> vector<128x8xf32>
    %c192 = arith.constant 192 : index
    %c0_7 = arith.constant 0 : index
    %9 = vector.load %arg5[%c192, %c0_7] : memref<416x8xf32, #tpu.memory_space<vmem>>, vector<128x8xf32>
    tpu.vector_store %arg5[%c192, %c0_7], %8 {strides = array<i32>} : memref<416x8xf32, #tpu.memory_space<vmem>>, vector<128x8xf32>,
    %c0_8 = arith.constant 0 : index
    %c0_9 = arith.constant 0 : index
    %10 = vector.load %arg3[%c0_8, %c0_9] : memref<1x8xf32, #tpu.memory_space<vmem>>, vector<1x8xf32>
    %11 = tpu.iota {dimensions = array<i32: 0>} : vector<128x1xi32>
    %c0_i32 = arith.constant 0 : i32
    %12 = vector.broadcast %c0_i32 : i32 to vector<128x1xi32>
    %13 = arith.addi %11, %12 : vector<128x1xi32>
    %c16_i32 = arith.constant 16 : i32
    %c0_i32_10 = arith.constant 0 : i32
    %14 = arith.cmpi eq, %c16_i32, %c0_i32_10 : i32
    %c1_i32 = arith.constant 1 : i32
    %15 = arith.select %14, %c1_i32, %c16_i32 : i32
    %16 = vector.broadcast %15 : i32 to vector<128x1xi32>
    %17 = arith.remsi %13, %16 : vector<128x1xi32>
    %c0_i32_11 = arith.constant 0 : i32
    %18 = vector.broadcast %c0_i32_11 : i32 to vector<128x1xi32>
    %19 = arith.cmpi ne, %17, %18 : vector<128x1xi32>
    %c0_i32_12 = arith.constant 0 : i32
    %20 = vector.broadcast %c0_i32_12 : i32 to vector<128x1xi32>
    %21 = arith.cmpi slt, %17, %20 : vector<128x1xi32>
    %c0_i32_13 = arith.constant 0 : i32
    %22 = arith.cmpi slt, %15, %c0_i32_13 : i32
    %23 = vector.broadcast %22 : i1 to vector<128x1xi1>
    %24 = vector.broadcast %23 : vector<128x1xi1> to vector<128x1xi1>
    %25 = arith.xori %21, %24 : vector<128x1xi1>
    %26 = arith.andi %25, %19 : vector<128x1xi1>
    %27 = vector.broadcast %15 : i32 to vector<128x1xi32>
    %28 = arith.addi %17, %27 : vector<128x1xi32>
    %29 = arith.select %26, %28, %17 : vector<128x1xi1>, vector<128x1xi32>
    %c3_i32 = arith.constant 3 : i32
    %30 = vector.broadcast %c3_i32 : i32 to vector<128x1xi32>
    %31 = arith.cmpi sge, %29, %30 : vector<128x1xi32>
    %c18_i32 = arith.constant 18 : i32
    %32 = vector.broadcast %c18_i32 : i32 to vector<128x1xi32>
    %33 = arith.cmpi sle, %29, %32 : vector<128x1xi32>
    %34 = arith.andi %31, %33 : vector<128x1xi1>
    %c2_i32 = arith.constant 2 : i32
    %35 = vector.broadcast %c2_i32 : i32 to vector<128x1xi32>
    %36 = arith.cmpi sge, %29, %35 : vector<128x1xi32>
    %c17_i32 = arith.constant 17 : i32
    %37 = vector.broadcast %c17_i32 : i32 to vector<128x1xi32>
    %38 = arith.cmpi sle, %29, %37 : vector<128x1xi32>
    %39 = arith.andi %36, %38 : vector<128x1xi1>
    %c1_i32_14 = arith.constant 1 : i32
    %40 = vector.broadcast %c1_i32_14 : i32 to vector<128x1xi32>
    %41 = arith.cmpi sge, %29, %40 : vector<128x1xi32>
    %c16_i32_15 = arith.constant 16 : i32
    %42 = vector.broadcast %c16_i32_15 : i32 to vector<128x1xi32>
    %43 = arith.cmpi sle, %29, %42 : vector<128x1xi32>
    %44 = arith.andi %41, %43 : vector<128x1xi1>
    %c-1_i32 = arith.constant -1 : i32
    %45 = vector.broadcast %c-1_i32 : i32 to vector<128x1xi32>
    %46 = arith.cmpi sge, %29, %45 : vector<128x1xi32>
    %c14_i32 = arith.constant 14 : i32
    %47 = vector.broadcast %c14_i32 : i32 to vector<128x1xi32>
    %48 = arith.cmpi sle, %29, %47 : vector<128x1xi32>
    %49 = arith.andi %46, %48 : vector<128x1xi1>
    %c-2_i32 = arith.constant -2 : i32
    %50 = vector.broadcast %c-2_i32 : i32 to vector<128x1xi32>
    %51 = arith.cmpi sge, %29, %50 : vector<128x1xi32>
    %c13_i32 = arith.constant 13 : i32
    %52 = vector.broadcast %c13_i32 : i32 to vector<128x1xi32>
    %53 = arith.cmpi sle, %29, %52 : vector<128x1xi32>
    %54 = arith.andi %51, %53 : vector<128x1xi1>
    %c-3_i32 = arith.constant -3 : i32
    %55 = vector.broadcast %c-3_i32 : i32 to vector<128x1xi32>
    %56 = arith.cmpi sge, %29, %55 : vector<128x1xi32>
    %c12_i32 = arith.constant 12 : i32
    %57 = vector.broadcast %c12_i32 : i32 to vector<128x1xi32>
    %58 = arith.cmpi sle, %29, %57 : vector<128x1xi32>
    %59 = arith.andi %56, %58 : vector<128x1xi1>
    %c-4_i32 = arith.constant -4 : i32
    %60 = vector.broadcast %c-4_i32 : i32 to vector<128x1xi32>
    %61 = arith.cmpi sge, %29, %60 : vector<128x1xi32>
    %c11_i32 = arith.constant 11 : i32
    %62 = vector.broadcast %c11_i32 : i32 to vector<128x1xi32>
    %63 = arith.cmpi sle, %29, %62 : vector<128x1xi32>
    %64 = arith.andi %61, %63 : vector<128x1xi1>
    %c-5_i32 = arith.constant -5 : i32
    %65 = vector.broadcast %c-5_i32 : i32 to vector<128x1xi32>
    %66 = arith.cmpi sge, %29, %65 : vector<128x1xi32>
    %c10_i32 = arith.constant 10 : i32
    %67 = vector.broadcast %c10_i32 : i32 to vector<128x1xi32>
    %68 = arith.cmpi sle, %29, %67 : vector<128x1xi32>
    %69 = arith.andi %66, %68 : vector<128x1xi1>
    %70 = vector.shape_cast %10 : vector<1x8xf32> to vector<1x8xf32>
    %71 = vector.broadcast %70 : vector<1x8xf32> to vector<128x8xf32>
    %c45 = arith.constant 45 : index
    %c0_16 = arith.constant 0 : index
    %72 = vector.load %arg5[%c45, %c0_16] : memref<416x8xf32, #tpu.memory_space<vmem>>, vector<128x8xf32>
    %c6 = arith.constant 6 : index
    %c0_17 = arith.constant 0 : index
    %73 = vector.load %arg2[%c6, %c0_17] : memref<45x8xf32, #tpu.memory_space<vmem>>, vector<1x8xf32>
    %74 = vector.broadcast %73 : vector<1x8xf32> to vector<128x8xf32>
    %75 = arith.mulf %74, %72 : vector<128x8xf32>
    %c61 = arith.constant 61 : index
    %c0_18 = arith.constant 0 : index
    %76 = vector.load %arg5[%c61, %c0_18] : memref<416x8xf32, #tpu.memory_space<vmem>>, vector<128x8xf32>
    %c15 = arith.constant 15 : index
    %c0_19 = arith.constant 0 : index
    %77 = vector.load %arg2[%c15, %c0_19] : memref<45x8xf32, #tpu.memory_space<vmem>>, vector<1x8xf32>
    %78 = vector.broadcast %77 : vector<1x8xf32> to vector<128x8xf32>
    %79 = arith.mulf %78, %76 : vector<128x8xf32>
    %80 = arith.addf %75, %79 : vector<128x8xf32>
    %c77 = arith.constant 77 : index
    %c0_20 = arith.constant 0 : index
    %81 = vector.load %arg5[%c77, %c0_20] : memref<416x8xf32, #tpu.memory_space<vmem>>, vector<128x8xf32>
    %c24 = arith.constant 24 : index
    %c0_21 = arith.constant 0 : index
    %82 = vector.load %arg2[%c24, %c0_21] : memref<45x8xf32, #tpu.memory_space<vmem>>, vector<1x8xf32>
    %83 = vector.broadcast %82 : vector<1x8xf32> to vector<128x8xf32>
    %84 = arith.mulf %83, %81 : vector<128x8xf32>
    %85 = arith.addf %80, %84 : vector<128x8xf32>
    %cst_22 = arith.constant 0.000000e+00 : f32
    %86 = vector.shape_cast %34 : vector<128x1xi1> to vector<128x1xi1>
    %87 = vector.broadcast %86 : vector<128x1xi1> to vector<128x8xi1>
    %88 = vector.broadcast %cst_22 : f32 to vector<128x8xf32>
    %89 = arith.select %87, %85, %88 : vector<128x8xi1>, vector<128x8xf32>
    %90 = arith.addf %71, %89 : vector<128x8xf32>
    %c46 = arith.constant 46 : index
    %c0_23 = arith.constant 0 : index
    %91 = vector.load %arg5[%c46, %c0_23] : memref<416x8xf32, #tpu.memory_space<vmem>>, vector<128x8xf32>
    %c7 = arith.constant 7 : index
    %c0_24 = arith.constant 0 : index
    %92 = vector.load %arg2[%c7, %c0_24] : memref<45x8xf32, #tpu.memory_space<vmem>>, vector<1x8xf32>
    %93 = vector.broadcast %92 : vector<1x8xf32> to vector<128x8xf32>
    %94 = arith.mulf %93, %91 : vector<128x8xf32>
    %c62 = arith.constant 62 : index
    %c0_25 = arith.constant 0 : index
    %95 = vector.load %arg5[%c62, %c0_25] : memref<416x8xf32, #tpu.memory_space<vmem>>, vector<128x8xf32>
    %c16 = arith.constant 16 : index
    %c0_26 = arith.constant 0 : index
    %96 = vector.load %arg2[%c16, %c0_26] : memref<45x8xf32, #tpu.memory_space<vmem>>, vector<1x8xf32>
    %97 = vector.broadcast %96 : vector<1x8xf32> to vector<128x8xf32>
    %98 = arith.mulf %97, %95 : vector<128x8xf32>
    %99 = arith.addf %94, %98 : vector<128x8xf32>
    %c78 = arith.constant 78 : index
    %c0_27 = arith.constant 0 : index
    %100 = vector.load %arg5[%c78, %c0_27] : memref<416x8xf32, #tpu.memory_space<vmem>>, vector<128x8xf32>
    %c25 = arith.constant 25 : index
    %c0_28 = arith.constant 0 : index
    %101 = vector.load %arg2[%c25, %c0_28] : memref<45x8xf32, #tpu.memory_space<vmem>>, vector<1x8xf32>
    %102 = vector.broadcast %101 : vector<1x8xf32> to vector<128x8xf32>
    %103 = arith.mulf %102, %100 : vector<128x8xf32>
    %104 = arith.addf %99, %103 : vector<128x8xf32>
    %cst_29 = arith.constant 0.000000e+00 : f32
    %105 = vector.shape_cast %39 : vector<128x1xi1> to vector<128x1xi1>
    %106 = vector.broadcast %105 : vector<128x1xi1> to vector<128x8xi1>
    %107 = vector.broadcast %cst_29 : f32 to vector<128x8xf32>
    %108 = arith.select %106, %104, %107 : vector<128x8xi1>, vector<128x8xf32>
    %109 = arith.addf %90, %108 : vector<128x8xf32>
    %c15_30 = arith.constant 15 : index
    %c0_31 = arith.constant 0 : index
    %110 = vector.load %arg5[%c15_30, %c0_31] : memref<416x8xf32, #tpu.memory_space<vmem>>, vector<128x8xf32>
    %c0_32 = arith.constant 0 : index
    %c0_33 = arith.constant 0 : index
    %111 = vector.load %arg2[%c0_32, %c0_33] : memref<45x8xf32, #tpu.memory_space<vmem>>, vector<1x8xf32>
    %112 = vector.broadcast %111 : vector<1x8xf32> to vector<128x8xf32>
    %113 = arith.mulf %112, %110 : vector<128x8xf32>
    %c31 = arith.constant 31 : index
    %c0_34 = arith.constant 0 : index
    %114 = vector.load %arg5[%c31, %c0_34] : memref<416x8xf32, #tpu.memory_space<vmem>>, vector<128x8xf32>
    %c3 = arith.constant 3 : index
    %c0_35 = arith.constant 0 : index
    %115 = vector.load %arg2[%c3, %c0_35] : memref<45x8xf32, #tpu.memory_space<vmem>>, vector<1x8xf32>
    %116 = vector.broadcast %115 : vector<1x8xf32> to vector<128x8xf32>
    %117 = arith.mulf %116, %114 : vector<128x8xf32>
    %118 = arith.addf %113, %117 : vector<128x8xf32>
    %c47 = arith.constant 47 : index
    %c0_36 = arith.constant 0 : index
    %119 = vector.load %arg5[%c47, %c0_36] : memref<416x8xf32, #tpu.memory_space<vmem>>, vector<128x8xf32>
    %c8 = arith.constant 8 : index
    %c0_37 = arith.constant 0 : index
    %120 = vector.load %arg2[%c8, %c0_37] : memref<45x8xf32, #tpu.memory_space<vmem>>, vector<1x8xf32>
    %121 = vector.broadcast %120 : vector<1x8xf32> to vector<128x8xf32>
    %122 = arith.mulf %121, %119 : vector<128x8xf32>
    %123 = arith.addf %118, %122 : vector<128x8xf32>
    %c63 = arith.constant 63 : index
    %c0_38 = arith.constant 0 : index
    %124 = vector.load %arg5[%c63, %c0_38] : memref<416x8xf32, #tpu.memory_space<vmem>>, vector<128x8xf32>
    %c17 = arith.constant 17 : index
    %c0_39 = arith.constant 0 : index
    %125 = vector.load %arg2[%c17, %c0_39] : memref<45x8xf32, #tpu.memory_space<vmem>>, vector<1x8xf32>
    %126 = vector.broadcast %125 : vector<1x8xf32> to vector<128x8xf32>
    %127 = arith.mulf %126, %124 : vector<128x8xf32>
    %128 = arith.addf %123, %127 : vector<128x8xf32>
    %c79 = arith.constant 79 : index
    %c0_40 = arith.constant 0 : index
    %129 = vector.load %arg5[%c79, %c0_40] : memref<416x8xf32, #tpu.memory_space<vmem>>, vector<128x8xf32>
    %c26 = arith.constant 26 : index
    %c0_41 = arith.constant 0 : index
    %130 = vector.load %arg2[%c26, %c0_41] : memref<45x8xf32, #tpu.memory_space<vmem>>, vector<1x8xf32>
    %131 = vector.broadcast %130 : vector<1x8xf32> to vector<128x8xf32>
    %132 = arith.mulf %131, %129 : vector<128x8xf32>
    %133 = arith.addf %128, %132 : vector<128x8xf32>
    %c95 = arith.constant 95 : index
    %c0_42 = arith.constant 0 : index
    %134 = vector.load %arg5[%c95, %c0_42] : memref<416x8xf32, #tpu.memory_space<vmem>>, vector<128x8xf32>
    %c33 = arith.constant 33 : index
    %c0_43 = arith.constant 0 : index
    %135 = vector.load %arg2[%c33, %c0_43] : memref<45x8xf32, #tpu.memory_space<vmem>>, vector<1x8xf32>
    %136 = vector.broadcast %135 : vector<1x8xf32> to vector<128x8xf32>
    %137 = arith.mulf %136, %134 : vector<128x8xf32>
    %138 = arith.addf %133, %137 : vector<128x8xf32>
    %c111 = arith.constant 111 : index
    %c0_44 = arith.constant 0 : index
    %139 = vector.load %arg5[%c111, %c0_44] : memref<416x8xf32, #tpu.memory_space<vmem>>, vector<128x8xf32>
    %c36 = arith.constant 36 : index
    %c0_45 = arith.constant 0 : index
    %140 = vector.load %arg2[%c36, %c0_45] : memref<45x8xf32, #tpu.memory_space<vmem>>, vector<1x8xf32>
    %141 = vector.broadcast %140 : vector<1x8xf32> to vector<128x8xf32>
    %142 = arith.mulf %141, %139 : vector<128x8xf32>
    %143 = arith.addf %138, %142 : vector<128x8xf32>
    %c127 = arith.constant 127 : index
    %c0_46 = arith.constant 0 : index
    %144 = vector.load %arg5[%c127, %c0_46] : memref<416x8xf32, #tpu.memory_space<vmem>>, vector<128x8xf32>
    %c39 = arith.constant 39 : index
    %c0_47 = arith.constant 0 : index
    %145 = vector.load %arg2[%c39, %c0_47] : memref<45x8xf32, #tpu.memory_space<vmem>>, vector<1x8xf32>
    %146 = vector.broadcast %145 : vector<1x8xf32> to vector<128x8xf32>
    %147 = arith.mulf %146, %144 : vector<128x8xf32>
    %148 = arith.addf %143, %147 : vector<128x8xf32>
    %c143 = arith.constant 143 : index
    %c0_48 = arith.constant 0 : index
    %149 = vector.load %arg5[%c143, %c0_48] : memref<416x8xf32, #tpu.memory_space<vmem>>, vector<128x8xf32>
    %c42 = arith.constant 42 : index
    %c0_49 = arith.constant 0 : index
    %150 = vector.load %arg2[%c42, %c0_49] : memref<45x8xf32, #tpu.memory_space<vmem>>, vector<1x8xf32>
    %151 = vector.broadcast %150 : vector<1x8xf32> to vector<128x8xf32>
    %152 = arith.mulf %151, %149 : vector<128x8xf32>
    %153 = arith.addf %148, %152 : vector<128x8xf32>
    %cst_50 = arith.constant 0.000000e+00 : f32
    %154 = vector.shape_cast %44 : vector<128x1xi1> to vector<128x1xi1>
    %155 = vector.broadcast %154 : vector<128x1xi1> to vector<128x8xi1>
    %156 = vector.broadcast %cst_50 : f32 to vector<128x8xf32>
    %157 = arith.select %155, %153, %156 : vector<128x8xi1>, vector<128x8xf32>
    %158 = arith.addf %109, %157 : vector<128x8xf32>
    %c16_51 = arith.constant 16 : index
    %c0_52 = arith.constant 0 : index
    %159 = vector.load %arg5[%c16_51, %c0_52] : memref<416x8xf32, #tpu.memory_space<vmem>>, vector<128x8xf32>
    %c1 = arith.constant 1 : index
    %c0_53 = arith.constant 0 : index
    %160 = vector.load %arg2[%c1, %c0_53] : memref<45x8xf32, #tpu.memory_space<vmem>>, vector<1x8xf32>
    %161 = vector.broadcast %160 : vector<1x8xf32> to vector<128x8xf32>
    %162 = arith.mulf %161, %159 : vector<128x8xf32>
    %c32 = arith.constant 32 : index
    %c0_54 = arith.constant 0 : index
    %163 = vector.load %arg5[%c32, %c0_54] : memref<416x8xf32, #tpu.memory_space<vmem>>, vector<128x8xf32>
    %c4 = arith.constant 4 : index
    %c0_55 = arith.constant 0 : index
    %164 = vector.load %arg2[%c4, %c0_55] : memref<45x8xf32, #tpu.memory_space<vmem>>, vector<1x8xf32>
    %165 = vector.broadcast %164 : vector<1x8xf32> to vector<128x8xf32>
    %166 = arith.mulf %165, %163 : vector<128x8xf32>
    %167 = arith.addf %162, %166 : vector<128x8xf32>
    %c48 = arith.constant 48 : index
    %c0_56 = arith.constant 0 : index
    %168 = vector.load %arg5[%c48, %c0_56] : memref<416x8xf32, #tpu.memory_space<vmem>>, vector<128x8xf32>
    %c9 = arith.constant 9 : index
    %c0_57 = arith.constant 0 : index
    %169 = vector.load %arg2[%c9, %c0_57] : memref<45x8xf32, #tpu.memory_space<vmem>>, vector<1x8xf32>
    %170 = vector.broadcast %169 : vector<1x8xf32> to vector<128x8xf32>
    %171 = arith.mulf %170, %168 : vector<128x8xf32>
    %172 = arith.addf %167, %171 : vector<128x8xf32>
    %c64_58 = arith.constant 64 : index
    %c0_59 = arith.constant 0 : index
    %173 = vector.load %arg5[%c64_58, %c0_59] : memref<416x8xf32, #tpu.memory_space<vmem>>, vector<128x8xf32>
    %c18 = arith.constant 18 : index
    %c0_60 = arith.constant 0 : index
    %174 = vector.load %arg2[%c18, %c0_60] : memref<45x8xf32, #tpu.memory_space<vmem>>, vector<1x8xf32>
    %175 = vector.broadcast %174 : vector<1x8xf32> to vector<128x8xf32>
    %176 = arith.mulf %175, %173 : vector<128x8xf32>
    %177 = arith.addf %172, %176 : vector<128x8xf32>
    %c80 = arith.constant 80 : index
    %c0_61 = arith.constant 0 : index
    %178 = vector.load %arg5[%c80, %c0_61] : memref<416x8xf32, #tpu.memory_space<vmem>>, vector<128x8xf32>
    %c27 = arith.constant 27 : index
    %c0_62 = arith.constant 0 : index
    %179 = vector.load %arg2[%c27, %c0_62] : memref<45x8xf32, #tpu.memory_space<vmem>>, vector<1x8xf32>
    %180 = vector.broadcast %179 : vector<1x8xf32> to vector<128x8xf32>
    %181 = arith.mulf %180, %178 : vector<128x8xf32>
    %182 = arith.addf %177, %181 : vector<128x8xf32>
    %c96 = arith.constant 96 : index
    %c0_63 = arith.constant 0 : index
    %183 = vector.load %arg5[%c96, %c0_63] : memref<416x8xf32, #tpu.memory_space<vmem>>, vector<128x8xf32>
    %c34 = arith.constant 34 : index
    %c0_64 = arith.constant 0 : index
    %184 = vector.load %arg2[%c34, %c0_64] : memref<45x8xf32, #tpu.memory_space<vmem>>, vector<1x8xf32>
    %185 = vector.broadcast %184 : vector<1x8xf32> to vector<128x8xf32>
    %186 = arith.mulf %185, %183 : vector<128x8xf32>
    %187 = arith.addf %182, %186 : vector<128x8xf32>
    %c112 = arith.constant 112 : index
    %c0_65 = arith.constant 0 : index
    %188 = vector.load %arg5[%c112, %c0_65] : memref<416x8xf32, #tpu.memory_space<vmem>>, vector<128x8xf32>
    %c37 = arith.constant 37 : index
    %c0_66 = arith.constant 0 : index
    %189 = vector.load %arg2[%c37, %c0_66] : memref<45x8xf32, #tpu.memory_space<vmem>>, vector<1x8xf32>
    %190 = vector.broadcast %189 : vector<1x8xf32> to vector<128x8xf32>
    %191 = arith.mulf %190, %188 : vector<128x8xf32>
    %192 = arith.addf %187, %191 : vector<128x8xf32>
    %c128_67 = arith.constant 128 : index
    %c0_68 = arith.constant 0 : index
    %193 = vector.load %arg5[%c128_67, %c0_68] : memref<416x8xf32, #tpu.memory_space<vmem>>, vector<128x8xf32>
    %c40 = arith.constant 40 : index
    %c0_69 = arith.constant 0 : index
    %194 = vector.load %arg2[%c40, %c0_69] : memref<45x8xf32, #tpu.memory_space<vmem>>, vector<1x8xf32>
    %195 = vector.broadcast %194 : vector<1x8xf32> to vector<128x8xf32>
    %196 = arith.mulf %195, %193 : vector<128x8xf32>
    %197 = arith.addf %192, %196 : vector<128x8xf32>
    %c144 = arith.constant 144 : index
    %c0_70 = arith.constant 0 : index
    %198 = vector.load %arg5[%c144, %c0_70] : memref<416x8xf32, #tpu.memory_space<vmem>>, vector<128x8xf32>
    %c43 = arith.constant 43 : index
    %c0_71 = arith.constant 0 : index
    %199 = vector.load %arg2[%c43, %c0_71] : memref<45x8xf32, #tpu.memory_space<vmem>>, vector<1x8xf32>
    %200 = vector.broadcast %199 : vector<1x8xf32> to vector<128x8xf32>
    %201 = arith.mulf %200, %198 : vector<128x8xf32>
    %202 = arith.addf %197, %201 : vector<128x8xf32>
    %203 = arith.addf %158, %202 : vector<128x8xf32>
    %c17_72 = arith.constant 17 : index
    %c0_73 = arith.constant 0 : index
    %204 = vector.load %arg5[%c17_72, %c0_73] : memref<416x8xf32, #tpu.memory_space<vmem>>, vector<128x8xf32>
    %c2 = arith.constant 2 : index
    %c0_74 = arith.constant 0 : index
    %205 = vector.load %arg2[%c2, %c0_74] : memref<45x8xf32, #tpu.memory_space<vmem>>, vector<1x8xf32>
    %206 = vector.broadcast %205 : vector<1x8xf32> to vector<128x8xf32>
    %207 = arith.mulf %206, %204 : vector<128x8xf32>
    %c33_75 = arith.constant 33 : index
    %c0_76 = arith.constant 0 : index
    %208 = vector.load %arg5[%c33_75, %c0_76] : memref<416x8xf32, #tpu.memory_space<vmem>>, vector<128x8xf32>
    %c5 = arith.constant 5 : index
    %c0_77 = arith.constant 0 : index
    %209 = vector.load %arg2[%c5, %c0_77] : memref<45x8xf32, #tpu.memory_space<vmem>>, vector<1x8xf32>
    %210 = vector.broadcast %209 : vector<1x8xf32> to vector<128x8xf32>
    %211 = arith.mulf %210, %208 : vector<128x8xf32>
    %212 = arith.addf %207, %211 : vector<128x8xf32>
    %c49 = arith.constant 49 : index
    %c0_78 = arith.constant 0 : index
    %213 = vector.load %arg5[%c49, %c0_78] : memref<416x8xf32, #tpu.memory_space<vmem>>, vector<128x8xf32>
    %c10 = arith.constant 10 : index
    %c0_79 = arith.constant 0 : index
    %214 = vector.load %arg2[%c10, %c0_79] : memref<45x8xf32, #tpu.memory_space<vmem>>, vector<1x8xf32>
    %215 = vector.broadcast %214 : vector<1x8xf32> to vector<128x8xf32>
    %216 = arith.mulf %215, %213 : vector<128x8xf32>
    %217 = arith.addf %212, %216 : vector<128x8xf32>
    %c65 = arith.constant 65 : index
    %c0_80 = arith.constant 0 : index
    %218 = vector.load %arg5[%c65, %c0_80] : memref<416x8xf32, #tpu.memory_space<vmem>>, vector<128x8xf32>
    %c19 = arith.constant 19 : index
    %c0_81 = arith.constant 0 : index
    %219 = vector.load %arg2[%c19, %c0_81] : memref<45x8xf32, #tpu.memory_space<vmem>>, vector<1x8xf32>
    %220 = vector.broadcast %219 : vector<1x8xf32> to vector<128x8xf32>
    %221 = arith.mulf %220, %218 : vector<128x8xf32>
    %222 = arith.addf %217, %221 : vector<128x8xf32>
    %c81 = arith.constant 81 : index
    %c0_82 = arith.constant 0 : index
    %223 = vector.load %arg5[%c81, %c0_82] : memref<416x8xf32, #tpu.memory_space<vmem>>, vector<128x8xf32>
    %c28 = arith.constant 28 : index
    %c0_83 = arith.constant 0 : index
    %224 = vector.load %arg2[%c28, %c0_83] : memref<45x8xf32, #tpu.memory_space<vmem>>, vector<1x8xf32>
    %225 = vector.broadcast %224 : vector<1x8xf32> to vector<128x8xf32>
    %226 = arith.mulf %225, %223 : vector<128x8xf32>
    %227 = arith.addf %222, %226 : vector<128x8xf32>
    %c97 = arith.constant 97 : index
    %c0_84 = arith.constant 0 : index
    %228 = vector.load %arg5[%c97, %c0_84] : memref<416x8xf32, #tpu.memory_space<vmem>>, vector<128x8xf32>
    %c35 = arith.constant 35 : index
    %c0_85 = arith.constant 0 : index
    %229 = vector.load %arg2[%c35, %c0_85] : memref<45x8xf32, #tpu.memory_space<vmem>>, vector<1x8xf32>
    %230 = vector.broadcast %229 : vector<1x8xf32> to vector<128x8xf32>
    %231 = arith.mulf %230, %228 : vector<128x8xf32>
    %232 = arith.addf %227, %231 : vector<128x8xf32>
    %c113 = arith.constant 113 : index
    %c0_86 = arith.constant 0 : index
    %233 = vector.load %arg5[%c113, %c0_86] : memref<416x8xf32, #tpu.memory_space<vmem>>, vector<128x8xf32>
    %c38 = arith.constant 38 : index
    %c0_87 = arith.constant 0 : index
    %234 = vector.load %arg2[%c38, %c0_87] : memref<45x8xf32, #tpu.memory_space<vmem>>, vector<1x8xf32>
    %235 = vector.broadcast %234 : vector<1x8xf32> to vector<128x8xf32>
    %236 = arith.mulf %235, %233 : vector<128x8xf32>
    %237 = arith.addf %232, %236 : vector<128x8xf32>
    %c129 = arith.constant 129 : index
    %c0_88 = arith.constant 0 : index
    %238 = vector.load %arg5[%c129, %c0_88] : memref<416x8xf32, #tpu.memory_space<vmem>>, vector<128x8xf32>
    %c41 = arith.constant 41 : index
    %c0_89 = arith.constant 0 : index
    %239 = vector.load %arg2[%c41, %c0_89] : memref<45x8xf32, #tpu.memory_space<vmem>>, vector<1x8xf32>
    %240 = vector.broadcast %239 : vector<1x8xf32> to vector<128x8xf32>
    %241 = arith.mulf %240, %238 : vector<128x8xf32>
    %242 = arith.addf %237, %241 : vector<128x8xf32>
    %c145 = arith.constant 145 : index
    %c0_90 = arith.constant 0 : index
    %243 = vector.load %arg5[%c145, %c0_90] : memref<416x8xf32, #tpu.memory_space<vmem>>, vector<128x8xf32>
    %c44 = arith.constant 44 : index
    %c0_91 = arith.constant 0 : index
    %244 = vector.load %arg2[%c44, %c0_91] : memref<45x8xf32, #tpu.memory_space<vmem>>, vector<1x8xf32>
    %245 = vector.broadcast %244 : vector<1x8xf32> to vector<128x8xf32>
    %246 = arith.mulf %245, %243 : vector<128x8xf32>
    %247 = arith.addf %242, %246 : vector<128x8xf32>
    %cst_92 = arith.constant 0.000000e+00 : f32
    %248 = vector.shape_cast %49 : vector<128x1xi1> to vector<128x1xi1>
    %249 = vector.broadcast %248 : vector<128x1xi1> to vector<128x8xi1>
    %250 = vector.broadcast %cst_92 : f32 to vector<128x8xf32>
    %251 = arith.select %249, %247, %250 : vector<128x8xi1>, vector<128x8xf32>
    %252 = arith.addf %203, %251 : vector<128x8xf32>
    %c50 = arith.constant 50 : index
    %c0_93 = arith.constant 0 : index
    %253 = vector.load %arg5[%c50, %c0_93] : memref<416x8xf32, #tpu.memory_space<vmem>>, vector<128x8xf32>
    %c11 = arith.constant 11 : index
    %c0_94 = arith.constant 0 : index
    %254 = vector.load %arg2[%c11, %c0_94] : memref<45x8xf32, #tpu.memory_space<vmem>>, vector<1x8xf32>
    %255 = vector.broadcast %254 : vector<1x8xf32> to vector<128x8xf32>
    %256 = arith.mulf %255, %253 : vector<128x8xf32>
    %c66 = arith.constant 66 : index
    %c0_95 = arith.constant 0 : index
    %257 = vector.load %arg5[%c66, %c0_95] : memref<416x8xf32, #tpu.memory_space<vmem>>, vector<128x8xf32>
    %c20 = arith.constant 20 : index
    %c0_96 = arith.constant 0 : index
    %258 = vector.load %arg2[%c20, %c0_96] : memref<45x8xf32, #tpu.memory_space<vmem>>, vector<1x8xf32>
    %259 = vector.broadcast %258 : vector<1x8xf32> to vector<128x8xf32>
    %260 = arith.mulf %259, %257 : vector<128x8xf32>
    %261 = arith.addf %256, %260 : vector<128x8xf32>
    %c82 = arith.constant 82 : index
    %c0_97 = arith.constant 0 : index
    %262 = vector.load %arg5[%c82, %c0_97] : memref<416x8xf32, #tpu.memory_space<vmem>>, vector<128x8xf32>
    %c29 = arith.constant 29 : index
    %c0_98 = arith.constant 0 : index
    %263 = vector.load %arg2[%c29, %c0_98] : memref<45x8xf32, #tpu.memory_space<vmem>>, vector<1x8xf32>
    %264 = vector.broadcast %263 : vector<1x8xf32> to vector<128x8xf32>
    %265 = arith.mulf %264, %262 : vector<128x8xf32>
    %266 = arith.addf %261, %265 : vector<128x8xf32>
    %cst_99 = arith.constant 0.000000e+00 : f32
    %267 = vector.shape_cast %54 : vector<128x1xi1> to vector<128x1xi1>
    %268 = vector.broadcast %267 : vector<128x1xi1> to vector<128x8xi1>
    %269 = vector.broadcast %cst_99 : f32 to vector<128x8xf32>
    %270 = arith.select %268, %266, %269 : vector<128x8xi1>, vector<128x8xf32>
    %271 = arith.addf %252, %270 : vector<128x8xf32>
    %c51 = arith.constant 51 : index
    %c0_100 = arith.constant 0 : index
    %272 = vector.load %arg5[%c51, %c0_100] : memref<416x8xf32, #tpu.memory_space<vmem>>, vector<128x8xf32>
    %c12 = arith.constant 12 : index
    %c0_101 = arith.constant 0 : index
    %273 = vector.load %arg2[%c12, %c0_101] : memref<45x8xf32, #tpu.memory_space<vmem>>, vector<1x8xf32>
    %274 = vector.broadcast %273 : vector<1x8xf32> to vector<128x8xf32>
    %275 = arith.mulf %274, %272 : vector<128x8xf32>
    %c67 = arith.constant 67 : index
    %c0_102 = arith.constant 0 : index
    %276 = vector.load %arg5[%c67, %c0_102] : memref<416x8xf32, #tpu.memory_space<vmem>>, vector<128x8xf32>
    %c21 = arith.constant 21 : index
    %c0_103 = arith.constant 0 : index
    %277 = vector.load %arg2[%c21, %c0_103] : memref<45x8xf32, #tpu.memory_space<vmem>>, vector<1x8xf32>
    %278 = vector.broadcast %277 : vector<1x8xf32> to vector<128x8xf32>
    %279 = arith.mulf %278, %276 : vector<128x8xf32>
    %280 = arith.addf %275, %279 : vector<128x8xf32>
    %c83 = arith.constant 83 : index
    %c0_104 = arith.constant 0 : index
    %281 = vector.load %arg5[%c83, %c0_104] : memref<416x8xf32, #tpu.memory_space<vmem>>, vector<128x8xf32>
    %c30 = arith.constant 30 : index
    %c0_105 = arith.constant 0 : index
    %282 = vector.load %arg2[%c30, %c0_105] : memref<45x8xf32, #tpu.memory_space<vmem>>, vector<1x8xf32>
    %283 = vector.broadcast %282 : vector<1x8xf32> to vector<128x8xf32>
    %284 = arith.mulf %283, %281 : vector<128x8xf32>
    %285 = arith.addf %280, %284 : vector<128x8xf32>
    %cst_106 = arith.constant 0.000000e+00 : f32
    %286 = vector.shape_cast %59 : vector<128x1xi1> to vector<128x1xi1>
    %287 = vector.broadcast %286 : vector<128x1xi1> to vector<128x8xi1>
    %288 = vector.broadcast %cst_106 : f32 to vector<128x8xf32>
    %289 = arith.select %287, %285, %288 : vector<128x8xi1>, vector<128x8xf32>
    %290 = arith.addf %271, %289 : vector<128x8xf32>
    %c52 = arith.constant 52 : index
    %c0_107 = arith.constant 0 : index
    %291 = vector.load %arg5[%c52, %c0_107] : memref<416x8xf32, #tpu.memory_space<vmem>>, vector<128x8xf32>
    %c13 = arith.constant 13 : index
    %c0_108 = arith.constant 0 : index
    %292 = vector.load %arg2[%c13, %c0_108] : memref<45x8xf32, #tpu.memory_space<vmem>>, vector<1x8xf32>
    %293 = vector.broadcast %292 : vector<1x8xf32> to vector<128x8xf32>
    %294 = arith.mulf %293, %291 : vector<128x8xf32>
    %c68 = arith.constant 68 : index
    %c0_109 = arith.constant 0 : index
    %295 = vector.load %arg5[%c68, %c0_109] : memref<416x8xf32, #tpu.memory_space<vmem>>, vector<128x8xf32>
    %c22 = arith.constant 22 : index
    %c0_110 = arith.constant 0 : index
    %296 = vector.load %arg2[%c22, %c0_110] : memref<45x8xf32, #tpu.memory_space<vmem>>, vector<1x8xf32>
    %297 = vector.broadcast %296 : vector<1x8xf32> to vector<128x8xf32>
    %298 = arith.mulf %297, %295 : vector<128x8xf32>
    %299 = arith.addf %294, %298 : vector<128x8xf32>
    %c84 = arith.constant 84 : index
    %c0_111 = arith.constant 0 : index
    %300 = vector.load %arg5[%c84, %c0_111] : memref<416x8xf32, #tpu.memory_space<vmem>>, vector<128x8xf32>
    %c31_112 = arith.constant 31 : index
    %c0_113 = arith.constant 0 : index
    %301 = vector.load %arg2[%c31_112, %c0_113] : memref<45x8xf32, #tpu.memory_space<vmem>>, vector<1x8xf32>
    %302 = vector.broadcast %301 : vector<1x8xf32> to vector<128x8xf32>
    %303 = arith.mulf %302, %300 : vector<128x8xf32>
    %304 = arith.addf %299, %303 : vector<128x8xf32>
    %cst_114 = arith.constant 0.000000e+00 : f32
    %305 = vector.shape_cast %64 : vector<128x1xi1> to vector<128x1xi1>
    %306 = vector.broadcast %305 : vector<128x1xi1> to vector<128x8xi1>
    %307 = vector.broadcast %cst_114 : f32 to vector<128x8xf32>
    %308 = arith.select %306, %304, %307 : vector<128x8xi1>, vector<128x8xf32>
    %309 = arith.addf %290, %308 : vector<128x8xf32>
    %c53 = arith.constant 53 : index
    %c0_115 = arith.constant 0 : index
    %310 = vector.load %arg5[%c53, %c0_115] : memref<416x8xf32, #tpu.memory_space<vmem>>, vector<128x8xf32>
    %c14 = arith.constant 14 : index
    %c0_116 = arith.constant 0 : index
    %311 = vector.load %arg2[%c14, %c0_116] : memref<45x8xf32, #tpu.memory_space<vmem>>, vector<1x8xf32>
    %312 = vector.broadcast %311 : vector<1x8xf32> to vector<128x8xf32>
    %313 = arith.mulf %312, %310 : vector<128x8xf32>
    %c69 = arith.constant 69 : index
    %c0_117 = arith.constant 0 : index
    %314 = vector.load %arg5[%c69, %c0_117] : memref<416x8xf32, #tpu.memory_space<vmem>>, vector<128x8xf32>
    %c23 = arith.constant 23 : index
    %c0_118 = arith.constant 0 : index
    %315 = vector.load %arg2[%c23, %c0_118] : memref<45x8xf32, #tpu.memory_space<vmem>>, vector<1x8xf32>
    %316 = vector.broadcast %315 : vector<1x8xf32> to vector<128x8xf32>
    %317 = arith.mulf %316, %314 : vector<128x8xf32>
    %318 = arith.addf %313, %317 : vector<128x8xf32>
    %c85 = arith.constant 85 : index
    %c0_119 = arith.constant 0 : index
    %319 = vector.load %arg5[%c85, %c0_119] : memref<416x8xf32, #tpu.memory_space<vmem>>, vector<128x8xf32>
    %c32_120 = arith.constant 32 : index
    %c0_121 = arith.constant 0 : index
    %320 = vector.load %arg2[%c32_120, %c0_121] : memref<45x8xf32, #tpu.memory_space<vmem>>, vector<1x8xf32>
    %321 = vector.broadcast %320 : vector<1x8xf32> to vector<128x8xf32>
    %322 = arith.mulf %321, %319 : vector<128x8xf32>
    %323 = arith.addf %318, %322 : vector<128x8xf32>
    %cst_122 = arith.constant 0.000000e+00 : f32
    %324 = vector.shape_cast %69 : vector<128x1xi1> to vector<128x1xi1>
    %325 = vector.broadcast %324 : vector<128x1xi1> to vector<128x8xi1>
    %326 = vector.broadcast %cst_122 : f32 to vector<128x8xf32>
    %327 = arith.select %325, %323, %326 : vector<128x8xi1>, vector<128x8xf32>
    %328 = arith.addf %309, %327 : vector<128x8xf32>
    %329 = tpu.transpose %328, [1, 0] : vector<128x8xf32> -> vector<8x128xf32>
    %c0_123 = arith.constant 0 : index
    %c0_124 = arith.constant 0 : index
    %330 = vector.load %arg4[%c0_123, %c0_124] : memref<8x256xf32, #tpu.memory_space<vmem>>, vector<8x128xf32>
    tpu.vector_store %arg4[%c0_123, %c0_124], %329 {strides = array<i32>} : memref<8x256xf32, #tpu.memory_space<vmem>>, vector<8x128xf32>,
    %331 = vector.shape_cast %10 : vector<1x8xf32> to vector<1x8xf32>
    %332 = vector.broadcast %331 : vector<1x8xf32> to vector<128x8xf32>
    %c173 = arith.constant 173 : index
    %c0_125 = arith.constant 0 : index
    %333 = vector.load %arg5[%c173, %c0_125] : memref<416x8xf32, #tpu.memory_space<vmem>>, vector<128x8xf32>
    %c6_126 = arith.constant 6 : index
    %c0_127 = arith.constant 0 : index
    %334 = vector.load %arg2[%c6_126, %c0_127] : memref<45x8xf32, #tpu.memory_space<vmem>>, vector<1x8xf32>
    %335 = vector.broadcast %334 : vector<1x8xf32> to vector<128x8xf32>
    %336 = arith.mulf %335, %333 : vector<128x8xf32>
    %c189 = arith.constant 189 : index
    %c0_128 = arith.constant 0 : index
    %337 = vector.load %arg5[%c189, %c0_128] : memref<416x8xf32, #tpu.memory_space<vmem>>, vector<128x8xf32>
    %c15_129 = arith.constant 15 : index
    %c0_130 = arith.constant 0 : index
    %338 = vector.load %arg2[%c15_129, %c0_130] : memref<45x8xf32, #tpu.memory_space<vmem>>, vector<1x8xf32>
    %339 = vector.broadcast %338 : vector<1x8xf32> to vector<128x8xf32>
    %340 = arith.mulf %339, %337 : vector<128x8xf32>
    %341 = arith.addf %336, %340 : vector<128x8xf32>
    %c205 = arith.constant 205 : index
    %c0_131 = arith.constant 0 : index
    %342 = vector.load %arg5[%c205, %c0_131] : memref<416x8xf32, #tpu.memory_space<vmem>>, vector<128x8xf32>
    %c24_132 = arith.constant 24 : index
    %c0_133 = arith.constant 0 : index
    %343 = vector.load %arg2[%c24_132, %c0_133] : memref<45x8xf32, #tpu.memory_space<vmem>>, vector<1x8xf32>
    %344 = vector.broadcast %343 : vector<1x8xf32> to vector<128x8xf32>
    %345 = arith.mulf %344, %342 : vector<128x8xf32>
    %346 = arith.addf %341, %345 : vector<128x8xf32>
    %cst_134 = arith.constant 0.000000e+00 : f32
    %347 = vector.shape_cast %34 : vector<128x1xi1> to vector<128x1xi1>
    %348 = vector.broadcast %347 : vector<128x1xi1> to vector<128x8xi1>
    %349 = vector.broadcast %cst_134 : f32 to vector<128x8xf32>
    %350 = arith.select %348, %346, %349 : vector<128x8xi1>, vector<128x8xf32>
    %351 = arith.addf %332, %350 : vector<128x8xf32>
    %c174 = arith.constant 174 : index
    %c0_135 = arith.constant 0 : index
    %352 = vector.load %arg5[%c174, %c0_135] : memref<416x8xf32, #tpu.memory_space<vmem>>, vector<128x8xf32>
    %c7_136 = arith.constant 7 : index
    %c0_137 = arith.constant 0 : index
    %353 = vector.load %arg2[%c7_136, %c0_137] : memref<45x8xf32, #tpu.memory_space<vmem>>, vector<1x8xf32>
    %354 = vector.broadcast %353 : vector<1x8xf32> to vector<128x8xf32>
    %355 = arith.mulf %354, %352 : vector<128x8xf32>
    %c190 = arith.constant 190 : index
    %c0_138 = arith.constant 0 : index
    %356 = vector.load %arg5[%c190, %c0_138] : memref<416x8xf32, #tpu.memory_space<vmem>>, vector<128x8xf32>
    %c16_139 = arith.constant 16 : index
    %c0_140 = arith.constant 0 : index
    %357 = vector.load %arg2[%c16_139, %c0_140] : memref<45x8xf32, #tpu.memory_space<vmem>>, vector<1x8xf32>
    %358 = vector.broadcast %357 : vector<1x8xf32> to vector<128x8xf32>
    %359 = arith.mulf %358, %356 : vector<128x8xf32>
    %360 = arith.addf %355, %359 : vector<128x8xf32>
    %c206 = arith.constant 206 : index
    %c0_141 = arith.constant 0 : index
    %361 = vector.load %arg5[%c206, %c0_141] : memref<416x8xf32, #tpu.memory_space<vmem>>, vector<128x8xf32>
    %c25_142 = arith.constant 25 : index
    %c0_143 = arith.constant 0 : index
    %362 = vector.load %arg2[%c25_142, %c0_143] : memref<45x8xf32, #tpu.memory_space<vmem>>, vector<1x8xf32>
    %363 = vector.broadcast %362 : vector<1x8xf32> to vector<128x8xf32>
    %364 = arith.mulf %363, %361 : vector<128x8xf32>
    %365 = arith.addf %360, %364 : vector<128x8xf32>
    %cst_144 = arith.constant 0.000000e+00 : f32
    %366 = vector.shape_cast %39 : vector<128x1xi1> to vector<128x1xi1>
    %367 = vector.broadcast %366 : vector<128x1xi1> to vector<128x8xi1>
    %368 = vector.broadcast %cst_144 : f32 to vector<128x8xf32>
    %369 = arith.select %367, %365, %368 : vector<128x8xi1>, vector<128x8xf32>
    %370 = arith.addf %351, %369 : vector<128x8xf32>
    %c143_145 = arith.constant 143 : index
    %c0_146 = arith.constant 0 : index
    %371 = vector.load %arg5[%c143_145, %c0_146] : memref<416x8xf32, #tpu.memory_space<vmem>>, vector<128x8xf32>
    %c0_147 = arith.constant 0 : index
    %c0_148 = arith.constant 0 : index
    %372 = vector.load %arg2[%c0_147, %c0_148] : memref<45x8xf32, #tpu.memory_space<vmem>>, vector<1x8xf32>
    %373 = vector.broadcast %372 : vector<1x8xf32> to vector<128x8xf32>
    %374 = arith.mulf %373, %371 : vector<128x8xf32>
    %c159 = arith.constant 159 : index
    %c0_149 = arith.constant 0 : index
    %375 = vector.load %arg5[%c159, %c0_149] : memref<416x8xf32, #tpu.memory_space<vmem>>, vector<128x8xf32>
    %c3_150 = arith.constant 3 : index
    %c0_151 = arith.constant 0 : index
    %376 = vector.load %arg2[%c3_150, %c0_151] : memref<45x8xf32, #tpu.memory_space<vmem>>, vector<1x8xf32>
    %377 = vector.broadcast %376 : vector<1x8xf32> to vector<128x8xf32>
    %378 = arith.mulf %377, %375 : vector<128x8xf32>
    %379 = arith.addf %374, %378 : vector<128x8xf32>
    %c175 = arith.constant 175 : index
    %c0_152 = arith.constant 0 : index
    %380 = vector.load %arg5[%c175, %c0_152] : memref<416x8xf32, #tpu.memory_space<vmem>>, vector<128x8xf32>
    %c8_153 = arith.constant 8 : index
    %c0_154 = arith.constant 0 : index
    %381 = vector.load %arg2[%c8_153, %c0_154] : memref<45x8xf32, #tpu.memory_space<vmem>>, vector<1x8xf32>
    %382 = vector.broadcast %381 : vector<1x8xf32> to vector<128x8xf32>
    %383 = arith.mulf %382, %380 : vector<128x8xf32>
    %384 = arith.addf %379, %383 : vector<128x8xf32>
    %c191 = arith.constant 191 : index
    %c0_155 = arith.constant 0 : index
    %385 = vector.load %arg5[%c191, %c0_155] : memref<416x8xf32, #tpu.memory_space<vmem>>, vector<128x8xf32>
    %c17_156 = arith.constant 17 : index
    %c0_157 = arith.constant 0 : index
    %386 = vector.load %arg2[%c17_156, %c0_157] : memref<45x8xf32, #tpu.memory_space<vmem>>, vector<1x8xf32>
    %387 = vector.broadcast %386 : vector<1x8xf32> to vector<128x8xf32>
    %388 = arith.mulf %387, %385 : vector<128x8xf32>
    %389 = arith.addf %384, %388 : vector<128x8xf32>
    %c207 = arith.constant 207 : index
    %c0_158 = arith.constant 0 : index
    %390 = vector.load %arg5[%c207, %c0_158] : memref<416x8xf32, #tpu.memory_space<vmem>>, vector<128x8xf32>
    %c26_159 = arith.constant 26 : index
    %c0_160 = arith.constant 0 : index
    %391 = vector.load %arg2[%c26_159, %c0_160] : memref<45x8xf32, #tpu.memory_space<vmem>>, vector<1x8xf32>
    %392 = vector.broadcast %391 : vector<1x8xf32> to vector<128x8xf32>
    %393 = arith.mulf %392, %390 : vector<128x8xf32>
    %394 = arith.addf %389, %393 : vector<128x8xf32>
    %c223 = arith.constant 223 : index
    %c0_161 = arith.constant 0 : index
    %395 = vector.load %arg5[%c223, %c0_161] : memref<416x8xf32, #tpu.memory_space<vmem>>, vector<128x8xf32>
    %c33_162 = arith.constant 33 : index
    %c0_163 = arith.constant 0 : index
    %396 = vector.load %arg2[%c33_162, %c0_163] : memref<45x8xf32, #tpu.memory_space<vmem>>, vector<1x8xf32>
    %397 = vector.broadcast %396 : vector<1x8xf32> to vector<128x8xf32>
    %398 = arith.mulf %397, %395 : vector<128x8xf32>
    %399 = arith.addf %394, %398 : vector<128x8xf32>
    %c239 = arith.constant 239 : index
    %c0_164 = arith.constant 0 : index
    %400 = vector.load %arg5[%c239, %c0_164] : memref<416x8xf32, #tpu.memory_space<vmem>>, vector<128x8xf32>
    %c36_165 = arith.constant 36 : index
    %c0_166 = arith.constant 0 : index
    %401 = vector.load %arg2[%c36_165, %c0_166] : memref<45x8xf32, #tpu.memory_space<vmem>>, vector<1x8xf32>
    %402 = vector.broadcast %401 : vector<1x8xf32> to vector<128x8xf32>
    %403 = arith.mulf %402, %400 : vector<128x8xf32>
    %404 = arith.addf %399, %403 : vector<128x8xf32>
    %c255 = arith.constant 255 : index
    %c0_167 = arith.constant 0 : index
    %405 = vector.load %arg5[%c255, %c0_167] : memref<416x8xf32, #tpu.memory_space<vmem>>, vector<128x8xf32>
    %c39_168 = arith.constant 39 : index
    %c0_169 = arith.constant 0 : index
    %406 = vector.load %arg2[%c39_168, %c0_169] : memref<45x8xf32, #tpu.memory_space<vmem>>, vector<1x8xf32>
    %407 = vector.broadcast %406 : vector<1x8xf32> to vector<128x8xf32>
    %408 = arith.mulf %407, %405 : vector<128x8xf32>
    %409 = arith.addf %404, %408 : vector<128x8xf32>
    %c271 = arith.constant 271 : index
    %c0_170 = arith.constant 0 : index
    %410 = vector.load %arg5[%c271, %c0_170] : memref<416x8xf32, #tpu.memory_space<vmem>>, vector<128x8xf32>
    %c42_171 = arith.constant 42 : index
    %c0_172 = arith.constant 0 : index
    %411 = vector.load %arg2[%c42_171, %c0_172] : memref<45x8xf32, #tpu.memory_space<vmem>>, vector<1x8xf32>
    %412 = vector.broadcast %411 : vector<1x8xf32> to vector<128x8xf32>
    %413 = arith.mulf %412, %410 : vector<128x8xf32>
    %414 = arith.addf %409, %413 : vector<128x8xf32>
    %cst_173 = arith.constant 0.000000e+00 : f32
    %415 = vector.shape_cast %44 : vector<128x1xi1> to vector<128x1xi1>
    %416 = vector.broadcast %415 : vector<128x1xi1> to vector<128x8xi1>
    %417 = vector.broadcast %cst_173 : f32 to vector<128x8xf32>
    %418 = arith.select %416, %414, %417 : vector<128x8xi1>, vector<128x8xf32>
    %419 = arith.addf %370, %418 : vector<128x8xf32>
    %c144_174 = arith.constant 144 : index
    %c0_175 = arith.constant 0 : index
    %420 = vector.load %arg5[%c144_174, %c0_175] : memref<416x8xf32, #tpu.memory_space<vmem>>, vector<128x8xf32>
    %c1_176 = arith.constant 1 : index
    %c0_177 = arith.constant 0 : index
    %421 = vector.load %arg2[%c1_176, %c0_177] : memref<45x8xf32, #tpu.memory_space<vmem>>, vector<1x8xf32>
    %422 = vector.broadcast %421 : vector<1x8xf32> to vector<128x8xf32>
    %423 = arith.mulf %422, %420 : vector<128x8xf32>
    %c160 = arith.constant 160 : index
    %c0_178 = arith.constant 0 : index
    %424 = vector.load %arg5[%c160, %c0_178] : memref<416x8xf32, #tpu.memory_space<vmem>>, vector<128x8xf32>
    %c4_179 = arith.constant 4 : index
    %c0_180 = arith.constant 0 : index
    %425 = vector.load %arg2[%c4_179, %c0_180] : memref<45x8xf32, #tpu.memory_space<vmem>>, vector<1x8xf32>
    %426 = vector.broadcast %425 : vector<1x8xf32> to vector<128x8xf32>
    %427 = arith.mulf %426, %424 : vector<128x8xf32>
    %428 = arith.addf %423, %427 : vector<128x8xf32>
    %c176 = arith.constant 176 : index
    %c0_181 = arith.constant 0 : index
    %429 = vector.load %arg5[%c176, %c0_181] : memref<416x8xf32, #tpu.memory_space<vmem>>, vector<128x8xf32>
    %c9_182 = arith.constant 9 : index
    %c0_183 = arith.constant 0 : index
    %430 = vector.load %arg2[%c9_182, %c0_183] : memref<45x8xf32, #tpu.memory_space<vmem>>, vector<1x8xf32>
    %431 = vector.broadcast %430 : vector<1x8xf32> to vector<128x8xf32>
    %432 = arith.mulf %431, %429 : vector<128x8xf32>
    %433 = arith.addf %428, %432 : vector<128x8xf32>
    %c192_184 = arith.constant 192 : index
    %c0_185 = arith.constant 0 : index
    %434 = vector.load %arg5[%c192_184, %c0_185] : memref<416x8xf32, #tpu.memory_space<vmem>>, vector<128x8xf32>
    %c18_186 = arith.constant 18 : index
    %c0_187 = arith.constant 0 : index
    %435 = vector.load %arg2[%c18_186, %c0_187] : memref<45x8xf32, #tpu.memory_space<vmem>>, vector<1x8xf32>
    %436 = vector.broadcast %435 : vector<1x8xf32> to vector<128x8xf32>
    %437 = arith.mulf %436, %434 : vector<128x8xf32>
    %438 = arith.addf %433, %437 : vector<128x8xf32>
    %c208 = arith.constant 208 : index
    %c0_188 = arith.constant 0 : index
    %439 = vector.load %arg5[%c208, %c0_188] : memref<416x8xf32, #tpu.memory_space<vmem>>, vector<128x8xf32>
    %c27_189 = arith.constant 27 : index
    %c0_190 = arith.constant 0 : index
    %440 = vector.load %arg2[%c27_189, %c0_190] : memref<45x8xf32, #tpu.memory_space<vmem>>, vector<1x8xf32>
    %441 = vector.broadcast %440 : vector<1x8xf32> to vector<128x8xf32>
    %442 = arith.mulf %441, %439 : vector<128x8xf32>
    %443 = arith.addf %438, %442 : vector<128x8xf32>
    %c224 = arith.constant 224 : index
    %c0_191 = arith.constant 0 : index
    %444 = vector.load %arg5[%c224, %c0_191] : memref<416x8xf32, #tpu.memory_space<vmem>>, vector<128x8xf32>
    %c34_192 = arith.constant 34 : index
    %c0_193 = arith.constant 0 : index
    %445 = vector.load %arg2[%c34_192, %c0_193] : memref<45x8xf32, #tpu.memory_space<vmem>>, vector<1x8xf32>
    %446 = vector.broadcast %445 : vector<1x8xf32> to vector<128x8xf32>
    %447 = arith.mulf %446, %444 : vector<128x8xf32>
    %448 = arith.addf %443, %447 : vector<128x8xf32>
    %c240 = arith.constant 240 : index
    %c0_194 = arith.constant 0 : index
    %449 = vector.load %arg5[%c240, %c0_194] : memref<416x8xf32, #tpu.memory_space<vmem>>, vector<128x8xf32>
    %c37_195 = arith.constant 37 : index
    %c0_196 = arith.constant 0 : index
    %450 = vector.load %arg2[%c37_195, %c0_196] : memref<45x8xf32, #tpu.memory_space<vmem>>, vector<1x8xf32>
    %451 = vector.broadcast %450 : vector<1x8xf32> to vector<128x8xf32>
    %452 = arith.mulf %451, %449 : vector<128x8xf32>
    %453 = arith.addf %448, %452 : vector<128x8xf32>
    %c256 = arith.constant 256 : index
    %c0_197 = arith.constant 0 : index
    %454 = vector.load %arg5[%c256, %c0_197] : memref<416x8xf32, #tpu.memory_space<vmem>>, vector<128x8xf32>
    %c40_198 = arith.constant 40 : index
    %c0_199 = arith.constant 0 : index
    %455 = vector.load %arg2[%c40_198, %c0_199] : memref<45x8xf32, #tpu.memory_space<vmem>>, vector<1x8xf32>
    %456 = vector.broadcast %455 : vector<1x8xf32> to vector<128x8xf32>
    %457 = arith.mulf %456, %454 : vector<128x8xf32>
    %458 = arith.addf %453, %457 : vector<128x8xf32>
    %c272 = arith.constant 272 : index
    %c0_200 = arith.constant 0 : index
    %459 = vector.load %arg5[%c272, %c0_200] : memref<416x8xf32, #tpu.memory_space<vmem>>, vector<128x8xf32>
    %c43_201 = arith.constant 43 : index
    %c0_202 = arith.constant 0 : index
    %460 = vector.load %arg2[%c43_201, %c0_202] : memref<45x8xf32, #tpu.memory_space<vmem>>, vector<1x8xf32>
    %461 = vector.broadcast %460 : vector<1x8xf32> to vector<128x8xf32>
    %462 = arith.mulf %461, %459 : vector<128x8xf32>
    %463 = arith.addf %458, %462 : vector<128x8xf32>
    %464 = arith.addf %419, %463 : vector<128x8xf32>
    %c145_203 = arith.constant 145 : index
    %c0_204 = arith.constant 0 : index
    %465 = vector.load %arg5[%c145_203, %c0_204] : memref<416x8xf32, #tpu.memory_space<vmem>>, vector<128x8xf32>
    %c2_205 = arith.constant 2 : index
    %c0_206 = arith.constant 0 : index
    %466 = vector.load %arg2[%c2_205, %c0_206] : memref<45x8xf32, #tpu.memory_space<vmem>>, vector<1x8xf32>
    %467 = vector.broadcast %466 : vector<1x8xf32> to vector<128x8xf32>
    %468 = arith.mulf %467, %465 : vector<128x8xf32>
    %c161 = arith.constant 161 : index
    %c0_207 = arith.constant 0 : index
    %469 = vector.load %arg5[%c161, %c0_207] : memref<416x8xf32, #tpu.memory_space<vmem>>, vector<128x8xf32>
    %c5_208 = arith.constant 5 : index
    %c0_209 = arith.constant 0 : index
    %470 = vector.load %arg2[%c5_208, %c0_209] : memref<45x8xf32, #tpu.memory_space<vmem>>, vector<1x8xf32>
    %471 = vector.broadcast %470 : vector<1x8xf32> to vector<128x8xf32>
    %472 = arith.mulf %471, %469 : vector<128x8xf32>
    %473 = arith.addf %468, %472 : vector<128x8xf32>
    %c177 = arith.constant 177 : index
    %c0_210 = arith.constant 0 : index
    %474 = vector.load %arg5[%c177, %c0_210] : memref<416x8xf32, #tpu.memory_space<vmem>>, vector<128x8xf32>
    %c10_211 = arith.constant 10 : index
    %c0_212 = arith.constant 0 : index
    %475 = vector.load %arg2[%c10_211, %c0_212] : memref<45x8xf32, #tpu.memory_space<vmem>>, vector<1x8xf32>
    %476 = vector.broadcast %475 : vector<1x8xf32> to vector<128x8xf32>
    %477 = arith.mulf %476, %474 : vector<128x8xf32>
    %478 = arith.addf %473, %477 : vector<128x8xf32>
    %c193 = arith.constant 193 : index
    %c0_213 = arith.constant 0 : index
    %479 = vector.load %arg5[%c193, %c0_213] : memref<416x8xf32, #tpu.memory_space<vmem>>, vector<128x8xf32>
    %c19_214 = arith.constant 19 : index
    %c0_215 = arith.constant 0 : index
    %480 = vector.load %arg2[%c19_214, %c0_215] : memref<45x8xf32, #tpu.memory_space<vmem>>, vector<1x8xf32>
    %481 = vector.broadcast %480 : vector<1x8xf32> to vector<128x8xf32>
    %482 = arith.mulf %481, %479 : vector<128x8xf32>
    %483 = arith.addf %478, %482 : vector<128x8xf32>
    %c209 = arith.constant 209 : index
    %c0_216 = arith.constant 0 : index
    %484 = vector.load %arg5[%c209, %c0_216] : memref<416x8xf32, #tpu.memory_space<vmem>>, vector<128x8xf32>
    %c28_217 = arith.constant 28 : index
    %c0_218 = arith.constant 0 : index
    %485 = vector.load %arg2[%c28_217, %c0_218] : memref<45x8xf32, #tpu.memory_space<vmem>>, vector<1x8xf32>
    %486 = vector.broadcast %485 : vector<1x8xf32> to vector<128x8xf32>
    %487 = arith.mulf %486, %484 : vector<128x8xf32>
    %488 = arith.addf %483, %487 : vector<128x8xf32>
    %c225 = arith.constant 225 : index
    %c0_219 = arith.constant 0 : index
    %489 = vector.load %arg5[%c225, %c0_219] : memref<416x8xf32, #tpu.memory_space<vmem>>, vector<128x8xf32>
    %c35_220 = arith.constant 35 : index
    %c0_221 = arith.constant 0 : index
    %490 = vector.load %arg2[%c35_220, %c0_221] : memref<45x8xf32, #tpu.memory_space<vmem>>, vector<1x8xf32>
    %491 = vector.broadcast %490 : vector<1x8xf32> to vector<128x8xf32>
    %492 = arith.mulf %491, %489 : vector<128x8xf32>
    %493 = arith.addf %488, %492 : vector<128x8xf32>
    %c241 = arith.constant 241 : index
    %c0_222 = arith.constant 0 : index
    %494 = vector.load %arg5[%c241, %c0_222] : memref<416x8xf32, #tpu.memory_space<vmem>>, vector<128x8xf32>
    %c38_223 = arith.constant 38 : index
    %c0_224 = arith.constant 0 : index
    %495 = vector.load %arg2[%c38_223, %c0_224] : memref<45x8xf32, #tpu.memory_space<vmem>>, vector<1x8xf32>
    %496 = vector.broadcast %495 : vector<1x8xf32> to vector<128x8xf32>
    %497 = arith.mulf %496, %494 : vector<128x8xf32>
    %498 = arith.addf %493, %497 : vector<128x8xf32>
    %c257 = arith.constant 257 : index
    %c0_225 = arith.constant 0 : index
    %499 = vector.load %arg5[%c257, %c0_225] : memref<416x8xf32, #tpu.memory_space<vmem>>, vector<128x8xf32>
    %c41_226 = arith.constant 41 : index
    %c0_227 = arith.constant 0 : index
    %500 = vector.load %arg2[%c41_226, %c0_227] : memref<45x8xf32, #tpu.memory_space<vmem>>, vector<1x8xf32>
    %501 = vector.broadcast %500 : vector<1x8xf32> to vector<128x8xf32>
    %502 = arith.mulf %501, %499 : vector<128x8xf32>
    %503 = arith.addf %498, %502 : vector<128x8xf32>
    %c273 = arith.constant 273 : index
    %c0_228 = arith.constant 0 : index
    %504 = vector.load %arg5[%c273, %c0_228] : memref<416x8xf32, #tpu.memory_space<vmem>>, vector<128x8xf32>
    %c44_229 = arith.constant 44 : index
    %c0_230 = arith.constant 0 : index
    %505 = vector.load %arg2[%c44_229, %c0_230] : memref<45x8xf32, #tpu.memory_space<vmem>>, vector<1x8xf32>
    %506 = vector.broadcast %505 : vector<1x8xf32> to vector<128x8xf32>
    %507 = arith.mulf %506, %504 : vector<128x8xf32>
    %508 = arith.addf %503, %507 : vector<128x8xf32>
    %cst_231 = arith.constant 0.000000e+00 : f32
    %509 = vector.shape_cast %49 : vector<128x1xi1> to vector<128x1xi1>
    %510 = vector.broadcast %509 : vector<128x1xi1> to vector<128x8xi1>
    %511 = vector.broadcast %cst_231 : f32 to vector<128x8xf32>
    %512 = arith.select %510, %508, %511 : vector<128x8xi1>, vector<128x8xf32>
    %513 = arith.addf %464, %512 : vector<128x8xf32>
    %c178 = arith.constant 178 : index
    %c0_232 = arith.constant 0 : index
    %514 = vector.load %arg5[%c178, %c0_232] : memref<416x8xf32, #tpu.memory_space<vmem>>, vector<128x8xf32>
    %c11_233 = arith.constant 11 : index
    %c0_234 = arith.constant 0 : index
    %515 = vector.load %arg2[%c11_233, %c0_234] : memref<45x8xf32, #tpu.memory_space<vmem>>, vector<1x8xf32>
    %516 = vector.broadcast %515 : vector<1x8xf32> to vector<128x8xf32>
    %517 = arith.mulf %516, %514 : vector<128x8xf32>
    %c194 = arith.constant 194 : index
    %c0_235 = arith.constant 0 : index
    %518 = vector.load %arg5[%c194, %c0_235] : memref<416x8xf32, #tpu.memory_space<vmem>>, vector<128x8xf32>
    %c20_236 = arith.constant 20 : index
    %c0_237 = arith.constant 0 : index
    %519 = vector.load %arg2[%c20_236, %c0_237] : memref<45x8xf32, #tpu.memory_space<vmem>>, vector<1x8xf32>
    %520 = vector.broadcast %519 : vector<1x8xf32> to vector<128x8xf32>
    %521 = arith.mulf %520, %518 : vector<128x8xf32>
    %522 = arith.addf %517, %521 : vector<128x8xf32>
    %c210 = arith.constant 210 : index
    %c0_238 = arith.constant 0 : index
    %523 = vector.load %arg5[%c210, %c0_238] : memref<416x8xf32, #tpu.memory_space<vmem>>, vector<128x8xf32>
    %c29_239 = arith.constant 29 : index
    %c0_240 = arith.constant 0 : index
    %524 = vector.load %arg2[%c29_239, %c0_240] : memref<45x8xf32, #tpu.memory_space<vmem>>, vector<1x8xf32>
    %525 = vector.broadcast %524 : vector<1x8xf32> to vector<128x8xf32>
    %526 = arith.mulf %525, %523 : vector<128x8xf32>
    %527 = arith.addf %522, %526 : vector<128x8xf32>
    %cst_241 = arith.constant 0.000000e+00 : f32
    %528 = vector.shape_cast %54 : vector<128x1xi1> to vector<128x1xi1>
    %529 = vector.broadcast %528 : vector<128x1xi1> to vector<128x8xi1>
    %530 = vector.broadcast %cst_241 : f32 to vector<128x8xf32>
    %531 = arith.select %529, %527, %530 : vector<128x8xi1>, vector<128x8xf32>
    %532 = arith.addf %513, %531 : vector<128x8xf32>
    %c179 = arith.constant 179 : index
    %c0_242 = arith.constant 0 : index
    %533 = vector.load %arg5[%c179, %c0_242] : memref<416x8xf32, #tpu.memory_space<vmem>>, vector<128x8xf32>
    %c12_243 = arith.constant 12 : index
    %c0_244 = arith.constant 0 : index
    %534 = vector.load %arg2[%c12_243, %c0_244] : memref<45x8xf32, #tpu.memory_space<vmem>>, vector<1x8xf32>
    %535 = vector.broadcast %534 : vector<1x8xf32> to vector<128x8xf32>
    %536 = arith.mulf %535, %533 : vector<128x8xf32>
    %c195 = arith.constant 195 : index
    %c0_245 = arith.constant 0 : index
    %537 = vector.load %arg5[%c195, %c0_245] : memref<416x8xf32, #tpu.memory_space<vmem>>, vector<128x8xf32>
    %c21_246 = arith.constant 21 : index
    %c0_247 = arith.constant 0 : index
    %538 = vector.load %arg2[%c21_246, %c0_247] : memref<45x8xf32, #tpu.memory_space<vmem>>, vector<1x8xf32>
    %539 = vector.broadcast %538 : vector<1x8xf32> to vector<128x8xf32>
    %540 = arith.mulf %539, %537 : vector<128x8xf32>
    %541 = arith.addf %536, %540 : vector<128x8xf32>
    %c211 = arith.constant 211 : index
    %c0_248 = arith.constant 0 : index
    %542 = vector.load %arg5[%c211, %c0_248] : memref<416x8xf32, #tpu.memory_space<vmem>>, vector<128x8xf32>
    %c30_249 = arith.constant 30 : index
    %c0_250 = arith.constant 0 : index
    %543 = vector.load %arg2[%c30_249, %c0_250] : memref<45x8xf32, #tpu.memory_space<vmem>>, vector<1x8xf32>
    %544 = vector.broadcast %543 : vector<1x8xf32> to vector<128x8xf32>
    %545 = arith.mulf %544, %542 : vector<128x8xf32>
    %546 = arith.addf %541, %545 : vector<128x8xf32>
    %cst_251 = arith.constant 0.000000e+00 : f32
    %547 = vector.shape_cast %59 : vector<128x1xi1> to vector<128x1xi1>
    %548 = vector.broadcast %547 : vector<128x1xi1> to vector<128x8xi1>
    %549 = vector.broadcast %cst_251 : f32 to vector<128x8xf32>
    %550 = arith.select %548, %546, %549 : vector<128x8xi1>, vector<128x8xf32>
    %551 = arith.addf %532, %550 : vector<128x8xf32>
    %c180 = arith.constant 180 : index
    %c0_252 = arith.constant 0 : index
    %552 = vector.load %arg5[%c180, %c0_252] : memref<416x8xf32, #tpu.memory_space<vmem>>, vector<128x8xf32>
    %c13_253 = arith.constant 13 : index
    %c0_254 = arith.constant 0 : index
    %553 = vector.load %arg2[%c13_253, %c0_254] : memref<45x8xf32, #tpu.memory_space<vmem>>, vector<1x8xf32>
    %554 = vector.broadcast %553 : vector<1x8xf32> to vector<128x8xf32>
    %555 = arith.mulf %554, %552 : vector<128x8xf32>
    %c196 = arith.constant 196 : index
    %c0_255 = arith.constant 0 : index
    %556 = vector.load %arg5[%c196, %c0_255] : memref<416x8xf32, #tpu.memory_space<vmem>>, vector<128x8xf32>
    %c22_256 = arith.constant 22 : index
    %c0_257 = arith.constant 0 : index
    %557 = vector.load %arg2[%c22_256, %c0_257] : memref<45x8xf32, #tpu.memory_space<vmem>>, vector<1x8xf32>
    %558 = vector.broadcast %557 : vector<1x8xf32> to vector<128x8xf32>
    %559 = arith.mulf %558, %556 : vector<128x8xf32>
    %560 = arith.addf %555, %559 : vector<128x8xf32>
    %c212 = arith.constant 212 : index
    %c0_258 = arith.constant 0 : index
    %561 = vector.load %arg5[%c212, %c0_258] : memref<416x8xf32, #tpu.memory_space<vmem>>, vector<128x8xf32>
    %c31_259 = arith.constant 31 : index
    %c0_260 = arith.constant 0 : index
    %562 = vector.load %arg2[%c31_259, %c0_260] : memref<45x8xf32, #tpu.memory_space<vmem>>, vector<1x8xf32>
    %563 = vector.broadcast %562 : vector<1x8xf32> to vector<128x8xf32>
    %564 = arith.mulf %563, %561 : vector<128x8xf32>
    %565 = arith.addf %560, %564 : vector<128x8xf32>
    %cst_261 = arith.constant 0.000000e+00 : f32
    %566 = vector.shape_cast %64 : vector<128x1xi1> to vector<128x1xi1>
    %567 = vector.broadcast %566 : vector<128x1xi1> to vector<128x8xi1>
    %568 = vector.broadcast %cst_261 : f32 to vector<128x8xf32>
    %569 = arith.select %567, %565, %568 : vector<128x8xi1>, vector<128x8xf32>
    %570 = arith.addf %551, %569 : vector<128x8xf32>
    %c181 = arith.constant 181 : index
    %c0_262 = arith.constant 0 : index
    %571 = vector.load %arg5[%c181, %c0_262] : memref<416x8xf32, #tpu.memory_space<vmem>>, vector<128x8xf32>
    %c14_263 = arith.constant 14 : index
    %c0_264 = arith.constant 0 : index
    %572 = vector.load %arg2[%c14_263, %c0_264] : memref<45x8xf32, #tpu.memory_space<vmem>>, vector<1x8xf32>
    %573 = vector.broadcast %572 : vector<1x8xf32> to vector<128x8xf32>
    %574 = arith.mulf %573, %571 : vector<128x8xf32>
    %c197 = arith.constant 197 : index
    %c0_265 = arith.constant 0 : index
    %575 = vector.load %arg5[%c197, %c0_265] : memref<416x8xf32, #tpu.memory_space<vmem>>, vector<128x8xf32>
    %c23_266 = arith.constant 23 : index
    %c0_267 = arith.constant 0 : index
    %576 = vector.load %arg2[%c23_266, %c0_267] : memref<45x8xf32, #tpu.memory_space<vmem>>, vector<1x8xf32>
    %577 = vector.broadcast %576 : vector<1x8xf32> to vector<128x8xf32>
    %578 = arith.mulf %577, %575 : vector<128x8xf32>
    %579 = arith.addf %574, %578 : vector<128x8xf32>
    %c213 = arith.constant 213 : index
    %c0_268 = arith.constant 0 : index
    %580 = vector.load %arg5[%c213, %c0_268] : memref<416x8xf32, #tpu.memory_space<vmem>>, vector<128x8xf32>
    %c32_269 = arith.constant 32 : index
    %c0_270 = arith.constant 0 : index
    %581 = vector.load %arg2[%c32_269, %c0_270] : memref<45x8xf32, #tpu.memory_space<vmem>>, vector<1x8xf32>
    %582 = vector.broadcast %581 : vector<1x8xf32> to vector<128x8xf32>
    %583 = arith.mulf %582, %580 : vector<128x8xf32>
    %584 = arith.addf %579, %583 : vector<128x8xf32>
    %cst_271 = arith.constant 0.000000e+00 : f32
    %585 = vector.shape_cast %69 : vector<128x1xi1> to vector<128x1xi1>
    %586 = vector.broadcast %585 : vector<128x1xi1> to vector<128x8xi1>
    %587 = vector.broadcast %cst_271 : f32 to vector<128x8xf32>
    %588 = arith.select %586, %584, %587 : vector<128x8xi1>, vector<128x8xf32>
    %589 = arith.addf %570, %588 : vector<128x8xf32>
    %590 = tpu.transpose %589, [1, 0] : vector<128x8xf32> -> vector<8x128xf32>
    %c0_272 = arith.constant 0 : index
    %c128_273 = arith.constant 128 : index
    %591 = vector.load %arg4[%c0_272, %c128_273] : memref<8x256xf32, #tpu.memory_space<vmem>>, vector<8x128xf32>
    tpu.vector_store %arg4[%c0_272, %c128_273], %590 {strides = array<i32>} : memref<8x256xf32, #tpu.memory_space<vmem>>, vector<8x128xf32>,
    return
  }
  func.func @transform_0(%arg0: i32) -> (i32, i32) {
    %c0_i32 = arith.constant 0 : i32
    %c0_i32_0 = arith.constant 0 : i32
    return %arg0, %c0_i32 : i32, i32
  }
  func.func @transform_1(%arg0: i32) -> (i32, i32) {
    %c0_i32 = arith.constant 0 : i32
    %c0_i32_0 = arith.constant 0 : i32
    return %c0_i32, %arg0 : i32, i32
  }
  func.func @transform_2(%arg0: i32) -> (i32, i32) {
    %c0_i32 = arith.constant 0 : i32
    %c0_i32_0 = arith.constant 0 : i32
    return %c0_i32, %arg0 : i32, i32
  }
  func.func @transform_3(%arg0: i32) -> (i32, i32) {
    %c0_i32 = arith.constant 0 : i32
    %c0_i32_0 = arith.constant 0 : i32
    return %arg0, %c0_i32 : i32, i32
  }
}

</mosaic_0001>

<llo_original>
// kernel: tpu_custom_call.1
$region0: #{tpu_custom_call.1}
  #allocation0 [shape = 'u32[]', space=smem, size = 0x4, offset = 0x4, fixed_abs, tag = 'smem constant byte address 0x4 - core index']
  #allocation1 [shape = 'u32[144,128]{1,0:T(1,128)}', space=vmem, size = 0x12000, scoped, tag = 'internal scratch']
  #allocation2 [shape = 'f32[416,8]{1,0:T(8,128)}', space=vmem, size = 0x34000, scoped, tag = 'scratch operand']
  %s0 = inlined_call_operand.vmem [shape: f32[8,256], index: 0, kind: input, shape index: {}]
  %s1 = inlined_call_operand.vmem [shape: f32[45,8], index: 1, kind: input, shape index: {}]
  %s2 = inlined_call_operand.vmem [shape: f32[1,8], index: 2, kind: input, shape index: {}]
  %s3 = inlined_call_operand.hbm [shape: f32[8,256], index: 3, kind: output, shape index: {}]
  %s4 = sld [smem:[#allocation0]]
  $region22: #{tpu_custom_call.1} parent=0
    _
  %s6 = ssub.s32 1, %s4
  %s7 = scalar_select 0, %s6, %s4
  $region1: #{tpu_custom_call.1} parent=0
    #allocation3 [shape = 'u8[8192]{0}', space=vmem, size = 0x2000, scoped, tag = 'output window, operand 0, single buffered']
    #allocation4 [shape = 's32[1]{0}', space=sflag, size = 0x4, scoped, tag = 'scoped memory for tpu_custom_call.1']
    %8 = vsyncpa [#allocation4], 0
    // Predicated region
    $region2: #{tpu_custom_call.1} parent=1 // pred_check
      _
    $region3: #{tpu_custom_call.1} parent=1 // pred_check_branch
      %10 = sbr.rel (0) target = $region5
    $region4: #{tpu_custom_call.1} parent=1 // pred_region
      _
    $region5: #{tpu_custom_call.1} parent=1 // pred_fallthru
      _
    // Predicated region
    $region6: #{tpu_custom_call.1} parent=1 // pred_check
      _
    $region7: #{tpu_custom_call.1} parent=1 // pred_check_branch
      %12 = sbr.rel (0) target = $region9
    $region8: #{tpu_custom_call.1} parent=1 // pred_region
      _
    $region9: #{tpu_custom_call.1} parent=1 // pred_fallthru
      _
    // Predicated region
    $region10: #{tpu_custom_call.1} parent=1 // pred_check
      _
    $region11: #{tpu_custom_call.1} parent=1 // pred_check_branch
      %14 = sbr.rel (0) target = $region13
    $region12: #{tpu_custom_call.1} parent=1 // pred_region
      _
    $region13: #{tpu_custom_call.1} parent=1 // pred_fallthru
      _
    %vm15 = vcmask 64512
    %16 = vst.msk [vmem:[#allocation2] sm:$0xff] %vm15, 0.0
    %17 = vst.msk [vmem:[#allocation2 + $0x8] sm:$0xff] %vm15, 0.0
    %18 = vst.msk [vmem:[#allocation2 + $0x10] sm:$0xff] %vm15, 0.0
    %19 = vst.msk [vmem:[#allocation2 + $0x18] sm:$0xff] %vm15, 0.0
    %20 = vst.msk [vmem:[#allocation2 + $0x20] sm:$0xff] %vm15, 0.0
    %21 = vst.msk [vmem:[#allocation2 + $0x28] sm:$0xff] %vm15, 0.0
    %22 = vst.msk [vmem:[#allocation2 + $0x30] sm:$0xff] %vm15, 0.0
    %23 = vst.msk [vmem:[#allocation2 + $0x38] sm:$0xff] %vm15, 0.0
    %24 = vst.msk [vmem:[#allocation2 + $0x140] sm:$0xff] %vm15, 0.0
    %25 = vst.msk [vmem:[#allocation2 + $0x148] sm:$0xff] %vm15, 0.0
    %26 = vst.msk [vmem:[#allocation2 + $0x150] sm:$0xff] %vm15, 0.0
    %27 = vst.msk [vmem:[#allocation2 + $0x158] sm:$0xff] %vm15, 0.0
    %28 = vst.msk [vmem:[#allocation2 + $0x160] sm:$0xff] %vm15, 0.0
    %29 = vst.msk [vmem:[#allocation2 + $0x168] sm:$0xff] %vm15, 0.0
    %30 = vst.msk [vmem:[#allocation2 + $0x170] sm:$0xff] %vm15, 0.0
    %31 = vst.msk [vmem:[#allocation2 + $0x178] sm:$0xff] %vm15, 0.0
    %32 = vst.msk [vmem:[#allocation2 + $0x180] sm:$0xff] %vm15, 0.0
    %33 = vst.msk [vmem:[#allocation2 + $0x188] sm:$0xff] %vm15, 0.0
    %34 = vst.msk [vmem:[#allocation2 + $0x190] sm:$0xff] %vm15, 0.0
    %35 = vst.msk [vmem:[#allocation2 + $0x198] sm:$0xff] %vm15, 0.0
    %v36 = vld [vmem:[%s0] sm:$0xff]
    %37 = vxpose.xlu0.b32.start [1/16] %v36, 128
    %38 = vxpose.xlu0.b32.cont [2/16] 0.0, 128
    %39 = vxpose.xlu0.b32.cont [3/16] 0.0, 128
    %40 = vxpose.xlu0.b32.cont [4/16] 0.0, 128
    %41 = vxpose.xlu0.b32.cont [5/16] 0.0, 128
    %42 = vxpose.xlu0.b32.cont [6/16] 0.0, 128
    %43 = vxpose.xlu0.b32.cont [7/16] 0.0, 128
    %44 = vxpose.xlu0.b32.cont [8/16] 0.0, 128
    %45 = vxpose.xlu0.b32.cont [9/16] 0.0, 128
    %46 = vxpose.xlu0.b32.cont [10/16] 0.0, 128
    %47 = vxpose.xlu0.b32.cont [11/16] 0.0, 128
    %48 = vxpose.xlu0.b32.cont [12/16] 0.0, 128
    %49 = vxpose.xlu0.b32.cont [13/16] 0.0, 128
    %50 = vxpose.xlu0.b32.cont [14/16] 0.0, 128
    %51 = vxpose.xlu0.b32.cont [15/16] 0.0, 128
    %52 = vxpose.xlu0.b32.end [16/16] 0.0, 128
    %v53 = vpop.trf.xlu0
    %v54 = vpop.trf.xlu0
    %v55 = vpop.trf.xlu0
    %v56 = vpop.trf.xlu0
    %v57 = vpop.trf.xlu0
    %v58 = vpop.trf.xlu0
    %v59 = vpop.trf.xlu0
    %v60 = vpop.trf.xlu0
    %v61 = vpop.trf.xlu0
    %v62 = vpop.trf.xlu0
    %v63 = vpop.trf.xlu0
    %v64 = vpop.trf.xlu0
    %v65 = vpop.trf.xlu0
    %v66 = vpop.trf.xlu0
    %v67 = vpop.trf.xlu0
    %v68 = vpop.trf.xlu0
    %69 = vst.msk [vmem:[#allocation2 + $0x40] sm:$0xff] %vm15, %v53
    %70 = vst.msk [vmem:[#allocation2 + $0x48] sm:$0xff] %vm15, %v54
    %71 = vst.msk [vmem:[#allocation2 + $0x50] sm:$0xff] %vm15, %v55
    %72 = vst.msk [vmem:[#allocation2 + $0x58] sm:$0xff] %vm15, %v56
    %73 = vst.msk [vmem:[#allocation2 + $0x60] sm:$0xff] %vm15, %v57
    %74 = vst.msk [vmem:[#allocation2 + $0x68] sm:$0xff] %vm15, %v58
    %75 = vst.msk [vmem:[#allocation2 + $0x70] sm:$0xff] %vm15, %v59
    %76 = vst.msk [vmem:[#allocation2 + $0x78] sm:$0xff] %vm15, %v60
    %77 = vst.msk [vmem:[#allocation2 + $0x80] sm:$0xff] %vm15, %v61
    %78 = vst.msk [vmem:[#allocation2 + $0x88] sm:$0xff] %vm15, %v62
    %79 = vst.msk [vmem:[#allocation2 + $0x90] sm:$0xff] %vm15, %v63
    %80 = vst.msk [vmem:[#allocation2 + $0x98] sm:$0xff] %vm15, %v64
    %81 = vst.msk [vmem:[#allocation2 + $0xa0] sm:$0xff] %vm15, %v65
    %82 = vst.msk [vmem:[#allocation2 + $0xa8] sm:$0xff] %vm15, %v66
    %83 = vst.msk [vmem:[#allocation2 + $0xb0] sm:$0xff] %vm15, %v67
    %84 = vst.msk [vmem:[#allocation2 + $0xb8] sm:$0xff] %vm15, %v68
    %v85 = vld [vmem:[%s0 + $0x8] sm:$0xff]
    %86 = vxpose.xlu0.b32.start [1/16] %v85, 128
    %87 = vxpose.xlu0.b32.cont [2/16] 0.0, 128
    %88 = vxpose.xlu0.b32.cont [3/16] 0.0, 128
    %89 = vxpose.xlu0.b32.cont [4/16] 0.0, 128
    %90 = vxpose.xlu0.b32.cont [5/16] 0.0, 128
    %91 = vxpose.xlu0.b32.cont [6/16] 0.0, 128
    %92 = vxpose.xlu0.b32.cont [7/16] 0.0, 128
    %93 = vxpose.xlu0.b32.cont [8/16] 0.0, 128
    %94 = vxpose.xlu0.b32.cont [9/16] 0.0, 128
    %95 = vxpose.xlu0.b32.cont [10/16] 0.0, 128
    %96 = vxpose.xlu0.b32.cont [11/16] 0.0, 128
    %97 = vxpose.xlu0.b32.cont [12/16] 0.0, 128
    %98 = vxpose.xlu0.b32.cont [13/16] 0.0, 128
    %99 = vxpose.xlu0.b32.cont [14/16] 0.0, 128
    %100 = vxpose.xlu0.b32.cont [15/16] 0.0, 128
    %101 = vxpose.xlu0.b32.end [16/16] 0.0, 128
    %v102 = vpop.trf.xlu0
    %v103 = vpop.trf.xlu0
    %v104 = vpop.trf.xlu0
    %v105 = vpop.trf.xlu0
    %v106 = vpop.trf.xlu0
    %v107 = vpop.trf.xlu0
    %v108 = vpop.trf.xlu0
    %v109 = vpop.trf.xlu0
    %v110 = vpop.trf.xlu0
    %v111 = vpop.trf.xlu0
    %v112 = vpop.trf.xlu0
    %v113 = vpop.trf.xlu0
    %v114 = vpop.trf.xlu0
    %v115 = vpop.trf.xlu0
    %v116 = vpop.trf.xlu0
    %v117 = vpop.trf.xlu0
    %118 = vst.msk [vmem:[#allocation2 + $0xc0] sm:$0xff] %vm15, %v102
    %119 = vst.msk [vmem:[#allocation2 + $0xc8] sm:$0xff] %vm15, %v103
    %120 = vst.msk [vmem:[#allocation2 + $0xd0] sm:$0xff] %vm15, %v104
    %121 = vst.msk [vmem:[#allocation2 + $0xd8] sm:$0xff] %vm15, %v105
    %122 = vst.msk [vmem:[#allocation2 + $0xe0] sm:$0xff] %vm15, %v106
    %123 = vst.msk [vmem:[#allocation2 + $0xe8] sm:$0xff] %vm15, %v107
    %124 = vst.msk [vmem:[#allocation2 + $0xf0] sm:$0xff] %vm15, %v108
    %125 = vst.msk [vmem:[#allocation2 + $0xf8] sm:$0xff] %vm15, %v109
    %126 = vst.msk [vmem:[#allocation2 + $0x100] sm:$0xff] %vm15, %v110
    %127 = vst.msk [vmem:[#allocation2 + $0x108] sm:$0xff] %vm15, %v111
    %128 = vst.msk [vmem:[#allocation2 + $0x110] sm:$0xff] %vm15, %v112
    %129 = vst.msk [vmem:[#allocation2 + $0x118] sm:$0xff] %vm15, %v113
    %130 = vst.msk [vmem:[#allocation2 + $0x120] sm:$0xff] %vm15, %v114
    %131 = vst.msk [vmem:[#allocation2 + $0x128] sm:$0xff] %vm15, %v115
    %132 = vst.msk [vmem:[#allocation2 + $0x130] sm:$0xff] %vm15, %v116
    %133 = vst.msk [vmem:[#allocation2 + $0x138] sm:$0xff] %vm15, %v117
    %v134 = vld [vmem:[%s2] sm:$0x1]
    %v135 = vlaneseq
    %v136 = vshrl.u32 %v135, 7
    %v137 = vadd.s32 %v136, 8
    %v138 = vadd.s32 %v136, 16
    %v139 = vadd.s32 %v136, 24
    %v140 = vadd.s32 %v136, 32
    %v141 = vadd.s32 %v136, 40
    %v142 = vadd.s32 %v136, 48
    %v143 = vadd.s32 %v136, 56
    %v144 = vadd.s32 %v136, 64
    %v145 = vadd.s32 %v136, 72
    %v146 = vadd.s32 %v136, 80
    %v147 = vadd.s32 %v136, 88
    %v148 = vadd.s32 %v136, 96
    %v149 = vadd.s32 %v136, 104
    %v150 = vadd.s32 %v136, 112
    %v151 = vadd.s32 %v136, 120
    %vm152 = vcmp.lt.s32.totalorder %v136, 0
    %v153 = vsub.s32 0, %v136
    %v154 = vsel %vm152, %v153, %v136
    %v155 = vshrl.u32 %v154, 4
    %v156 = vand.u32 %v154, 15
    %v157 = vsub.s32 0, %v156
    %v158 = vsel %vm152, %v157, %v156
    %vm159 = vcmp.lt.s32.totalorder %v137, 0
    %v160 = vsub.s32 0, %v137
    %v161 = vsel %vm159, %v160, %v137
    %v162 = vshrl.u32 %v161, 4
    %v163 = vand.u32 %v161, 15
    %v164 = vsub.s32 0, %v163
    %v165 = vsel %vm159, %v164, %v163
    %vm166 = vcmp.lt.s32.totalorder %v138, 0
    %v167 = vsub.s32 0, %v138
    %v168 = vsel %vm166, %v167, %v138
    %v169 = vshrl.u32 %v168, 4
    %v170 = vand.u32 %v168, 15
    %v171 = vsub.s32 0, %v170
    %v172 = vsel %vm166, %v171, %v170
    %vm173 = vcmp.lt.s32.totalorder %v139, 0
    %v174 = vsub.s32 0, %v139
    %v175 = vsel %vm173, %v174, %v139
    %v176 = vshrl.u32 %v175, 4
    %v177 = vand.u32 %v175, 15
    %v178 = vsub.s32 0, %v177
    %v179 = vsel %vm173, %v178, %v177
    %vm180 = vcmp.lt.s32.totalorder %v140, 0
    %v181 = vsub.s32 0, %v140
    %v182 = vsel %vm180, %v181, %v140
    %v183 = vshrl.u32 %v182, 4
    %v184 = vand.u32 %v182, 15
    %v185 = vsub.s32 0, %v184
    %v186 = vsel %vm180, %v185, %v184
    %vm187 = vcmp.lt.s32.totalorder %v141, 0
    %v188 = vsub.s32 0, %v141
    %v189 = vsel %vm187, %v188, %v141
    %v190 = vshrl.u32 %v189, 4
    %v191 = vand.u32 %v189, 15
    %v192 = vsub.s32 0, %v191
    %v193 = vsel %vm187, %v192, %v191
    %vm194 = vcmp.lt.s32.totalorder %v142, 0
    %v195 = vsub.s32 0, %v142
    %v196 = vsel %vm194, %v195, %v142
    %v197 = vshrl.u32 %v196, 4
    %v198 = vand.u32 %v196, 15
    %v199 = vsub.s32 0, %v198
    %v200 = vsel %vm194, %v199, %v198
    %vm201 = vcmp.lt.s32.totalorder %v143, 0
    %v202 = vsub.s32 0, %v143
    %v203 = vsel %vm201, %v202, %v143
    %v204 = vshrl.u32 %v203, 4
    %v205 = vand.u32 %v203, 15
    %v206 = vsub.s32 0, %v205
    %v207 = vsel %vm201, %v206, %v205
    %vm208 = vcmp.lt.s32.totalorder %v144, 0
    %v209 = vsub.s32 0, %v144
    %v210 = vsel %vm208, %v209, %v144
    %v211 = vshrl.u32 %v210, 4
    %v212 = vand.u32 %v210, 15
    %v213 = vsub.s32 0, %v212
    %v214 = vsel %vm208, %v213, %v212
    %vm215 = vcmp.lt.s32.totalorder %v145, 0
    %v216 = vsub.s32 0, %v145
    %v217 = vsel %vm215, %v216, %v145
    %v218 = vshrl.u32 %v217, 4
    %v219 = vand.u32 %v217, 15
    %v220 = vsub.s32 0, %v219
    %v221 = vsel %vm215, %v220, %v219
    %vm222 = vcmp.lt.s32.totalorder %v146, 0
    %v223 = vsub.s32 0, %v146
    %v224 = vsel %vm222, %v223, %v146
    %v225 = vshrl.u32 %v224, 4
    %v226 = vand.u32 %v224, 15
    %v227 = vsub.s32 0, %v226
    %v228 = vsel %vm222, %v227, %v226
    %vm229 = vcmp.lt.s32.totalorder %v147, 0
    %v230 = vsub.s32 0, %v147
    %v231 = vsel %vm229, %v230, %v147
    %v232 = vshrl.u32 %v231, 4
    %v233 = vand.u32 %v231, 15
    %v234 = vsub.s32 0, %v233
    %v235 = vsel %vm229, %v234, %v233
    %vm236 = vcmp.lt.s32.totalorder %v148, 0
    %v237 = vsub.s32 0, %v148
    %v238 = vsel %vm236, %v237, %v148
    %v239 = vshrl.u32 %v238, 4
    %v240 = vand.u32 %v238, 15
    %v241 = vsub.s32 0, %v240
    %v242 = vsel %vm236, %v241, %v240
    %vm243 = vcmp.lt.s32.totalorder %v149, 0
    %v244 = vsub.s32 0, %v149
    %v245 = vsel %vm243, %v244, %v149
    %v246 = vshrl.u32 %v245, 4
    %v247 = vand.u32 %v245, 15
    %v248 = vsub.s32 0, %v247
    %v249 = vsel %vm243, %v248, %v247
    %vm250 = vcmp.lt.s32.totalorder %v150, 0
    %v251 = vsub.s32 0, %v150
    %v252 = vsel %vm250, %v251, %v150
    %v253 = vshrl.u32 %v252, 4
    %v254 = vand.u32 %v252, 15
    %v255 = vsub.s32 0, %v254
    %v256 = vsel %vm250, %v255, %v254
    %vm257 = vcmp.lt.s32.totalorder %v151, 0
    %v258 = vsub.s32 0, %v151
    %v259 = vsel %vm257, %v258, %v151
    %v260 = vshrl.u32 %v259, 4
    %v261 = vand.u32 %v259, 15
    %v262 = vsub.s32 0, %v261
    %v263 = vsel %vm257, %v262, %v261
    %vm264 = vcmp.ne.s32.totalorder %v158, 0
    %vm265 = vcmp.ne.s32.totalorder %v165, 0
    %vm266 = vcmp.ne.s32.totalorder %v172, 0
    %vm267 = vcmp.ne.s32.totalorder %v179, 0
    %vm268 = vcmp.ne.s32.totalorder %v186, 0
    %vm269 = vcmp.ne.s32.totalorder %v193, 0
    %vm270 = vcmp.ne.s32.totalorder %v200, 0
    %vm271 = vcmp.ne.s32.totalorder %v207, 0
    %vm272 = vcmp.ne.s32.totalorder %v214, 0
    %vm273 = vcmp.ne.s32.totalorder %v221, 0
    %vm274 = vcmp.ne.s32.totalorder %v228, 0
    %vm275 = vcmp.ne.s32.totalorder %v235, 0
    %vm276 = vcmp.ne.s32.totalorder %v242, 0
    %vm277 = vcmp.ne.s32.totalorder %v249, 0
    %vm278 = vcmp.ne.s32.totalorder %v256, 0
    %vm279 = vcmp.ne.s32.totalorder %v263, 0
    %vm280 = vcmp.lt.s32.totalorder %v158, 0
    %vm281 = vcmp.lt.s32.totalorder %v165, 0
    %vm282 = vcmp.lt.s32.totalorder %v172, 0
    %vm283 = vcmp.lt.s32.totalorder %v179, 0
    %vm284 = vcmp.lt.s32.totalorder %v186, 0
    %vm285 = vcmp.lt.s32.totalorder %v193, 0
    %vm286 = vcmp.lt.s32.totalorder %v200, 0
    %vm287 = vcmp.lt.s32.totalorder %v207, 0
    %vm288 = vcmp.lt.s32.totalorder %v214, 0
    %vm289 = vcmp.lt.s32.totalorder %v221, 0
    %vm290 = vcmp.lt.s32.totalorder %v228, 0
    %vm291 = vcmp.lt.s32.totalorder %v235, 0
    %vm292 = vcmp.lt.s32.totalorder %v242, 0
    %vm293 = vcmp.lt.s32.totalorder %v249, 0
    %vm294 = vcmp.lt.s32.totalorder %v256, 0
    %vm295 = vcmp.lt.s32.totalorder %v263, 0
    %vm296 = vmand %vm280, %vm264
    %vm297 = vmand %vm281, %vm265
    %vm298 = vmand %vm282, %vm266
    %vm299 = vmand %vm283, %vm267
    %vm300 = vmand %vm284, %vm268
    %vm301 = vmand %vm285, %vm269
    %vm302 = vmand %vm286, %vm270
    %vm303 = vmand %vm287, %vm271
    %vm304 = vmand %vm288, %vm272
    %vm305 = vmand %vm289, %vm273
    %vm306 = vmand %vm290, %vm274
    %vm307 = vmand %vm291, %vm275
    %vm308 = vmand %vm292, %vm276
    %vm309 = vmand %vm293, %vm277
    %vm310 = vmand %vm294, %vm278
    %vm311 = vmand %vm295, %vm279
    %v312 = vadd.s32 %v158, 16
    %v313 = vadd.s32 %v165, 16
    %v314 = vadd.s32 %v172, 16
    %v315 = vadd.s32 %v179, 16
    %v316 = vadd.s32 %v186, 16
    %v317 = vadd.s32 %v193, 16
    %v318 = vadd.s32 %v200, 16
    %v319 = vadd.s32 %v207, 16
    %v320 = vadd.s32 %v214, 16
    %v321 = vadd.s32 %v221, 16
    %v322 = vadd.s32 %v228, 16
    %v323 = vadd.s32 %v235, 16
    %v324 = vadd.s32 %v242, 16
    %v325 = vadd.s32 %v249, 16
    %v326 = vadd.s32 %v256, 16
    %v327 = vadd.s32 %v263, 16
    %v328 = vsel %vm296, %v312, %v158
    %v329 = vsel %vm297, %v313, %v165
    %v330 = vsel %vm298, %v314, %v172
    %v331 = vsel %vm299, %v315, %v179
    %v332 = vsel %vm300, %v316, %v186
    %v333 = vsel %vm301, %v317, %v193
    %v334 = vsel %vm302, %v318, %v200
    %v335 = vsel %vm303, %v319, %v207
    %v336 = vsel %vm304, %v320, %v214
    %v337 = vsel %vm305, %v321, %v221
    %v338 = vsel %vm306, %v322, %v228
    %v339 = vsel %vm307, %v323, %v235
    %v340 = vsel %vm308, %v324, %v242
    %v341 = vsel %vm309, %v325, %v249
    %v342 = vsel %vm310, %v326, %v256
    %v343 = vsel %vm311, %v327, %v263
    %vm344 = vcmp.ge.s32.totalorder %v328, 3
    %vm345 = vcmp.ge.s32.totalorder %v329, 3
    %vm346 = vcmp.ge.s32.totalorder %v330, 3
    %vm347 = vcmp.ge.s32.totalorder %v331, 3
    %vm348 = vcmp.ge.s32.totalorder %v332, 3
    %vm349 = vcmp.ge.s32.totalorder %v333, 3
    %vm350 = vcmp.ge.s32.totalorder %v334, 3
    %vm351 = vcmp.ge.s32.totalorder %v335, 3
    %vm352 = vcmp.ge.s32.totalorder %v336, 3
    %vm353 = vcmp.ge.s32.totalorder %v337, 3
    %vm354 = vcmp.ge.s32.totalorder %v338, 3
    %vm355 = vcmp.ge.s32.totalorder %v339, 3
    %vm356 = vcmp.ge.s32.totalorder %v340, 3
    %vm357 = vcmp.ge.s32.totalorder %v341, 3
    %vm358 = vcmp.ge.s32.totalorder %v342, 3
    %vm359 = vcmp.ge.s32.totalorder %v343, 3
    %vm360 = vcmp.le.s32.totalorder %v328, 18
    %vm361 = vcmp.le.s32.totalorder %v329, 18
    %vm362 = vcmp.le.s32.totalorder %v330, 18
    %vm363 = vcmp.le.s32.totalorder %v331, 18
    %vm364 = vcmp.le.s32.totalorder %v332, 18
    %vm365 = vcmp.le.s32.totalorder %v333, 18
    %vm366 = vcmp.le.s32.totalorder %v334, 18
    %vm367 = vcmp.le.s32.totalorder %v335, 18
    %vm368 = vcmp.le.s32.totalorder %v336, 18
    %vm369 = vcmp.le.s32.totalorder %v337, 18
    %vm370 = vcmp.le.s32.totalorder %v338, 18
    %vm371 = vcmp.le.s32.totalorder %v339, 18
    %vm372 = vcmp.le.s32.totalorder %v340, 18
    %vm373 = vcmp.le.s32.totalorder %v341, 18
    %vm374 = vcmp.le.s32.totalorder %v342, 18
    %vm375 = vcmp.le.s32.totalorder %v343, 18
    %vm376 = vmand %vm344, %vm360
    %vm377 = vmand %vm345, %vm361
    %vm378 = vmand %vm346, %vm362
    %vm379 = vmand %vm347, %vm363
    %vm380 = vmand %vm348, %vm364
    %vm381 = vmand %vm349, %vm365
    %vm382 = vmand %vm350, %vm366
    %vm383 = vmand %vm351, %vm367
    %vm384 = vmand %vm352, %vm368
    %vm385 = vmand %vm353, %vm369
    %vm386 = vmand %vm354, %vm370
    %vm387 = vmand %vm355, %vm371
    %vm388 = vmand %vm356, %vm372
    %vm389 = vmand %vm357, %vm373
    %vm390 = vmand %vm358, %vm374
    %vm391 = vmand %vm359, %vm375
    %vm392 = vcmp.ge.s32.totalorder %v328, 2
    %vm393 = vcmp.ge.s32.totalorder %v329, 2
    %vm394 = vcmp.ge.s32.totalorder %v330, 2
    %vm395 = vcmp.ge.s32.totalorder %v331, 2
    %vm396 = vcmp.ge.s32.totalorder %v332, 2
    %vm397 = vcmp.ge.s32.totalorder %v333, 2
    %vm398 = vcmp.ge.s32.totalorder %v334, 2
    %vm399 = vcmp.ge.s32.totalorder %v335, 2
    %vm400 = vcmp.ge.s32.totalorder %v336, 2
    %vm401 = vcmp.ge.s32.totalorder %v337, 2
    %vm402 = vcmp.ge.s32.totalorder %v338, 2
    %vm403 = vcmp.ge.s32.totalorder %v339, 2
    %vm404 = vcmp.ge.s32.totalorder %v340, 2
    %vm405 = vcmp.ge.s32.totalorder %v341, 2
    %vm406 = vcmp.ge.s32.totalorder %v342, 2
    %vm407 = vcmp.ge.s32.totalorder %v343, 2
    %vm408 = vcmp.le.s32.totalorder %v328, 17
    %vm409 = vcmp.le.s32.totalorder %v329, 17
    %vm410 = vcmp.le.s32.totalorder %v330, 17
    %vm411 = vcmp.le.s32.totalorder %v331, 17
    %vm412 = vcmp.le.s32.totalorder %v332, 17
    %vm413 = vcmp.le.s32.totalorder %v333, 17
    %vm414 = vcmp.le.s32.totalorder %v334, 17
    %vm415 = vcmp.le.s32.totalorder %v335, 17
    %vm416 = vcmp.le.s32.totalorder %v336, 17
    %vm417 = vcmp.le.s32.totalorder %v337, 17
    %vm418 = vcmp.le.s32.totalorder %v338, 17
    %vm419 = vcmp.le.s32.totalorder %v339, 17
    %vm420 = vcmp.le.s32.totalorder %v340, 17
    %vm421 = vcmp.le.s32.totalorder %v341, 17
    %vm422 = vcmp.le.s32.totalorder %v342, 17
    %vm423 = vcmp.le.s32.totalorder %v343, 17
    %vm424 = vmand %vm392, %vm408
    %vm425 = vmand %vm393, %vm409
    %vm426 = vmand %vm394, %vm410
    %vm427 = vmand %vm395, %vm411
    %vm428 = vmand %vm396, %vm412
    %vm429 = vmand %vm397, %vm413
    %vm430 = vmand %vm398, %vm414
    %vm431 = vmand %vm399, %vm415
    %vm432 = vmand %vm400, %vm416
    %vm433 = vmand %vm401, %vm417
    %vm434 = vmand %vm402, %vm418
    %vm435 = vmand %vm403, %vm419
    %vm436 = vmand %vm404, %vm420
    %vm437 = vmand %vm405, %vm421
    %vm438 = vmand %vm406, %vm422
    %vm439 = vmand %vm407, %vm423
    %vm440 = vcmp.ge.s32.totalorder %v328, 1
    %vm441 = vcmp.ge.s32.totalorder %v329, 1
    %vm442 = vcmp.ge.s32.totalorder %v330, 1
    %vm443 = vcmp.ge.s32.totalorder %v331, 1
    %vm444 = vcmp.ge.s32.totalorder %v332, 1
    %vm445 = vcmp.ge.s32.totalorder %v333, 1
    %vm446 = vcmp.ge.s32.totalorder %v334, 1
    %vm447 = vcmp.ge.s32.totalorder %v335, 1
    %vm448 = vcmp.ge.s32.totalorder %v336, 1
    %vm449 = vcmp.ge.s32.totalorder %v337, 1
    %vm450 = vcmp.ge.s32.totalorder %v338, 1
    %vm451 = vcmp.ge.s32.totalorder %v339, 1
    %vm452 = vcmp.ge.s32.totalorder %v340, 1
    %vm453 = vcmp.ge.s32.totalorder %v341, 1
    %vm454 = vcmp.ge.s32.totalorder %v342, 1
    %vm455 = vcmp.ge.s32.totalorder %v343, 1
    %vm456 = vcmp.le.s32.totalorder %v328, 16
    %vm457 = vcmp.le.s32.totalorder %v329, 16
    %vm458 = vcmp.le.s32.totalorder %v330, 16
    %vm459 = vcmp.le.s32.totalorder %v331, 16
    %vm460 = vcmp.le.s32.totalorder %v332, 16
    %vm461 = vcmp.le.s32.totalorder %v333, 16
    %vm462 = vcmp.le.s32.totalorder %v334, 16
    %vm463 = vcmp.le.s32.totalorder %v335, 16
    %vm464 = vcmp.le.s32.totalorder %v336, 16
    %vm465 = vcmp.le.s32.totalorder %v337, 16
    %vm466 = vcmp.le.s32.totalorder %v338, 16
    %vm467 = vcmp.le.s32.totalorder %v339, 16
    %vm468 = vcmp.le.s32.totalorder %v340, 16
    %vm469 = vcmp.le.s32.totalorder %v341, 16
    %vm470 = vcmp.le.s32.totalorder %v342, 16
    %vm471 = vcmp.le.s32.totalorder %v343, 16
    %vm472 = vmand %vm440, %vm456
    %vm473 = vmand %vm441, %vm457
    %vm474 = vmand %vm442, %vm458
    %vm475 = vmand %vm443, %vm459
    %vm476 = vmand %vm444, %vm460
    %vm477 = vmand %vm445, %vm461
    %vm478 = vmand %vm446, %vm462
    %vm479 = vmand %vm447, %vm463
    %vm480 = vmand %vm448, %vm464
    %vm481 = vmand %vm449, %vm465
    %vm482 = vmand %vm450, %vm466
    %vm483 = vmand %vm451, %vm467
    %vm484 = vmand %vm452, %vm468
    %vm485 = vmand %vm453, %vm469
    %vm486 = vmand %vm454, %vm470
    %vm487 = vmand %vm455, %vm471
    %vm488 = vcmp.ge.s32.totalorder %v328, 4294967295
    %vm489 = vcmp.ge.s32.totalorder %v329, 4294967295
    %vm490 = vcmp.ge.s32.totalorder %v330, 4294967295
    %vm491 = vcmp.ge.s32.totalorder %v331, 4294967295
    %vm492 = vcmp.ge.s32.totalorder %v332, 4294967295
    %vm493 = vcmp.ge.s32.totalorder %v333, 4294967295
    %vm494 = vcmp.ge.s32.totalorder %v334, 4294967295
    %vm495 = vcmp.ge.s32.totalorder %v335, 4294967295
    %vm496 = vcmp.ge.s32.totalorder %v336, 4294967295
    %vm497 = vcmp.ge.s32.totalorder %v337, 4294967295
    %vm498 = vcmp.ge.s32.totalorder %v338, 4294967295
    %vm499 = vcmp.ge.s32.totalorder %v339, 4294967295
    %vm500 = vcmp.ge.s32.totalorder %v340, 4294967295
    %vm501 = vcmp.ge.s32.totalorder %v341, 4294967295
    %vm502 = vcmp.ge.s32.totalorder %v342, 4294967295
    %vm503 = vcmp.ge.s32.totalorder %v343, 4294967295
    %vm504 = vcmp.le.s32.totalorder %v328, 14
    %vm505 = vcmp.le.s32.totalorder %v329, 14
    %vm506 = vcmp.le.s32.totalorder %v330, 14
    %vm507 = vcmp.le.s32.totalorder %v331, 14
    %vm508 = vcmp.le.s32.totalorder %v332, 14
    %vm509 = vcmp.le.s32.totalorder %v333, 14
    %vm510 = vcmp.le.s32.totalorder %v334, 14
    %vm511 = vcmp.le.s32.totalorder %v335, 14
    %vm512 = vcmp.le.s32.totalorder %v336, 14
    %vm513 = vcmp.le.s32.totalorder %v337, 14
    %vm514 = vcmp.le.s32.totalorder %v338, 14
    %vm515 = vcmp.le.s32.totalorder %v339, 14
    %vm516 = vcmp.le.s32.totalorder %v340, 14
    %vm517 = vcmp.le.s32.totalorder %v341, 14
    %vm518 = vcmp.le.s32.totalorder %v342, 14
    %vm519 = vcmp.le.s32.totalorder %v343, 14
    %vm520 = vmand %vm488, %vm504
    %vm521 = vmand %vm489, %vm505
    %vm522 = vmand %vm490, %vm506
    %vm523 = vmand %vm491, %vm507
    %vm524 = vmand %vm492, %vm508
    %vm525 = vmand %vm493, %vm509
    %vm526 = vmand %vm494, %vm510
    %vm527 = vmand %vm495, %vm511
    %vm528 = vmand %vm496, %vm512
    %vm529 = vmand %vm497, %vm513
    %vm530 = vmand %vm498, %vm514
    %vm531 = vmand %vm499, %vm515
    %vm532 = vmand %vm500, %vm516
    %vm533 = vmand %vm501, %vm517
    %vm534 = vmand %vm502, %vm518
    %vm535 = vmand %vm503, %vm519
    %vm536 = vcmp.ge.s32.totalorder %v328, 4294967294
    %vm537 = vcmp.ge.s32.totalorder %v329, 4294967294
    %vm538 = vcmp.ge.s32.totalorder %v330, 4294967294
    %vm539 = vcmp.ge.s32.totalorder %v331, 4294967294
    %vm540 = vcmp.ge.s32.totalorder %v332, 4294967294
    %vm541 = vcmp.ge.s32.totalorder %v333, 4294967294
    %vm542 = vcmp.ge.s32.totalorder %v334, 4294967294
    %vm543 = vcmp.ge.s32.totalorder %v335, 4294967294
    %vm544 = vcmp.ge.s32.totalorder %v336, 4294967294
    %vm545 = vcmp.ge.s32.totalorder %v337, 4294967294
    %vm546 = vcmp.ge.s32.totalorder %v338, 4294967294
    %vm547 = vcmp.ge.s32.totalorder %v339, 4294967294
    %vm548 = vcmp.ge.s32.totalorder %v340, 4294967294
    %vm549 = vcmp.ge.s32.totalorder %v341, 4294967294
    %vm550 = vcmp.ge.s32.totalorder %v342, 4294967294
    %vm551 = vcmp.ge.s32.totalorder %v343, 4294967294
    %vm552 = vcmp.le.s32.totalorder %v328, 13
    %vm553 = vcmp.le.s32.totalorder %v329, 13
    %vm554 = vcmp.le.s32.totalorder %v330, 13
    %vm555 = vcmp.le.s32.totalorder %v331, 13
    %vm556 = vcmp.le.s32.totalorder %v332, 13
    %vm557 = vcmp.le.s32.totalorder %v333, 13
    %vm558 = vcmp.le.s32.totalorder %v334, 13
    %vm559 = vcmp.le.s32.totalorder %v335, 13
    %vm560 = vcmp.le.s32.totalorder %v336, 13
    %vm561 = vcmp.le.s32.totalorder %v337, 13
    %vm562 = vcmp.le.s32.totalorder %v338, 13
    %vm563 = vcmp.le.s32.totalorder %v339, 13
    %vm564 = vcmp.le.s32.totalorder %v340, 13
    %vm565 = vcmp.le.s32.totalorder %v341, 13
    %vm566 = vcmp.le.s32.totalorder %v342, 13
    %vm567 = vcmp.le.s32.totalorder %v343, 13
    %vm568 = vmand %vm536, %vm552
    %vm569 = vmand %vm537, %vm553
    %vm570 = vmand %vm538, %vm554
    %vm571 = vmand %vm539, %vm555
    %vm572 = vmand %vm540, %vm556
    %vm573 = vmand %vm541, %vm557
    %vm574 = vmand %vm542, %vm558
    %vm575 = vmand %vm543, %vm559
    %vm576 = vmand %vm544, %vm560
    %vm577 = vmand %vm545, %vm561
    %vm578 = vmand %vm546, %vm562
    %vm579 = vmand %vm547, %vm563
    %vm580 = vmand %vm548, %vm564
    %vm581 = vmand %vm549, %vm565
    %vm582 = vmand %vm550, %vm566
    %vm583 = vmand %vm551, %vm567
    %vm584 = vcmp.ge.s32.totalorder %v328, 4294967293
    %vm585 = vcmp.ge.s32.totalorder %v329, 4294967293
    %vm586 = vcmp.ge.s32.totalorder %v330, 4294967293
    %vm587 = vcmp.ge.s32.totalorder %v331, 4294967293
    %vm588 = vcmp.ge.s32.totalorder %v332, 4294967293
    %vm589 = vcmp.ge.s32.totalorder %v333, 4294967293
    %vm590 = vcmp.ge.s32.totalorder %v334, 4294967293
    %vm591 = vcmp.ge.s32.totalorder %v335, 4294967293
    %vm592 = vcmp.ge.s32.totalorder %v336, 4294967293
    %vm593 = vcmp.ge.s32.totalorder %v337, 4294967293
    %vm594 = vcmp.ge.s32.totalorder %v338, 4294967293
    %vm595 = vcmp.ge.s32.totalorder %v339, 4294967293
    %vm596 = vcmp.ge.s32.totalorder %v340, 4294967293
    %vm597 = vcmp.ge.s32.totalorder %v341, 4294967293
    %vm598 = vcmp.ge.s32.totalorder %v342, 4294967293
    %vm599 = vcmp.ge.s32.totalorder %v343, 4294967293
    %vm600 = vcmp.le.s32.totalorder %v328, 12
    %vm601 = vcmp.le.s32.totalorder %v329, 12
    %vm602 = vcmp.le.s32.totalorder %v330, 12
    %vm603 = vcmp.le.s32.totalorder %v331, 12
    %vm604 = vcmp.le.s32.totalorder %v332, 12
    %vm605 = vcmp.le.s32.totalorder %v333, 12
    %vm606 = vcmp.le.s32.totalorder %v334, 12
    %vm607 = vcmp.le.s32.totalorder %v335, 12
    %vm608 = vcmp.le.s32.totalorder %v336, 12
    %vm609 = vcmp.le.s32.totalorder %v337, 12
    %vm610 = vcmp.le.s32.totalorder %v338, 12
    %vm611 = vcmp.le.s32.totalorder %v339, 12
    %vm612 = vcmp.le.s32.totalorder %v340, 12
    %vm613 = vcmp.le.s32.totalorder %v341, 12
    %vm614 = vcmp.le.s32.totalorder %v342, 12
    %vm615 = vcmp.le.s32.totalorder %v343, 12
    %vm616 = vmand %vm584, %vm600
    %vm617 = vmand %vm585, %vm601
    %vm618 = vmand %vm586, %vm602
    %vm619 = vmand %vm587, %vm603
    %vm620 = vmand %vm588, %vm604
    %vm621 = vmand %vm589, %vm605
    %vm622 = vmand %vm590, %vm606
    %vm623 = vmand %vm591, %vm607
    %vm624 = vmand %vm592, %vm608
    %vm625 = vmand %vm593, %vm609
    %vm626 = vmand %vm594, %vm610
    %vm627 = vmand %vm595, %vm611
    %vm628 = vmand %vm596, %vm612
    %vm629 = vmand %vm597, %vm613
    %vm630 = vmand %vm598, %vm614
    %vm631 = vmand %vm599, %vm615
    %vm632 = vcmp.ge.s32.totalorder %v328, 4294967292
    %vm633 = vcmp.ge.s32.totalorder %v329, 4294967292
    %vm634 = vcmp.ge.s32.totalorder %v330, 4294967292
    %vm635 = vcmp.ge.s32.totalorder %v331, 4294967292
    %vm636 = vcmp.ge.s32.totalorder %v332, 4294967292
    %vm637 = vcmp.ge.s32.totalorder %v333, 4294967292
    %vm638 = vcmp.ge.s32.totalorder %v334, 4294967292
    %vm639 = vcmp.ge.s32.totalorder %v335, 4294967292
    %vm640 = vcmp.ge.s32.totalorder %v336, 4294967292
    %vm641 = vcmp.ge.s32.totalorder %v337, 4294967292
    %vm642 = vcmp.ge.s32.totalorder %v338, 4294967292
    %vm643 = vcmp.ge.s32.totalorder %v339, 4294967292
    %vm644 = vcmp.ge.s32.totalorder %v340, 4294967292
    %vm645 = vcmp.ge.s32.totalorder %v341, 4294967292
    %vm646 = vcmp.ge.s32.totalorder %v342, 4294967292
    %vm647 = vcmp.ge.s32.totalorder %v343, 4294967292
    %vm648 = vcmp.le.s32.totalorder %v328, 11
    %vm649 = vcmp.le.s32.totalorder %v329, 11
    %vm650 = vcmp.le.s32.totalorder %v330, 11
    %vm651 = vcmp.le.s32.totalorder %v331, 11
    %vm652 = vcmp.le.s32.totalorder %v332, 11
    %vm653 = vcmp.le.s32.totalorder %v333, 11
    %vm654 = vcmp.le.s32.totalorder %v334, 11
    %vm655 = vcmp.le.s32.totalorder %v335, 11
    %vm656 = vcmp.le.s32.totalorder %v336, 11
    %vm657 = vcmp.le.s32.totalorder %v337, 11
    %vm658 = vcmp.le.s32.totalorder %v338, 11
    %vm659 = vcmp.le.s32.totalorder %v339, 11
    %vm660 = vcmp.le.s32.totalorder %v340, 11
    %vm661 = vcmp.le.s32.totalorder %v341, 11
    %vm662 = vcmp.le.s32.totalorder %v342, 11
    %vm663 = vcmp.le.s32.totalorder %v343, 11
    %vm664 = vmand %vm632, %vm648
    %vm665 = vmand %vm633, %vm649
    %vm666 = vmand %vm634, %vm650
    %vm667 = vmand %vm635, %vm651
    %vm668 = vmand %vm636, %vm652
    %vm669 = vmand %vm637, %vm653
    %vm670 = vmand %vm638, %vm654
    %vm671 = vmand %vm639, %vm655
    %vm672 = vmand %vm640, %vm656
    %vm673 = vmand %vm641, %vm657
    %vm674 = vmand %vm642, %vm658
    %vm675 = vmand %vm643, %vm659
    %vm676 = vmand %vm644, %vm660
    %vm677 = vmand %vm645, %vm661
    %vm678 = vmand %vm646, %vm662
    %vm679 = vmand %vm647, %vm663
    %vm680 = vcmp.ge.s32.totalorder %v328, 4294967291
    %vm681 = vcmp.ge.s32.totalorder %v329, 4294967291
    %vm682 = vcmp.ge.s32.totalorder %v330, 4294967291
    %vm683 = vcmp.ge.s32.totalorder %v331, 4294967291
    %vm684 = vcmp.ge.s32.totalorder %v332, 4294967291
    %vm685 = vcmp.ge.s32.totalorder %v333, 4294967291
    %vm686 = vcmp.ge.s32.totalorder %v334, 4294967291
    %vm687 = vcmp.ge.s32.totalorder %v335, 4294967291
    %vm688 = vcmp.ge.s32.totalorder %v336, 4294967291
    %vm689 = vcmp.ge.s32.totalorder %v337, 4294967291
    %vm690 = vcmp.ge.s32.totalorder %v338, 4294967291
    %vm691 = vcmp.ge.s32.totalorder %v339, 4294967291
    %vm692 = vcmp.ge.s32.totalorder %v340, 4294967291
    %vm693 = vcmp.ge.s32.totalorder %v341, 4294967291
    %vm694 = vcmp.ge.s32.totalorder %v342, 4294967291
    %vm695 = vcmp.ge.s32.totalorder %v343, 4294967291
    %vm696 = vcmp.le.s32.totalorder %v328, 10
    %vm697 = vcmp.le.s32.totalorder %v329, 10
    %vm698 = vcmp.le.s32.totalorder %v330, 10
    %vm699 = vcmp.le.s32.totalorder %v331, 10
    %vm700 = vcmp.le.s32.totalorder %v332, 10
    %vm701 = vcmp.le.s32.totalorder %v333, 10
    %vm702 = vcmp.le.s32.totalorder %v334, 10
    %vm703 = vcmp.le.s32.totalorder %v335, 10
    %vm704 = vcmp.le.s32.totalorder %v336, 10
    %vm705 = vcmp.le.s32.totalorder %v337, 10
    %vm706 = vcmp.le.s32.totalorder %v338, 10
    %vm707 = vcmp.le.s32.totalorder %v339, 10
    %vm708 = vcmp.le.s32.totalorder %v340, 10
    %vm709 = vcmp.le.s32.totalorder %v341, 10
    %vm710 = vcmp.le.s32.totalorder %v342, 10
    %vm711 = vcmp.le.s32.totalorder %v343, 10
    %vm712 = vmand %vm680, %vm696
    %vm713 = vmand %vm681, %vm697
    %vm714 = vmand %vm682, %vm698
    %vm715 = vmand %vm683, %vm699
    %vm716 = vmand %vm684, %vm700
    %vm717 = vmand %vm685, %vm701
    %vm718 = vmand %vm686, %vm702
    %vm719 = vmand %vm687, %vm703
    %vm720 = vmand %vm688, %vm704
    %vm721 = vmand %vm689, %vm705
    %vm722 = vmand %vm690, %vm706
    %vm723 = vmand %vm691, %vm707
    %vm724 = vmand %vm692, %vm708
    %vm725 = vmand %vm693, %vm709
    %vm726 = vmand %vm694, %vm710
    %vm727 = vmand %vm695, %vm711
    %v729 = vlaneseq
    %v730 = vshrl.u32 %v729, 7
    %v731 = vsub.s32 0, %v730
    %v732 = vrot.slane %v134, %v731
    %v734 = vld [vmem:[#allocation2 + $0x2d] sm:$0xff]
    %v735 = vld [vmem:[#allocation2 + $0x35] sm:$0xff]
    %v736 = vld [vmem:[#allocation2 + $0x3d] sm:$0xff]
    %v737 = vld [vmem:[#allocation2 + $0x45] sm:$0xff]
    %v738 = vld [vmem:[#allocation2 + $0x4d] sm:$0xff]
    %v739 = vld [vmem:[#allocation2 + $0x55] sm:$0xff]
    %v740 = vld [vmem:[#allocation2 + $0x5d] sm:$0xff]
    %v741 = vld [vmem:[#allocation2 + $0x65] sm:$0xff]
    %v742 = vld [vmem:[#allocation2 + $0x6d] sm:$0xff]
    %v743 = vld [vmem:[#allocation2 + $0x75] sm:$0xff]
    %v744 = vld [vmem:[#allocation2 + $0x7d] sm:$0xff]
    %v745 = vld [vmem:[#allocation2 + $0x85] sm:$0xff]
    %v746 = vld [vmem:[#allocation2 + $0x8d] sm:$0xff]
    %v747 = vld [vmem:[#allocation2 + $0x95] sm:$0xff]
    %v748 = vld [vmem:[#allocation2 + $0x9d] sm:$0xff]
    %v749 = vld [vmem:[#allocation2 + $0xa5] sm:$0xff]
    %v750 = vld [vmem:[%s1 + $0x6] sm:$0x1]
    %v751 = vlaneseq
    %v752 = vshrl.u32 %v751, 7
    %v753 = vsub.s32 0, %v752
    %v754 = vrot.slane %v750, %v753
    %v755 = vmul.f32 %v754, %v734
    %v756 = vmul.f32 %v754, %v735
    %v757 = vmul.f32 %v754, %v736
    %v758 = vmul.f32 %v754, %v737
    %v759 = vmul.f32 %v754, %v738
    %v760 = vmul.f32 %v754, %v739
    %v761 = vmul.f32 %v754, %v740
    %v762 = vmul.f32 %v754, %v741
    %v763 = vmul.f32 %v754, %v742
    %v764 = vmul.f32 %v754, %v743
    %v765 = vmul.f32 %v754, %v744
    %v766 = vmul.f32 %v754, %v745
    %v767 = vmul.f32 %v754, %v746
    %v768 = vmul.f32 %v754, %v747
    %v769 = vmul.f32 %v754, %v748
    %v770 = vmul.f32 %v754, %v749
    %v771 = vld [vmem:[#allocation2 + $0xad] sm:$0xff]
    %v772 = vld [vmem:[#allocation2 + $0xb5] sm:$0xff]
    %v773 = vld [vmem:[%s1 + $0xf] sm:$0x1]
    %v774 = vlaneseq
    %v775 = vshrl.u32 %v774, 7
    %v776 = vsub.s32 0, %v775
    %v777 = vrot.slane %v773, %v776
    %v778 = vmul.f32 %v777, %v736
    %v779 = vmul.f32 %v777, %v737
    %v780 = vmul.f32 %v777, %v738
    %v781 = vmul.f32 %v777, %v739
    %v782 = vmul.f32 %v777, %v740
    %v783 = vmul.f32 %v777, %v741
    %v784 = vmul.f32 %v777, %v742
    %v785 = vmul.f32 %v777, %v743
    %v786 = vmul.f32 %v777, %v744
    %v787 = vmul.f32 %v777, %v745
    %v788 = vmul.f32 %v777, %v746
    %v789 = vmul.f32 %v777, %v747
    %v790 = vmul.f32 %v777, %v748
    %v791 = vmul.f32 %v777, %v749
    %v792 = vmul.f32 %v777, %v771
    %v793 = vmul.f32 %v777, %v772
    %v794 = vadd.f32 %v755, %v778
    %v795 = vadd.f32 %v756, %v779
    %v796 = vadd.f32 %v757, %v780
    %v797 = vadd.f32 %v758, %v781
    %v798 = vadd.f32 %v759, %v782
    %v799 = vadd.f32 %v760, %v783
    %v800 = vadd.f32 %v761, %v784
    %v801 = vadd.f32 %v762, %v785
    %v802 = vadd.f32 %v763, %v786
    %v803 = vadd.f32 %v764, %v787
    %v804 = vadd.f32 %v765, %v788
    %v805 = vadd.f32 %v766, %v789
    %v806 = vadd.f32 %v767, %v790
    %v807 = vadd.f32 %v768, %v791
    %v808 = vadd.f32 %v769, %v792
    %v809 = vadd.f32 %v770, %v793
    %v810 = vld [vmem:[#allocation2 + $0xbd] sm:$0xff]
    %v811 = vld [vmem:[#allocation2 + $0xc5] sm:$0xff]
    %v812 = vld [vmem:[%s1 + $0x18] sm:$0x1]
    %v813 = vlaneseq
    %v814 = vshrl.u32 %v813, 7
    %v815 = vsub.s32 0, %v814
    %v816 = vrot.slane %v812, %v815
    %v817 = vmul.f32 %v816, %v738
    %v818 = vmul.f32 %v816, %v739
    %v819 = vmul.f32 %v816, %v740
    %v820 = vmul.f32 %v816, %v741
    %v821 = vmul.f32 %v816, %v742
    %v822 = vmul.f32 %v816, %v743
    %v823 = vmul.f32 %v816, %v744
    %v824 = vmul.f32 %v816, %v745
    %v825 = vmul.f32 %v816, %v746
    %v826 = vmul.f32 %v816, %v747
    %v827 = vmul.f32 %v816, %v748
    %v828 = vmul.f32 %v816, %v749
    %v829 = vmul.f32 %v816, %v771
    %v830 = vmul.f32 %v816, %v772
    %v831 = vmul.f32 %v816, %v810
    %v832 = vmul.f32 %v816, %v811
    %v833 = vadd.f32 %v794, %v817
    %v834 = vadd.f32 %v795, %v818
    %v835 = vadd.f32 %v796, %v819
    %v836 = vadd.f32 %v797, %v820
    %v837 = vadd.f32 %v798, %v821
    %v838 = vadd.f32 %v799, %v822
    %v839 = vadd.f32 %v800, %v823
    %v840 = vadd.f32 %v801, %v824
    %v841 = vadd.f32 %v802, %v825
    %v842 = vadd.f32 %v803, %v826
    %v843 = vadd.f32 %v804, %v827
    %v844 = vadd.f32 %v805, %v828
    %v845 = vadd.f32 %v806, %v829
    %v846 = vadd.f32 %v807, %v830
    %v847 = vadd.f32 %v808, %v831
    %v848 = vadd.f32 %v809, %v832
    %v849 = vsel %vm376, 1, 0
    %v850 = vsel %vm377, 1, 0
    %v851 = vsel %vm378, 1, 0
    %v852 = vsel %vm379, 1, 0
    %v853 = vsel %vm380, 1, 0
    %v854 = vsel %vm381, 1, 0
    %v855 = vsel %vm382, 1, 0
    %v856 = vsel %vm383, 1, 0
    %v857 = vsel %vm384, 1, 0
    %v858 = vsel %vm385, 1, 0
    %v859 = vsel %vm386, 1, 0
    %v860 = vsel %vm387, 1, 0
    %v861 = vsel %vm388, 1, 0
    %v862 = vsel %vm389, 1, 0
    %v863 = vsel %vm390, 1, 0
    %v864 = vsel %vm391, 1, 0
    %vm865 = vcmp.eq.s32.totalorder %v849, 1
    %vm866 = vcmp.eq.s32.totalorder %v850, 1
    %vm867 = vcmp.eq.s32.totalorder %v851, 1
    %vm868 = vcmp.eq.s32.totalorder %v852, 1
    %vm869 = vcmp.eq.s32.totalorder %v853, 1
    %vm870 = vcmp.eq.s32.totalorder %v854, 1
    %vm871 = vcmp.eq.s32.totalorder %v855, 1
    %vm872 = vcmp.eq.s32.totalorder %v856, 1
    %vm873 = vcmp.eq.s32.totalorder %v857, 1
    %vm874 = vcmp.eq.s32.totalorder %v858, 1
    %vm875 = vcmp.eq.s32.totalorder %v859, 1
    %vm876 = vcmp.eq.s32.totalorder %v860, 1
    %vm877 = vcmp.eq.s32.totalorder %v861, 1
    %vm878 = vcmp.eq.s32.totalorder %v862, 1
    %vm879 = vcmp.eq.s32.totalorder %v863, 1
    %vm880 = vcmp.eq.s32.totalorder %v864, 1
    %v881 = vsel %vm865, %v833, 0.0
    %v882 = vsel %vm866, %v834, 0.0
    %v883 = vsel %vm867, %v835, 0.0
    %v884 = vsel %vm868, %v836, 0.0
    %v885 = vsel %vm869, %v837, 0.0
    %v886 = vsel %vm870, %v838, 0.0
    %v887 = vsel %vm871, %v839, 0.0
    %v888 = vsel %vm872, %v840, 0.0
    %v889 = vsel %vm873, %v841, 0.0
    %v890 = vsel %vm874, %v842, 0.0
    %v891 = vsel %vm875, %v843, 0.0
    %v892 = vsel %vm876, %v844, 0.0
    %v893 = vsel %vm877, %v845, 0.0
    %v894 = vsel %vm878, %v846, 0.0
    %v895 = vsel %vm879, %v847, 0.0
    %v896 = vsel %vm880, %v848, 0.0
    %v897 = vadd.f32 %v732, %v881
    %v898 = vadd.f32 %v732, %v882
    %v899 = vadd.f32 %v732, %v883
    %v900 = vadd.f32 %v732, %v884
    %v901 = vadd.f32 %v732, %v885
    %v902 = vadd.f32 %v732, %v886
    %v903 = vadd.f32 %v732, %v887
    %v904 = vadd.f32 %v732, %v888
    %v905 = vadd.f32 %v732, %v889
    %v906 = vadd.f32 %v732, %v890
    %v907 = vadd.f32 %v732, %v891
    %v908 = vadd.f32 %v732, %v892
    %v909 = vadd.f32 %v732, %v893
    %v910 = vadd.f32 %v732, %v894
    %v911 = vadd.f32 %v732, %v895
    %v912 = vadd.f32 %v732, %v896
    %v913 = vld [vmem:[#allocation2 + $0x2e] sm:$0xff]
    %v914 = vld [vmem:[#allocation2 + $0x36] sm:$0xff]
    %v915 = vld [vmem:[#allocation2 + $0x3e] sm:$0xff]
    %v916 = vld [vmem:[#allocation2 + $0x46] sm:$0xff]
    %v917 = vld [vmem:[#allocation2 + $0x4e] sm:$0xff]
    %v918 = vld [vmem:[#allocation2 + $0x56] sm:$0xff]
    %v919 = vld [vmem:[#allocation2 + $0x5e] sm:$0xff]
    %v920 = vld [vmem:[#allocation2 + $0x66] sm:$0xff]
    %v921 = vld [vmem:[#allocation2 + $0x6e] sm:$0xff]
    %v922 = vld [vmem:[#allocation2 + $0x76] sm:$0xff]
    %v923 = vld [vmem:[#allocation2 + $0x7e] sm:$0xff]
    %v924 = vld [vmem:[#allocation2 + $0x86] sm:$0xff]
    %v925 = vld [vmem:[#allocation2 + $0x8e] sm:$0xff]
    %v926 = vld [vmem:[#allocation2 + $0x96] sm:$0xff]
    %v927 = vld [vmem:[#allocation2 + $0x9e] sm:$0xff]
    %v928 = vld [vmem:[#allocation2 + $0xa6] sm:$0xff]
    %v929 = vld [vmem:[%s1 + $0x7] sm:$0x1]
    %v930 = vlaneseq
    %v931 = vshrl.u32 %v930, 7
    %v932 = vsub.s32 0, %v931
    %v933 = vrot.slane %v929, %v932
    %v934 = vmul.f32 %v933, %v913
    %v935 = vmul.f32 %v933, %v914
    %v936 = vmul.f32 %v933, %v915
    %v937 = vmul.f32 %v933, %v916
    %v938 = vmul.f32 %v933, %v917
    %v939 = vmul.f32 %v933, %v918
    %v940 = vmul.f32 %v933, %v919
    %v941 = vmul.f32 %v933, %v920
    %v942 = vmul.f32 %v933, %v921
    %v943 = vmul.f32 %v933, %v922
    %v944 = vmul.f32 %v933, %v923
    %v945 = vmul.f32 %v933, %v924
    %v946 = vmul.f32 %v933, %v925
    %v947 = vmul.f32 %v933, %v926
    %v948 = vmul.f32 %v933, %v927
    %v949 = vmul.f32 %v933, %v928
    %v950 = vld [vmem:[#allocation2 + $0xae] sm:$0xff]
    %v951 = vld [vmem:[#allocation2 + $0xb6] sm:$0xff]
    %v952 = vld [vmem:[%s1 + $0x10] sm:$0x1]
    %v953 = vlaneseq
    %v954 = vshrl.u32 %v953, 7
    %v955 = vsub.s32 0, %v954
    %v956 = vrot.slane %v952, %v955
    %v957 = vmul.f32 %v956, %v915
    %v958 = vmul.f32 %v956, %v916
    %v959 = vmul.f32 %v956, %v917
    %v960 = vmul.f32 %v956, %v918
    %v961 = vmul.f32 %v956, %v919
    %v962 = vmul.f32 %v956, %v920
    %v963 = vmul.f32 %v956, %v921
    %v964 = vmul.f32 %v956, %v922
    %v965 = vmul.f32 %v956, %v923
    %v966 = vmul.f32 %v956, %v924
    %v967 = vmul.f32 %v956, %v925
    %v968 = vmul.f32 %v956, %v926
    %v969 = vmul.f32 %v956, %v927
    %v970 = vmul.f32 %v956, %v928
    %v971 = vmul.f32 %v956, %v950
    %v972 = vmul.f32 %v956, %v951
    %v973 = vadd.f32 %v934, %v957
    %v974 = vadd.f32 %v935, %v958
    %v975 = vadd.f32 %v936, %v959
    %v976 = vadd.f32 %v937, %v960
    %v977 = vadd.f32 %v938, %v961
    %v978 = vadd.f32 %v939, %v962
    %v979 = vadd.f32 %v940, %v963
    %v980 = vadd.f32 %v941, %v964
    %v981 = vadd.f32 %v942, %v965
    %v982 = vadd.f32 %v943, %v966
    %v983 = vadd.f32 %v944, %v967
    %v984 = vadd.f32 %v945, %v968
    %v985 = vadd.f32 %v946, %v969
    %v986 = vadd.f32 %v947, %v970
    %v987 = vadd.f32 %v948, %v971
    %v988 = vadd.f32 %v949, %v972
    %v989 = vld [vmem:[#allocation2 + $0xbe] sm:$0xff]
    %v990 = vld [vmem:[#allocation2 + $0xc6] sm:$0xff]
    %v991 = vld [vmem:[%s1 + $0x19] sm:$0x1]
    %v992 = vlaneseq
    %v993 = vshrl.u32 %v992, 7
    %v994 = vsub.s32 0, %v993
    %v995 = vrot.slane %v991, %v994
    %v996 = vmul.f32 %v995, %v917
    %v997 = vmul.f32 %v995, %v918
    %v998 = vmul.f32 %v995, %v919
    %v999 = vmul.f32 %v995, %v920
    %v1000 = vmul.f32 %v995, %v921
    %v1001 = vmul.f32 %v995, %v922
    %v1002 = vmul.f32 %v995, %v923
    %v1003 = vmul.f32 %v995, %v924
    %v1004 = vmul.f32 %v995, %v925
    %v1005 = vmul.f32 %v995, %v926
    %v1006 = vmul.f32 %v995, %v927
    %v1007 = vmul.f32 %v995, %v928
    %v1008 = vmul.f32 %v995, %v950
    %v1009 = vmul.f32 %v995, %v951
    %v1010 = vmul.f32 %v995, %v989
    %v1011 = vmul.f32 %v995, %v990
    %v1012 = vadd.f32 %v973, %v996
    %v1013 = vadd.f32 %v974, %v997
    %v1014 = vadd.f32 %v975, %v998
    %v1015 = vadd.f32 %v976, %v999
    %v1016 = vadd.f32 %v977, %v1000
    %v1017 = vadd.f32 %v978, %v1001
    %v1018 = vadd.f32 %v979, %v1002
    %v1019 = vadd.f32 %v980, %v1003
    %v1020 = vadd.f32 %v981, %v1004
    %v1021 = vadd.f32 %v982, %v1005
    %v1022 = vadd.f32 %v983, %v1006
    %v1023 = vadd.f32 %v984, %v1007
    %v1024 = vadd.f32 %v985, %v1008
    %v1025 = vadd.f32 %v986, %v1009
    %v1026 = vadd.f32 %v987, %v1010
    %v1027 = vadd.f32 %v988, %v1011
    %v1028 = vsel %vm424, 1, 0
    %v1029 = vsel %vm425, 1, 0
    %v1030 = vsel %vm426, 1, 0
    %v1031 = vsel %vm427, 1, 0
    %v1032 = vsel %vm428, 1, 0
    %v1033 = vsel %vm429, 1, 0
    %v1034 = vsel %vm430, 1, 0
    %v1035 = vsel %vm431, 1, 0
    %v1036 = vsel %vm432, 1, 0
    %v1037 = vsel %vm433, 1, 0
    %v1038 = vsel %vm434, 1, 0
    %v1039 = vsel %vm435, 1, 0
    %v1040 = vsel %vm436, 1, 0
    %v1041 = vsel %vm437, 1, 0
    %v1042 = vsel %vm438, 1, 0
    %v1043 = vsel %vm439, 1, 0
    %vm1044 = vcmp.eq.s32.totalorder %v1028, 1
    %vm1045 = vcmp.eq.s32.totalorder %v1029, 1
    %vm1046 = vcmp.eq.s32.totalorder %v1030, 1
    %vm1047 = vcmp.eq.s32.totalorder %v1031, 1
    %vm1048 = vcmp.eq.s32.totalorder %v1032, 1
    %vm1049 = vcmp.eq.s32.totalorder %v1033, 1
    %vm1050 = vcmp.eq.s32.totalorder %v1034, 1
    %vm1051 = vcmp.eq.s32.totalorder %v1035, 1
    %vm1052 = vcmp.eq.s32.totalorder %v1036, 1
    %vm1053 = vcmp.eq.s32.totalorder %v1037, 1
    %vm1054 = vcmp.eq.s32.totalorder %v1038, 1
    %vm1055 = vcmp.eq.s32.totalorder %v1039, 1
    %vm1056 = vcmp.eq.s32.totalorder %v1040, 1
    %vm1057 = vcmp.eq.s32.totalorder %v1041, 1
    %vm1058 = vcmp.eq.s32.totalorder %v1042, 1
    %vm1059 = vcmp.eq.s32.totalorder %v1043, 1
    %v1060 = vsel %vm1044, %v1012, 0.0
    %v1061 = vsel %vm1045, %v1013, 0.0
    %v1062 = vsel %vm1046, %v1014, 0.0
    %v1063 = vsel %vm1047, %v1015, 0.0
    %v1064 = vsel %vm1048, %v1016, 0.0
    %v1065 = vsel %vm1049, %v1017, 0.0
    %v1066 = vsel %vm1050, %v1018, 0.0
    %v1067 = vsel %vm1051, %v1019, 0.0
    %v1068 = vsel %vm1052, %v1020, 0.0
    %v1069 = vsel %vm1053, %v1021, 0.0
    %v1070 = vsel %vm1054, %v1022, 0.0
    %v1071 = vsel %vm1055, %v1023, 0.0
    %v1072 = vsel %vm1056, %v1024, 0.0
    %v1073 = vsel %vm1057, %v1025, 0.0
    %v1074 = vsel %vm1058, %v1026, 0.0
    %v1075 = vsel %vm1059, %v1027, 0.0
    %v1076 = vadd.f32 %v897, %v1060
    %v1077 = vadd.f32 %v898, %v1061
    %v1078 = vadd.f32 %v899, %v1062
    %v1079 = vadd.f32 %v900, %v1063
    %v1080 = vadd.f32 %v901, %v1064
    %v1081 = vadd.f32 %v902, %v1065
    %v1082 = vadd.f32 %v903, %v1066
    %v1083 = vadd.f32 %v904, %v1067
    %v1084 = vadd.f32 %v905, %v1068
    %v1085 = vadd.f32 %v906, %v1069
    %v1086 = vadd.f32 %v907, %v1070
    %v1087 = vadd.f32 %v908, %v1071
    %v1088 = vadd.f32 %v909, %v1072
    %v1089 = vadd.f32 %v910, %v1073
    %v1090 = vadd.f32 %v911, %v1074
    %v1091 = vadd.f32 %v912, %v1075
    %v1092 = vld [vmem:[#allocation2 + $0xf] sm:$0xff]
    %v1093 = vld [vmem:[#allocation2 + $0x17] sm:$0xff]
    %v1094 = vld [vmem:[#allocation2 + $0x1f] sm:$0xff]
    %v1095 = vld [vmem:[#allocation2 + $0x27] sm:$0xff]
    %v1096 = vld [vmem:[#allocation2 + $0x2f] sm:$0xff]
    %v1097 = vld [vmem:[#allocation2 + $0x37] sm:$0xff]
    %v1098 = vld [vmem:[#allocation2 + $0x3f] sm:$0xff]
    %v1099 = vld [vmem:[#allocation2 + $0x47] sm:$0xff]
    %v1100 = vld [vmem:[#allocation2 + $0x4f] sm:$0xff]
    %v1101 = vld [vmem:[#allocation2 + $0x57] sm:$0xff]
    %v1102 = vld [vmem:[#allocation2 + $0x5f] sm:$0xff]
    %v1103 = vld [vmem:[#allocation2 + $0x67] sm:$0xff]
    %v1104 = vld [vmem:[#allocation2 + $0x6f] sm:$0xff]
    %v1105 = vld [vmem:[#allocation2 + $0x77] sm:$0xff]
    %v1106 = vld [vmem:[#allocation2 + $0x7f] sm:$0xff]
    %v1107 = vld [vmem:[#allocation2 + $0x87] sm:$0xff]
    %v1108 = vld [vmem:[%s1] sm:$0x1]
    %v1109 = vlaneseq
    %v1110 = vshrl.u32 %v1109, 7
    %v1111 = vsub.s32 0, %v1110
    %v1112 = vrot.slane %v1108, %v1111
    %v1113 = vmul.f32 %v1112, %v1092
    %v1114 = vmul.f32 %v1112, %v1093
    %v1115 = vmul.f32 %v1112, %v1094
    %v1116 = vmul.f32 %v1112, %v1095
    %v1117 = vmul.f32 %v1112, %v1096
    %v1118 = vmul.f32 %v1112, %v1097
    %v1119 = vmul.f32 %v1112, %v1098
    %v1120 = vmul.f32 %v1112, %v1099
    %v1121 = vmul.f32 %v1112, %v1100
    %v1122 = vmul.f32 %v1112, %v1101
    %v1123 = vmul.f32 %v1112, %v1102
    %v1124 = vmul.f32 %v1112, %v1103
    %v1125 = vmul.f32 %v1112, %v1104
    %v1126 = vmul.f32 %v1112, %v1105
    %v1127 = vmul.f32 %v1112, %v1106
    %v1128 = vmul.f32 %v1112, %v1107
    %v1129 = vld [vmem:[#allocation2 + $0x8f] sm:$0xff]
    %v1130 = vld [vmem:[#allocation2 + $0x97] sm:$0xff]
    %v1131 = vld [vmem:[%s1 + $0x3] sm:$0x1]
    %v1132 = vlaneseq
    %v1133 = vshrl.u32 %v1132, 7
    %v1134 = vsub.s32 0, %v1133
    %v1135 = vrot.slane %v1131, %v1134
    %v1136 = vmul.f32 %v1135, %v1094
    %v1137 = vmul.f32 %v1135, %v1095
    %v1138 = vmul.f32 %v1135, %v1096
    %v1139 = vmul.f32 %v1135, %v1097
    %v1140 = vmul.f32 %v1135, %v1098
    %v1141 = vmul.f32 %v1135, %v1099
    %v1142 = vmul.f32 %v1135, %v1100
    %v1143 = vmul.f32 %v1135, %v1101
    %v1144 = vmul.f32 %v1135, %v1102
    %v1145 = vmul.f32 %v1135, %v1103
    %v1146 = vmul.f32 %v1135, %v1104
    %v1147 = vmul.f32 %v1135, %v1105
    %v1148 = vmul.f32 %v1135, %v1106
    %v1149 = vmul.f32 %v1135, %v1107
    %v1150 = vmul.f32 %v1135, %v1129
    %v1151 = vmul.f32 %v1135, %v1130
    %v1152 = vadd.f32 %v1113, %v1136
    %v1153 = vadd.f32 %v1114, %v1137
    %v1154 = vadd.f32 %v1115, %v1138
    %v1155 = vadd.f32 %v1116, %v1139
    %v1156 = vadd.f32 %v1117, %v1140
    %v1157 = vadd.f32 %v1118, %v1141
    %v1158 = vadd.f32 %v1119, %v1142
    %v1159 = vadd.f32 %v1120, %v1143
    %v1160 = vadd.f32 %v1121, %v1144
    %v1161 = vadd.f32 %v1122, %v1145
    %v1162 = vadd.f32 %v1123, %v1146
    %v1163 = vadd.f32 %v1124, %v1147
    %v1164 = vadd.f32 %v1125, %v1148
    %v1165 = vadd.f32 %v1126, %v1149
    %v1166 = vadd.f32 %v1127, %v1150
    %v1167 = vadd.f32 %v1128, %v1151
    %v1168 = vld [vmem:[#allocation2 + $0x9f] sm:$0xff]
    %v1169 = vld [vmem:[#allocation2 + $0xa7] sm:$0xff]
    %v1170 = vld [vmem:[%s1 + $0x8] sm:$0x1]
    %v1171 = vlaneseq
    %v1172 = vshrl.u32 %v1171, 7
    %v1173 = vsub.s32 0, %v1172
    %v1174 = vrot.slane %v1170, %v1173
    %v1175 = vmul.f32 %v1174, %v1096
    %v1176 = vmul.f32 %v1174, %v1097
    %v1177 = vmul.f32 %v1174, %v1098
    %v1178 = vmul.f32 %v1174, %v1099
    %v1179 = vmul.f32 %v1174, %v1100
    %v1180 = vmul.f32 %v1174, %v1101
    %v1181 = vmul.f32 %v1174, %v1102
    %v1182 = vmul.f32 %v1174, %v1103
    %v1183 = vmul.f32 %v1174, %v1104
    %v1184 = vmul.f32 %v1174, %v1105
    %v1185 = vmul.f32 %v1174, %v1106
    %v1186 = vmul.f32 %v1174, %v1107
    %v1187 = vmul.f32 %v1174, %v1129
    %v1188 = vmul.f32 %v1174, %v1130
    %v1189 = vmul.f32 %v1174, %v1168
    %v1190 = vmul.f32 %v1174, %v1169
    %v1191 = vadd.f32 %v1152, %v1175
    %v1192 = vadd.f32 %v1153, %v1176
    %v1193 = vadd.f32 %v1154, %v1177
    %v1194 = vadd.f32 %v1155, %v1178
    %v1195 = vadd.f32 %v1156, %v1179
    %v1196 = vadd.f32 %v1157, %v1180
    %v1197 = vadd.f32 %v1158, %v1181
    %v1198 = vadd.f32 %v1159, %v1182
    %v1199 = vadd.f32 %v1160, %v1183
    %v1200 = vadd.f32 %v1161, %v1184
    %v1201 = vadd.f32 %v1162, %v1185
    %v1202 = vadd.f32 %v1163, %v1186
    %v1203 = vadd.f32 %v1164, %v1187
    %v1204 = vadd.f32 %v1165, %v1188
    %v1205 = vadd.f32 %v1166, %v1189
    %v1206 = vadd.f32 %v1167, %v1190
    %v1207 = vld [vmem:[#allocation2 + $0xaf] sm:$0xff]
    %v1208 = vld [vmem:[#allocation2 + $0xb7] sm:$0xff]
    %v1209 = vld [vmem:[%s1 + $0x11] sm:$0x1]
    %v1210 = vlaneseq
    %v1211 = vshrl.u32 %v1210, 7
    %v1212 = vsub.s32 0, %v1211
    %v1213 = vrot.slane %v1209, %v1212
    %v1214 = vmul.f32 %v1213, %v1098
    %v1215 = vmul.f32 %v1213, %v1099
    %v1216 = vmul.f32 %v1213, %v1100
    %v1217 = vmul.f32 %v1213, %v1101
    %v1218 = vmul.f32 %v1213, %v1102
    %v1219 = vmul.f32 %v1213, %v1103
    %v1220 = vmul.f32 %v1213, %v1104
    %v1221 = vmul.f32 %v1213, %v1105
    %v1222 = vmul.f32 %v1213, %v1106
    %v1223 = vmul.f32 %v1213, %v1107
    %v1224 = vmul.f32 %v1213, %v1129
    %v1225 = vmul.f32 %v1213, %v1130
    %v1226 = vmul.f32 %v1213, %v1168
    %v1227 = vmul.f32 %v1213, %v1169
    %v1228 = vmul.f32 %v1213, %v1207
    %v1229 = vmul.f32 %v1213, %v1208
    %v1230 = vadd.f32 %v1191, %v1214
    %v1231 = vadd.f32 %v1192, %v1215
    %v1232 = vadd.f32 %v1193, %v1216
    %v1233 = vadd.f32 %v1194, %v1217
    %v1234 = vadd.f32 %v1195, %v1218
    %v1235 = vadd.f32 %v1196, %v1219
    %v1236 = vadd.f32 %v1197, %v1220
    %v1237 = vadd.f32 %v1198, %v1221
    %v1238 = vadd.f32 %v1199, %v1222
    %v1239 = vadd.f32 %v1200, %v1223
    %v1240 = vadd.f32 %v1201, %v1224
    %v1241 = vadd.f32 %v1202, %v1225
    %v1242 = vadd.f32 %v1203, %v1226
    %v1243 = vadd.f32 %v1204, %v1227
    %v1244 = vadd.f32 %v1205, %v1228
    %v1245 = vadd.f32 %v1206, %v1229
    %v1246 = vld [vmem:[#allocation2 + $0xbf] sm:$0xff]
    %v1247 = vld [vmem:[#allocation2 + $0xc7] sm:$0xff]
    %v1248 = vld [vmem:[%s1 + $0x1a] sm:$0x1]
    %v1249 = vlaneseq
    %v1250 = vshrl.u32 %v1249, 7
    %v1251 = vsub.s32 0, %v1250
    %v1252 = vrot.slane %v1248, %v1251
    %v1253 = vmul.f32 %v1252, %v1100
    %v1254 = vmul.f32 %v1252, %v1101
    %v1255 = vmul.f32 %v1252, %v1102
    %v1256 = vmul.f32 %v1252, %v1103
    %v1257 = vmul.f32 %v1252, %v1104
    %v1258 = vmul.f32 %v1252, %v1105
    %v1259 = vmul.f32 %v1252, %v1106
    %v1260 = vmul.f32 %v1252, %v1107
    %v1261 = vmul.f32 %v1252, %v1129
    %v1262 = vmul.f32 %v1252, %v1130
    %v1263 = vmul.f32 %v1252, %v1168
    %v1264 = vmul.f32 %v1252, %v1169
    %v1265 = vmul.f32 %v1252, %v1207
    %v1266 = vmul.f32 %v1252, %v1208
    %v1267 = vmul.f32 %v1252, %v1246
    %v1268 = vmul.f32 %v1252, %v1247
    %v1269 = vadd.f32 %v1230, %v1253
    %v1270 = vadd.f32 %v1231, %v1254
    %v1271 = vadd.f32 %v1232, %v1255
    %v1272 = vadd.f32 %v1233, %v1256
    %v1273 = vadd.f32 %v1234, %v1257
    %v1274 = vadd.f32 %v1235, %v1258
    %v1275 = vadd.f32 %v1236, %v1259
    %v1276 = vadd.f32 %v1237, %v1260
    %v1277 = vadd.f32 %v1238, %v1261
    %v1278 = vadd.f32 %v1239, %v1262
    %v1279 = vadd.f32 %v1240, %v1263
    %v1280 = vadd.f32 %v1241, %v1264
    %v1281 = vadd.f32 %v1242, %v1265
    %v1282 = vadd.f32 %v1243, %v1266
    %v1283 = vadd.f32 %v1244, %v1267
    %v1284 = vadd.f32 %v1245, %v1268
    %v1285 = vld [vmem:[#allocation2 + $0xcf] sm:$0xff]
    %v1286 = vld [vmem:[#allocation2 + $0xd7] sm:$0xff]
    %v1287 = vld [vmem:[%s1 + $0x21] sm:$0x1]
    %v1288 = vlaneseq
    %v1289 = vshrl.u32 %v1288, 7
    %v1290 = vsub.s32 0, %v1289
    %v1291 = vrot.slane %v1287, %v1290
    %v1292 = vmul.f32 %v1291, %v1102
    %v1293 = vmul.f32 %v1291, %v1103
    %v1294 = vmul.f32 %v1291, %v1104
    %v1295 = vmul.f32 %v1291, %v1105
    %v1296 = vmul.f32 %v1291, %v1106
    %v1297 = vmul.f32 %v1291, %v1107
    %v1298 = vmul.f32 %v1291, %v1129
    %v1299 = vmul.f32 %v1291, %v1130
    %v1300 = vmul.f32 %v1291, %v1168
    %v1301 = vmul.f32 %v1291, %v1169
    %v1302 = vmul.f32 %v1291, %v1207
    %v1303 = vmul.f32 %v1291, %v1208
    %v1304 = vmul.f32 %v1291, %v1246
    %v1305 = vmul.f32 %v1291, %v1247
    %v1306 = vmul.f32 %v1291, %v1285
    %v1307 = vmul.f32 %v1291, %v1286
    %v1308 = vadd.f32 %v1269, %v1292
    %v1309 = vadd.f32 %v1270, %v1293
    %v1310 = vadd.f32 %v1271, %v1294
    %v1311 = vadd.f32 %v1272, %v1295
    %v1312 = vadd.f32 %v1273, %v1296
    %v1313 = vadd.f32 %v1274, %v1297
    %v1314 = vadd.f32 %v1275, %v1298
    %v1315 = vadd.f32 %v1276, %v1299
    %v1316 = vadd.f32 %v1277, %v1300
    %v1317 = vadd.f32 %v1278, %v1301
    %v1318 = vadd.f32 %v1279, %v1302
    %v1319 = vadd.f32 %v1280, %v1303
    %v1320 = vadd.f32 %v1281, %v1304
    %v1321 = vadd.f32 %v1282, %v1305
    %v1322 = vadd.f32 %v1283, %v1306
    %v1323 = vadd.f32 %v1284, %v1307
    %v1324 = vld [vmem:[#allocation2 + $0xdf] sm:$0xff]
    %v1325 = vld [vmem:[#allocation2 + $0xe7] sm:$0xff]
    %v1326 = vld [vmem:[%s1 + $0x24] sm:$0x1]
    %v1327 = vlaneseq
    %v1328 = vshrl.u32 %v1327, 7
    %v1329 = vsub.s32 0, %v1328
    %v1330 = vrot.slane %v1326, %v1329
    %v1331 = vmul.f32 %v1330, %v1104
    %v1332 = vmul.f32 %v1330, %v1105
    %v1333 = vmul.f32 %v1330, %v1106
    %v1334 = vmul.f32 %v1330, %v1107
    %v1335 = vmul.f32 %v1330, %v1129
    %v1336 = vmul.f32 %v1330, %v1130
    %v1337 = vmul.f32 %v1330, %v1168
    %v1338 = vmul.f32 %v1330, %v1169
    %v1339 = vmul.f32 %v1330, %v1207
    %v1340 = vmul.f32 %v1330, %v1208
    %v1341 = vmul.f32 %v1330, %v1246
    %v1342 = vmul.f32 %v1330, %v1247
    %v1343 = vmul.f32 %v1330, %v1285
    %v1344 = vmul.f32 %v1330, %v1286
    %v1345 = vmul.f32 %v1330, %v1324
    %v1346 = vmul.f32 %v1330, %v1325
    %v1347 = vadd.f32 %v1308, %v1331
    %v1348 = vadd.f32 %v1309, %v1332
    %v1349 = vadd.f32 %v1310, %v1333
    %v1350 = vadd.f32 %v1311, %v1334
    %v1351 = vadd.f32 %v1312, %v1335
    %v1352 = vadd.f32 %v1313, %v1336
    %v1353 = vadd.f32 %v1314, %v1337
    %v1354 = vadd.f32 %v1315, %v1338
    %v1355 = vadd.f32 %v1316, %v1339
    %v1356 = vadd.f32 %v1317, %v1340
    %v1357 = vadd.f32 %v1318, %v1341
    %v1358 = vadd.f32 %v1319, %v1342
    %v1359 = vadd.f32 %v1320, %v1343
    %v1360 = vadd.f32 %v1321, %v1344
    %v1361 = vadd.f32 %v1322, %v1345
    %v1362 = vadd.f32 %v1323, %v1346
    %v1363 = vld [vmem:[#allocation2 + $0xef] sm:$0xff]
    %v1364 = vld [vmem:[#allocation2 + $0xf7] sm:$0xff]
    %v1365 = vld [vmem:[%s1 + $0x27] sm:$0x1]
    %v1366 = vlaneseq
    %v1367 = vshrl.u32 %v1366, 7
    %v1368 = vsub.s32 0, %v1367
    %v1369 = vrot.slane %v1365, %v1368
    %v1370 = vmul.f32 %v1369, %v1106
    %v1371 = vmul.f32 %v1369, %v1107
    %v1372 = vmul.f32 %v1369, %v1129
    %v1373 = vmul.f32 %v1369, %v1130
    %v1374 = vmul.f32 %v1369, %v1168
    %v1375 = vmul.f32 %v1369, %v1169
    %v1376 = vmul.f32 %v1369, %v1207
    %v1377 = vmul.f32 %v1369, %v1208
    %v1378 = vmul.f32 %v1369, %v1246
    %v1379 = vmul.f32 %v1369, %v1247
    %v1380 = vmul.f32 %v1369, %v1285
    %v1381 = vmul.f32 %v1369, %v1286
    %v1382 = vmul.f32 %v1369, %v1324
    %v1383 = vmul.f32 %v1369, %v1325
    %v1384 = vmul.f32 %v1369, %v1363
    %v1385 = vmul.f32 %v1369, %v1364
    %v1386 = vadd.f32 %v1347, %v1370
    %v1387 = vadd.f32 %v1348, %v1371
    %v1388 = vadd.f32 %v1349, %v1372
    %v1389 = vadd.f32 %v1350, %v1373
    %v1390 = vadd.f32 %v1351, %v1374
    %v1391 = vadd.f32 %v1352, %v1375
    %v1392 = vadd.f32 %v1353, %v1376
    %v1393 = vadd.f32 %v1354, %v1377
    %v1394 = vadd.f32 %v1355, %v1378
    %v1395 = vadd.f32 %v1356, %v1379
    %v1396 = vadd.f32 %v1357, %v1380
    %v1397 = vadd.f32 %v1358, %v1381
    %v1398 = vadd.f32 %v1359, %v1382
    %v1399 = vadd.f32 %v1360, %v1383
    %v1400 = vadd.f32 %v1361, %v1384
    %v1401 = vadd.f32 %v1362, %v1385
    %v1402 = vld [vmem:[#allocation2 + $0xff] sm:$0xff]
    %v1403 = vld [vmem:[#allocation2 + $0x107] sm:$0xff]
    %v1404 = vld [vmem:[%s1 + $0x2a] sm:$0x1]
    %v1405 = vlaneseq
    %v1406 = vshrl.u32 %v1405, 7
    %v1407 = vsub.s32 0, %v1406
    %v1408 = vrot.slane %v1404, %v1407
    %v1409 = vmul.f32 %v1408, %v1129
    %v1410 = vmul.f32 %v1408, %v1130
    %v1411 = vmul.f32 %v1408, %v1168
    %v1412 = vmul.f32 %v1408, %v1169
    %v1413 = vmul.f32 %v1408, %v1207
    %v1414 = vmul.f32 %v1408, %v1208
    %v1415 = vmul.f32 %v1408, %v1246
    %v1416 = vmul.f32 %v1408, %v1247
    %v1417 = vmul.f32 %v1408, %v1285
    %v1418 = vmul.f32 %v1408, %v1286
    %v1419 = vmul.f32 %v1408, %v1324
    %v1420 = vmul.f32 %v1408, %v1325
    %v1421 = vmul.f32 %v1408, %v1363
    %v1422 = vmul.f32 %v1408, %v1364
    %v1423 = vmul.f32 %v1408, %v1402
    %v1424 = vmul.f32 %v1408, %v1403
    %v1425 = vadd.f32 %v1386, %v1409
    %v1426 = vadd.f32 %v1387, %v1410
    %v1427 = vadd.f32 %v1388, %v1411
    %v1428 = vadd.f32 %v1389, %v1412
    %v1429 = vadd.f32 %v1390, %v1413
    %v1430 = vadd.f32 %v1391, %v1414
    %v1431 = vadd.f32 %v1392, %v1415
    %v1432 = vadd.f32 %v1393, %v1416
    %v1433 = vadd.f32 %v1394, %v1417
    %v1434 = vadd.f32 %v1395, %v1418
    %v1435 = vadd.f32 %v1396, %v1419
    %v1436 = vadd.f32 %v1397, %v1420
    %v1437 = vadd.f32 %v1398, %v1421
    %v1438 = vadd.f32 %v1399, %v1422
    %v1439 = vadd.f32 %v1400, %v1423
    %v1440 = vadd.f32 %v1401, %v1424
    %v1441 = vsel %vm472, 1, 0
    %v1442 = vsel %vm473, 1, 0
    %v1443 = vsel %vm474, 1, 0
    %v1444 = vsel %vm475, 1, 0
    %v1445 = vsel %vm476, 1, 0
    %v1446 = vsel %vm477, 1, 0
    %v1447 = vsel %vm478, 1, 0
    %v1448 = vsel %vm479, 1, 0
    %v1449 = vsel %vm480, 1, 0
    %v1450 = vsel %vm481, 1, 0
    %v1451 = vsel %vm482, 1, 0
    %v1452 = vsel %vm483, 1, 0
    %v1453 = vsel %vm484, 1, 0
    %v1454 = vsel %vm485, 1, 0
    %v1455 = vsel %vm486, 1, 0
    %v1456 = vsel %vm487, 1, 0
    %vm1457 = vcmp.eq.s32.totalorder %v1441, 1
    %vm1458 = vcmp.eq.s32.totalorder %v1442, 1
    %vm1459 = vcmp.eq.s32.totalorder %v1443, 1
    %vm1460 = vcmp.eq.s32.totalorder %v1444, 1
    %vm1461 = vcmp.eq.s32.totalorder %v1445, 1
    %vm1462 = vcmp.eq.s32.totalorder %v1446, 1
    %vm1463 = vcmp.eq.s32.totalorder %v1447, 1
    %vm1464 = vcmp.eq.s32.totalorder %v1448, 1
    %vm1465 = vcmp.eq.s32.totalorder %v1449, 1
    %vm1466 = vcmp.eq.s32.totalorder %v1450, 1
    %vm1467 = vcmp.eq.s32.totalorder %v1451, 1
    %vm1468 = vcmp.eq.s32.totalorder %v1452, 1
    %vm1469 = vcmp.eq.s32.totalorder %v1453, 1
    %vm1470 = vcmp.eq.s32.totalorder %v1454, 1
    %vm1471 = vcmp.eq.s32.totalorder %v1455, 1
    %vm1472 = vcmp.eq.s32.totalorder %v1456, 1
    %v1473 = vsel %vm1457, %v1425, 0.0
    %v1474 = vsel %vm1458, %v1426, 0.0
    %v1475 = vsel %vm1459, %v1427, 0.0
    %v1476 = vsel %vm1460, %v1428, 0.0
    %v1477 = vsel %vm1461, %v1429, 0.0
    %v1478 = vsel %vm1462, %v1430, 0.0
    %v1479 = vsel %vm1463, %v1431, 0.0
    %v1480 = vsel %vm1464, %v1432, 0.0
    %v1481 = vsel %vm1465, %v1433, 0.0
    %v1482 = vsel %vm1466, %v1434, 0.0
    %v1483 = vsel %vm1467, %v1435, 0.0
    %v1484 = vsel %vm1468, %v1436, 0.0
    %v1485 = vsel %vm1469, %v1437, 0.0
    %v1486 = vsel %vm1470, %v1438, 0.0
    %v1487 = vsel %vm1471, %v1439, 0.0
    %v1488 = vsel %vm1472, %v1440, 0.0
    %v1489 = vadd.f32 %v1076, %v1473
    %v1490 = vadd.f32 %v1077, %v1474
    %v1491 = vadd.f32 %v1078, %v1475
    %v1492 = vadd.f32 %v1079, %v1476
    %v1493 = vadd.f32 %v1080, %v1477
    %v1494 = vadd.f32 %v1081, %v1478
    %v1495 = vadd.f32 %v1082, %v1479
    %v1496 = vadd.f32 %v1083, %v1480
    %v1497 = vadd.f32 %v1084, %v1481
    %v1498 = vadd.f32 %v1085, %v1482
    %v1499 = vadd.f32 %v1086, %v1483
    %v1500 = vadd.f32 %v1087, %v1484
    %v1501 = vadd.f32 %v1088, %v1485
    %v1502 = vadd.f32 %v1089, %v1486
    %v1503 = vadd.f32 %v1090, %v1487
    %v1504 = vadd.f32 %v1091, %v1488
    %v1505 = vld [vmem:[#allocation2 + $0x10] sm:$0xff]
    %v1506 = vld [vmem:[#allocation2 + $0x18] sm:$0xff]
    %v1507 = vld [vmem:[#allocation2 + $0x20] sm:$0xff]
    %v1508 = vld [vmem:[#allocation2 + $0x28] sm:$0xff]
    %v1509 = vld [vmem:[#allocation2 + $0x30] sm:$0xff]
    %v1510 = vld [vmem:[#allocation2 + $0x38] sm:$0xff]
    %v1511 = vld [vmem:[#allocation2 + $0x40] sm:$0xff]
    %v1512 = vld [vmem:[#allocation2 + $0x48] sm:$0xff]
    %v1513 = vld [vmem:[#allocation2 + $0x50] sm:$0xff]
    %v1514 = vld [vmem:[#allocation2 + $0x58] sm:$0xff]
    %v1515 = vld [vmem:[#allocation2 + $0x60] sm:$0xff]
    %v1516 = vld [vmem:[#allocation2 + $0x68] sm:$0xff]
    %v1517 = vld [vmem:[#allocation2 + $0x70] sm:$0xff]
    %v1518 = vld [vmem:[#allocation2 + $0x78] sm:$0xff]
    %v1519 = vld [vmem:[#allocation2 + $0x80] sm:$0xff]
    %v1520 = vld [vmem:[#allocation2 + $0x88] sm:$0xff]
    %v1521 = vld [vmem:[%s1 + $0x1] sm:$0x1]
    %v1522 = vlaneseq
    %v1523 = vshrl.u32 %v1522, 7
    %v1524 = vsub.s32 0, %v1523
    %v1525 = vrot.slane %v1521, %v1524
    %v1526 = vmul.f32 %v1525, %v1505
    %v1527 = vmul.f32 %v1525, %v1506
    %v1528 = vmul.f32 %v1525, %v1507
    %v1529 = vmul.f32 %v1525, %v1508
    %v1530 = vmul.f32 %v1525, %v1509
    %v1531 = vmul.f32 %v1525, %v1510
    %v1532 = vmul.f32 %v1525, %v1511
    %v1533 = vmul.f32 %v1525, %v1512
    %v1534 = vmul.f32 %v1525, %v1513
    %v1535 = vmul.f32 %v1525, %v1514
    %v1536 = vmul.f32 %v1525, %v1515
    %v1537 = vmul.f32 %v1525, %v1516
    %v1538 = vmul.f32 %v1525, %v1517
    %v1539 = vmul.f32 %v1525, %v1518
    %v1540 = vmul.f32 %v1525, %v1519
    %v1541 = vmul.f32 %v1525, %v1520
    %v1542 = vld [vmem:[#allocation2 + $0x90] sm:$0xff]
    %v1543 = vld [vmem:[#allocation2 + $0x98] sm:$0xff]
    %v1544 = vld [vmem:[%s1 + $0x4] sm:$0x1]
    %v1545 = vlaneseq
    %v1546 = vshrl.u32 %v1545, 7
    %v1547 = vsub.s32 0, %v1546
    %v1548 = vrot.slane %v1544, %v1547
    %v1549 = vmul.f32 %v1548, %v1507
    %v1550 = vmul.f32 %v1548, %v1508
    %v1551 = vmul.f32 %v1548, %v1509
    %v1552 = vmul.f32 %v1548, %v1510
    %v1553 = vmul.f32 %v1548, %v1511
    %v1554 = vmul.f32 %v1548, %v1512
    %v1555 = vmul.f32 %v1548, %v1513
    %v1556 = vmul.f32 %v1548, %v1514
    %v1557 = vmul.f32 %v1548, %v1515
    %v1558 = vmul.f32 %v1548, %v1516
    %v1559 = vmul.f32 %v1548, %v1517
    %v1560 = vmul.f32 %v1548, %v1518
    %v1561 = vmul.f32 %v1548, %v1519
    %v1562 = vmul.f32 %v1548, %v1520
    %v1563 = vmul.f32 %v1548, %v1542
    %v1564 = vmul.f32 %v1548, %v1543
    %v1565 = vadd.f32 %v1526, %v1549
    %v1566 = vadd.f32 %v1527, %v1550
    %v1567 = vadd.f32 %v1528, %v1551
    %v1568 = vadd.f32 %v1529, %v1552
    %v1569 = vadd.f32 %v1530, %v1553
    %v1570 = vadd.f32 %v1531, %v1554
    %v1571 = vadd.f32 %v1532, %v1555
    %v1572 = vadd.f32 %v1533, %v1556
    %v1573 = vadd.f32 %v1534, %v1557
    %v1574 = vadd.f32 %v1535, %v1558
    %v1575 = vadd.f32 %v1536, %v1559
    %v1576 = vadd.f32 %v1537, %v1560
    %v1577 = vadd.f32 %v1538, %v1561
    %v1578 = vadd.f32 %v1539, %v1562
    %v1579 = vadd.f32 %v1540, %v1563
    %v1580 = vadd.f32 %v1541, %v1564
    %v1581 = vld [vmem:[#allocation2 + $0xa0] sm:$0xff]
    %v1582 = vld [vmem:[#allocation2 + $0xa8] sm:$0xff]
    %v1583 = vld [vmem:[%s1 + $0x9] sm:$0x1]
    %v1584 = vlaneseq
    %v1585 = vshrl.u32 %v1584, 7
    %v1586 = vsub.s32 0, %v1585
    %v1587 = vrot.slane %v1583, %v1586
    %v1588 = vmul.f32 %v1587, %v1509
    %v1589 = vmul.f32 %v1587, %v1510
    %v1590 = vmul.f32 %v1587, %v1511
    %v1591 = vmul.f32 %v1587, %v1512
    %v1592 = vmul.f32 %v1587, %v1513
    %v1593 = vmul.f32 %v1587, %v1514
    %v1594 = vmul.f32 %v1587, %v1515
    %v1595 = vmul.f32 %v1587, %v1516
    %v1596 = vmul.f32 %v1587, %v1517
    %v1597 = vmul.f32 %v1587, %v1518
    %v1598 = vmul.f32 %v1587, %v1519
    %v1599 = vmul.f32 %v1587, %v1520
    %v1600 = vmul.f32 %v1587, %v1542
    %v1601 = vmul.f32 %v1587, %v1543
    %v1602 = vmul.f32 %v1587, %v1581
    %v1603 = vmul.f32 %v1587, %v1582
    %v1604 = vadd.f32 %v1565, %v1588
    %v1605 = vadd.f32 %v1566, %v1589
    %v1606 = vadd.f32 %v1567, %v1590
    %v1607 = vadd.f32 %v1568, %v1591
    %v1608 = vadd.f32 %v1569, %v1592
    %v1609 = vadd.f32 %v1570, %v1593
    %v1610 = vadd.f32 %v1571, %v1594
    %v1611 = vadd.f32 %v1572, %v1595
    %v1612 = vadd.f32 %v1573, %v1596
    %v1613 = vadd.f32 %v1574, %v1597
    %v1614 = vadd.f32 %v1575, %v1598
    %v1615 = vadd.f32 %v1576, %v1599
    %v1616 = vadd.f32 %v1577, %v1600
    %v1617 = vadd.f32 %v1578, %v1601
    %v1618 = vadd.f32 %v1579, %v1602
    %v1619 = vadd.f32 %v1580, %v1603
    %v1620 = vld [vmem:[#allocation2 + $0xb0] sm:$0xff]
    %v1621 = vld [vmem:[#allocation2 + $0xb8] sm:$0xff]
    %v1622 = vld [vmem:[%s1 + $0x12] sm:$0x1]
    %v1623 = vlaneseq
    %v1624 = vshrl.u32 %v1623, 7
    %v1625 = vsub.s32 0, %v1624
    %v1626 = vrot.slane %v1622, %v1625
    %v1627 = vmul.f32 %v1626, %v1511
    %v1628 = vmul.f32 %v1626, %v1512
    %v1629 = vmul.f32 %v1626, %v1513
    %v1630 = vmul.f32 %v1626, %v1514
    %v1631 = vmul.f32 %v1626, %v1515
    %v1632 = vmul.f32 %v1626, %v1516
    %v1633 = vmul.f32 %v1626, %v1517
    %v1634 = vmul.f32 %v1626, %v1518
    %v1635 = vmul.f32 %v1626, %v1519
    %v1636 = vmul.f32 %v1626, %v1520
    %v1637 = vmul.f32 %v1626, %v1542
    %v1638 = vmul.f32 %v1626, %v1543
    %v1639 = vmul.f32 %v1626, %v1581
    %v1640 = vmul.f32 %v1626, %v1582
    %v1641 = vmul.f32 %v1626, %v1620
    %v1642 = vmul.f32 %v1626, %v1621
    %v1643 = vadd.f32 %v1604, %v1627
    %v1644 = vadd.f32 %v1605, %v1628
    %v1645 = vadd.f32 %v1606, %v1629
    %v1646 = vadd.f32 %v1607, %v1630
    %v1647 = vadd.f32 %v1608, %v1631
    %v1648 = vadd.f32 %v1609, %v1632
    %v1649 = vadd.f32 %v1610, %v1633
    %v1650 = vadd.f32 %v1611, %v1634
    %v1651 = vadd.f32 %v1612, %v1635
    %v1652 = vadd.f32 %v1613, %v1636
    %v1653 = vadd.f32 %v1614, %v1637
    %v1654 = vadd.f32 %v1615, %v1638
    %v1655 = vadd.f32 %v1616, %v1639
    %v1656 = vadd.f32 %v1617, %v1640
    %v1657 = vadd.f32 %v1618, %v1641
    %v1658 = vadd.f32 %v1619, %v1642
    %v1659 = vld [vmem:[#allocation2 + $0xc0] sm:$0xff]
    %v1660 = vld [vmem:[#allocation2 + $0xc8] sm:$0xff]
    %v1661 = vld [vmem:[%s1 + $0x1b] sm:$0x1]
    %v1662 = vlaneseq
    %v1663 = vshrl.u32 %v1662, 7
    %v1664 = vsub.s32 0, %v1663
    %v1665 = vrot.slane %v1661, %v1664
    %v1666 = vmul.f32 %v1665, %v1513
    %v1667 = vmul.f32 %v1665, %v1514
    %v1668 = vmul.f32 %v1665, %v1515
    %v1669 = vmul.f32 %v1665, %v1516
    %v1670 = vmul.f32 %v1665, %v1517
    %v1671 = vmul.f32 %v1665, %v1518
    %v1672 = vmul.f32 %v1665, %v1519
    %v1673 = vmul.f32 %v1665, %v1520
    %v1674 = vmul.f32 %v1665, %v1542
    %v1675 = vmul.f32 %v1665, %v1543
    %v1676 = vmul.f32 %v1665, %v1581
    %v1677 = vmul.f32 %v1665, %v1582
    %v1678 = vmul.f32 %v1665, %v1620
    %v1679 = vmul.f32 %v1665, %v1621
    %v1680 = vmul.f32 %v1665, %v1659
    %v1681 = vmul.f32 %v1665, %v1660
    %v1682 = vadd.f32 %v1643, %v1666
    %v1683 = vadd.f32 %v1644, %v1667
    %v1684 = vadd.f32 %v1645, %v1668
    %v1685 = vadd.f32 %v1646, %v1669
    %v1686 = vadd.f32 %v1647, %v1670
    %v1687 = vadd.f32 %v1648, %v1671
    %v1688 = vadd.f32 %v1649, %v1672
    %v1689 = vadd.f32 %v1650, %v1673
    %v1690 = vadd.f32 %v1651, %v1674
    %v1691 = vadd.f32 %v1652, %v1675
    %v1692 = vadd.f32 %v1653, %v1676
    %v1693 = vadd.f32 %v1654, %v1677
    %v1694 = vadd.f32 %v1655, %v1678
    %v1695 = vadd.f32 %v1656, %v1679
    %v1696 = vadd.f32 %v1657, %v1680
    %v1697 = vadd.f32 %v1658, %v1681
    %v1698 = vld [vmem:[#allocation2 + $0xd0] sm:$0xff]
    %v1699 = vld [vmem:[#allocation2 + $0xd8] sm:$0xff]
    %v1700 = vld [vmem:[%s1 + $0x22] sm:$0x1]
    %v1701 = vlaneseq
    %v1702 = vshrl.u32 %v1701, 7
    %v1703 = vsub.s32 0, %v1702
    %v1704 = vrot.slane %v1700, %v1703
    %v1705 = vmul.f32 %v1704, %v1515
    %v1706 = vmul.f32 %v1704, %v1516
    %v1707 = vmul.f32 %v1704, %v1517
    %v1708 = vmul.f32 %v1704, %v1518
    %v1709 = vmul.f32 %v1704, %v1519
    %v1710 = vmul.f32 %v1704, %v1520
    %v1711 = vmul.f32 %v1704, %v1542
    %v1712 = vmul.f32 %v1704, %v1543
    %v1713 = vmul.f32 %v1704, %v1581
    %v1714 = vmul.f32 %v1704, %v1582
    %v1715 = vmul.f32 %v1704, %v1620
    %v1716 = vmul.f32 %v1704, %v1621
    %v1717 = vmul.f32 %v1704, %v1659
    %v1718 = vmul.f32 %v1704, %v1660
    %v1719 = vmul.f32 %v1704, %v1698
    %v1720 = vmul.f32 %v1704, %v1699
    %v1721 = vadd.f32 %v1682, %v1705
    %v1722 = vadd.f32 %v1683, %v1706
    %v1723 = vadd.f32 %v1684, %v1707
    %v1724 = vadd.f32 %v1685, %v1708
    %v1725 = vadd.f32 %v1686, %v1709
    %v1726 = vadd.f32 %v1687, %v1710
    %v1727 = vadd.f32 %v1688, %v1711
    %v1728 = vadd.f32 %v1689, %v1712
    %v1729 = vadd.f32 %v1690, %v1713
    %v1730 = vadd.f32 %v1691, %v1714
    %v1731 = vadd.f32 %v1692, %v1715
    %v1732 = vadd.f32 %v1693, %v1716
    %v1733 = vadd.f32 %v1694, %v1717
    %v1734 = vadd.f32 %v1695, %v1718
    %v1735 = vadd.f32 %v1696, %v1719
    %v1736 = vadd.f32 %v1697, %v1720
    %v1737 = vld [vmem:[#allocation2 + $0xe0] sm:$0xff]
    %v1738 = vld [vmem:[#allocation2 + $0xe8] sm:$0xff]
    %v1739 = vld [vmem:[%s1 + $0x25] sm:$0x1]
    %v1740 = vlaneseq
    %v1741 = vshrl.u32 %v1740, 7
    %v1742 = vsub.s32 0, %v1741
    %v1743 = vrot.slane %v1739, %v1742
    %v1744 = vmul.f32 %v1743, %v1517
    %v1745 = vmul.f32 %v1743, %v1518
    %v1746 = vmul.f32 %v1743, %v1519
    %v1747 = vmul.f32 %v1743, %v1520
    %v1748 = vmul.f32 %v1743, %v1542
    %v1749 = vmul.f32 %v1743, %v1543
    %v1750 = vmul.f32 %v1743, %v1581
    %v1751 = vmul.f32 %v1743, %v1582
    %v1752 = vmul.f32 %v1743, %v1620
    %v1753 = vmul.f32 %v1743, %v1621
    %v1754 = vmul.f32 %v1743, %v1659
    %v1755 = vmul.f32 %v1743, %v1660
    %v1756 = vmul.f32 %v1743, %v1698
    %v1757 = vmul.f32 %v1743, %v1699
    %v1758 = vmul.f32 %v1743, %v1737
    %v1759 = vmul.f32 %v1743, %v1738
    %v1760 = vadd.f32 %v1721, %v1744
    %v1761 = vadd.f32 %v1722, %v1745
    %v1762 = vadd.f32 %v1723, %v1746
    %v1763 = vadd.f32 %v1724, %v1747
    %v1764 = vadd.f32 %v1725, %v1748
    %v1765 = vadd.f32 %v1726, %v1749
    %v1766 = vadd.f32 %v1727, %v1750
    %v1767 = vadd.f32 %v1728, %v1751
    %v1768 = vadd.f32 %v1729, %v1752
    %v1769 = vadd.f32 %v1730, %v1753
    %v1770 = vadd.f32 %v1731, %v1754
    %v1771 = vadd.f32 %v1732, %v1755
    %v1772 = vadd.f32 %v1733, %v1756
    %v1773 = vadd.f32 %v1734, %v1757
    %v1774 = vadd.f32 %v1735, %v1758
    %v1775 = vadd.f32 %v1736, %v1759
    %v1776 = vld [vmem:[#allocation2 + $0xf0] sm:$0xff]
    %v1777 = vld [vmem:[#allocation2 + $0xf8] sm:$0xff]
    %v1778 = vld [vmem:[%s1 + $0x28] sm:$0x1]
    %v1779 = vlaneseq
    %v1780 = vshrl.u32 %v1779, 7
    %v1781 = vsub.s32 0, %v1780
    %v1782 = vrot.slane %v1778, %v1781
    %v1783 = vmul.f32 %v1782, %v1519
    %v1784 = vmul.f32 %v1782, %v1520
    %v1785 = vmul.f32 %v1782, %v1542
    %v1786 = vmul.f32 %v1782, %v1543
    %v1787 = vmul.f32 %v1782, %v1581
    %v1788 = vmul.f32 %v1782, %v1582
    %v1789 = vmul.f32 %v1782, %v1620
    %v1790 = vmul.f32 %v1782, %v1621
    %v1791 = vmul.f32 %v1782, %v1659
    %v1792 = vmul.f32 %v1782, %v1660
    %v1793 = vmul.f32 %v1782, %v1698
    %v1794 = vmul.f32 %v1782, %v1699
    %v1795 = vmul.f32 %v1782, %v1737
    %v1796 = vmul.f32 %v1782, %v1738
    %v1797 = vmul.f32 %v1782, %v1776
    %v1798 = vmul.f32 %v1782, %v1777
    %v1799 = vadd.f32 %v1760, %v1783
    %v1800 = vadd.f32 %v1761, %v1784
    %v1801 = vadd.f32 %v1762, %v1785
    %v1802 = vadd.f32 %v1763, %v1786
    %v1803 = vadd.f32 %v1764, %v1787
    %v1804 = vadd.f32 %v1765, %v1788
    %v1805 = vadd.f32 %v1766, %v1789
    %v1806 = vadd.f32 %v1767, %v1790
    %v1807 = vadd.f32 %v1768, %v1791
    %v1808 = vadd.f32 %v1769, %v1792
    %v1809 = vadd.f32 %v1770, %v1793
    %v1810 = vadd.f32 %v1771, %v1794
    %v1811 = vadd.f32 %v1772, %v1795
    %v1812 = vadd.f32 %v1773, %v1796
    %v1813 = vadd.f32 %v1774, %v1797
    %v1814 = vadd.f32 %v1775, %v1798
    %v1815 = vld [vmem:[#allocation2 + $0x100] sm:$0xff]
    %v1816 = vld [vmem:[#allocation2 + $0x108] sm:$0xff]
    %v1817 = vld [vmem:[%s1 + $0x2b] sm:$0x1]
    %v1818 = vlaneseq
    %v1819 = vshrl.u32 %v1818, 7
    %v1820 = vsub.s32 0, %v1819
    %v1821 = vrot.slane %v1817, %v1820
    %v1822 = vmul.f32 %v1821, %v1542
    %v1823 = vmul.f32 %v1821, %v1543
    %v1824 = vmul.f32 %v1821, %v1581
    %v1825 = vmul.f32 %v1821, %v1582
    %v1826 = vmul.f32 %v1821, %v1620
    %v1827 = vmul.f32 %v1821, %v1621
    %v1828 = vmul.f32 %v1821, %v1659
    %v1829 = vmul.f32 %v1821, %v1660
    %v1830 = vmul.f32 %v1821, %v1698
    %v1831 = vmul.f32 %v1821, %v1699
    %v1832 = vmul.f32 %v1821, %v1737
    %v1833 = vmul.f32 %v1821, %v1738
    %v1834 = vmul.f32 %v1821, %v1776
    %v1835 = vmul.f32 %v1821, %v1777
    %v1836 = vmul.f32 %v1821, %v1815
    %v1837 = vmul.f32 %v1821, %v1816
    %v1838 = vadd.f32 %v1799, %v1822
    %v1839 = vadd.f32 %v1800, %v1823
    %v1840 = vadd.f32 %v1801, %v1824
    %v1841 = vadd.f32 %v1802, %v1825
    %v1842 = vadd.f32 %v1803, %v1826
    %v1843 = vadd.f32 %v1804, %v1827
    %v1844 = vadd.f32 %v1805, %v1828
    %v1845 = vadd.f32 %v1806, %v1829
    %v1846 = vadd.f32 %v1807, %v1830
    %v1847 = vadd.f32 %v1808, %v1831
    %v1848 = vadd.f32 %v1809, %v1832
    %v1849 = vadd.f32 %v1810, %v1833
    %v1850 = vadd.f32 %v1811, %v1834
    %v1851 = vadd.f32 %v1812, %v1835
    %v1852 = vadd.f32 %v1813, %v1836
    %v1853 = vadd.f32 %v1814, %v1837
    %v1854 = vadd.f32 %v1489, %v1838
    %v1855 = vadd.f32 %v1490, %v1839
    %v1856 = vadd.f32 %v1491, %v1840
    %v1857 = vadd.f32 %v1492, %v1841
    %v1858 = vadd.f32 %v1493, %v1842
    %v1859 = vadd.f32 %v1494, %v1843
    %v1860 = vadd.f32 %v1495, %v1844
    %v1861 = vadd.f32 %v1496, %v1845
    %v1862 = vadd.f32 %v1497, %v1846
    %v1863 = vadd.f32 %v1498, %v1847
    %v1864 = vadd.f32 %v1499, %v1848
    %v1865 = vadd.f32 %v1500, %v1849
    %v1866 = vadd.f32 %v1501, %v1850
    %v1867 = vadd.f32 %v1502, %v1851
    %v1868 = vadd.f32 %v1503, %v1852
    %v1869 = vadd.f32 %v1504, %v1853
    %v1870 = vld [vmem:[#allocation2 + $0x11] sm:$0xff]
    %v1871 = vld [vmem:[#allocation2 + $0x19] sm:$0xff]
    %v1872 = vld [vmem:[#allocation2 + $0x21] sm:$0xff]
    %v1873 = vld [vmem:[#allocation2 + $0x29] sm:$0xff]
    %v1874 = vld [vmem:[#allocation2 + $0x31] sm:$0xff]
    %v1875 = vld [vmem:[#allocation2 + $0x39] sm:$0xff]
    %v1876 = vld [vmem:[#allocation2 + $0x41] sm:$0xff]
    %v1877 = vld [vmem:[#allocation2 + $0x49] sm:$0xff]
    %v1878 = vld [vmem:[#allocation2 + $0x51] sm:$0xff]
    %v1879 = vld [vmem:[#allocation2 + $0x59] sm:$0xff]
    %v1880 = vld [vmem:[#allocation2 + $0x61] sm:$0xff]
    %v1881 = vld [vmem:[#allocation2 + $0x69] sm:$0xff]
    %v1882 = vld [vmem:[#allocation2 + $0x71] sm:$0xff]
    %v1883 = vld [vmem:[#allocation2 + $0x79] sm:$0xff]
    %v1884 = vld [vmem:[#allocation2 + $0x81] sm:$0xff]
    %v1885 = vld [vmem:[#allocation2 + $0x89] sm:$0xff]
    %v1886 = vld [vmem:[%s1 + $0x2] sm:$0x1]
    %v1887 = vlaneseq
    %v1888 = vshrl.u32 %v1887, 7
    %v1889 = vsub.s32 0, %v1888
    %v1890 = vrot.slane %v1886, %v1889
    %v1891 = vmul.f32 %v1890, %v1870
    %v1892 = vmul.f32 %v1890, %v1871
    %v1893 = vmul.f32 %v1890, %v1872
    %v1894 = vmul.f32 %v1890, %v1873
    %v1895 = vmul.f32 %v1890, %v1874
    %v1896 = vmul.f32 %v1890, %v1875
    %v1897 = vmul.f32 %v1890, %v1876
    %v1898 = vmul.f32 %v1890, %v1877
    %v1899 = vmul.f32 %v1890, %v1878
    %v1900 = vmul.f32 %v1890, %v1879
    %v1901 = vmul.f32 %v1890, %v1880
    %v1902 = vmul.f32 %v1890, %v1881
    %v1903 = vmul.f32 %v1890, %v1882
    %v1904 = vmul.f32 %v1890, %v1883
    %v1905 = vmul.f32 %v1890, %v1884
    %v1906 = vmul.f32 %v1890, %v1885
    %v1907 = vld [vmem:[#allocation2 + $0x91] sm:$0xff]
    %v1908 = vld [vmem:[#allocation2 + $0x99] sm:$0xff]
    %v1909 = vld [vmem:[%s1 + $0x5] sm:$0x1]
    %v1910 = vlaneseq
    %v1911 = vshrl.u32 %v1910, 7
    %v1912 = vsub.s32 0, %v1911
    %v1913 = vrot.slane %v1909, %v1912
    %v1914 = vmul.f32 %v1913, %v1872
    %v1915 = vmul.f32 %v1913, %v1873
    %v1916 = vmul.f32 %v1913, %v1874
    %v1917 = vmul.f32 %v1913, %v1875
    %v1918 = vmul.f32 %v1913, %v1876
    %v1919 = vmul.f32 %v1913, %v1877
    %v1920 = vmul.f32 %v1913, %v1878
    %v1921 = vmul.f32 %v1913, %v1879
    %v1922 = vmul.f32 %v1913, %v1880
    %v1923 = vmul.f32 %v1913, %v1881
    %v1924 = vmul.f32 %v1913, %v1882
    %v1925 = vmul.f32 %v1913, %v1883
    %v1926 = vmul.f32 %v1913, %v1884
    %v1927 = vmul.f32 %v1913, %v1885
    %v1928 = vmul.f32 %v1913, %v1907
    %v1929 = vmul.f32 %v1913, %v1908
    %v1930 = vadd.f32 %v1891, %v1914
    %v1931 = vadd.f32 %v1892, %v1915
    %v1932 = vadd.f32 %v1893, %v1916
    %v1933 = vadd.f32 %v1894, %v1917
    %v1934 = vadd.f32 %v1895, %v1918
    %v1935 = vadd.f32 %v1896, %v1919
    %v1936 = vadd.f32 %v1897, %v1920
    %v1937 = vadd.f32 %v1898, %v1921
    %v1938 = vadd.f32 %v1899, %v1922
    %v1939 = vadd.f32 %v1900, %v1923
    %v1940 = vadd.f32 %v1901, %v1924
    %v1941 = vadd.f32 %v1902, %v1925
    %v1942 = vadd.f32 %v1903, %v1926
    %v1943 = vadd.f32 %v1904, %v1927
    %v1944 = vadd.f32 %v1905, %v1928
    %v1945 = vadd.f32 %v1906, %v1929
    %v1946 = vld [vmem:[#allocation2 + $0xa1] sm:$0xff]
    %v1947 = vld [vmem:[#allocation2 + $0xa9] sm:$0xff]
    %v1948 = vld [vmem:[%s1 + $0xa] sm:$0x1]
    %v1949 = vlaneseq
    %v1950 = vshrl.u32 %v1949, 7
    %v1951 = vsub.s32 0, %v1950
    %v1952 = vrot.slane %v1948, %v1951
    %v1953 = vmul.f32 %v1952, %v1874
    %v1954 = vmul.f32 %v1952, %v1875
    %v1955 = vmul.f32 %v1952, %v1876
    %v1956 = vmul.f32 %v1952, %v1877
    %v1957 = vmul.f32 %v1952, %v1878
    %v1958 = vmul.f32 %v1952, %v1879
    %v1959 = vmul.f32 %v1952, %v1880
    %v1960 = vmul.f32 %v1952, %v1881
    %v1961 = vmul.f32 %v1952, %v1882
    %v1962 = vmul.f32 %v1952, %v1883
    %v1963 = vmul.f32 %v1952, %v1884
    %v1964 = vmul.f32 %v1952, %v1885
    %v1965 = vmul.f32 %v1952, %v1907
    %v1966 = vmul.f32 %v1952, %v1908
    %v1967 = vmul.f32 %v1952, %v1946
    %v1968 = vmul.f32 %v1952, %v1947
    %v1969 = vadd.f32 %v1930, %v1953
    %v1970 = vadd.f32 %v1931, %v1954
    %v1971 = vadd.f32 %v1932, %v1955
    %v1972 = vadd.f32 %v1933, %v1956
    %v1973 = vadd.f32 %v1934, %v1957
    %v1974 = vadd.f32 %v1935, %v1958
    %v1975 = vadd.f32 %v1936, %v1959
    %v1976 = vadd.f32 %v1937, %v1960
    %v1977 = vadd.f32 %v1938, %v1961
    %v1978 = vadd.f32 %v1939, %v1962
    %v1979 = vadd.f32 %v1940, %v1963
    %v1980 = vadd.f32 %v1941, %v1964
    %v1981 = vadd.f32 %v1942, %v1965
    %v1982 = vadd.f32 %v1943, %v1966
    %v1983 = vadd.f32 %v1944, %v1967
    %v1984 = vadd.f32 %v1945, %v1968
    %v1985 = vld [vmem:[#allocation2 + $0xb1] sm:$0xff]
    %v1986 = vld [vmem:[#allocation2 + $0xb9] sm:$0xff]
    %v1987 = vld [vmem:[%s1 + $0x13] sm:$0x1]
    %v1988 = vlaneseq
    %v1989 = vshrl.u32 %v1988, 7
    %v1990 = vsub.s32 0, %v1989
    %v1991 = vrot.slane %v1987, %v1990
    %v1992 = vmul.f32 %v1991, %v1876
    %v1993 = vmul.f32 %v1991, %v1877
    %v1994 = vmul.f32 %v1991, %v1878
    %v1995 = vmul.f32 %v1991, %v1879
    %v1996 = vmul.f32 %v1991, %v1880
    %v1997 = vmul.f32 %v1991, %v1881
    %v1998 = vmul.f32 %v1991, %v1882
    %v1999 = vmul.f32 %v1991, %v1883
    %v2000 = vmul.f32 %v1991, %v1884
    %v2001 = vmul.f32 %v1991, %v1885
    %v2002 = vmul.f32 %v1991, %v1907
    %v2003 = vmul.f32 %v1991, %v1908
    %v2004 = vmul.f32 %v1991, %v1946
    %v2005 = vmul.f32 %v1991, %v1947
    %v2006 = vmul.f32 %v1991, %v1985
    %v2007 = vmul.f32 %v1991, %v1986
    %v2008 = vadd.f32 %v1969, %v1992
    %v2009 = vadd.f32 %v1970, %v1993
    %v2010 = vadd.f32 %v1971, %v1994
    %v2011 = vadd.f32 %v1972, %v1995
    %v2012 = vadd.f32 %v1973, %v1996
    %v2013 = vadd.f32 %v1974, %v1997
    %v2014 = vadd.f32 %v1975, %v1998
    %v2015 = vadd.f32 %v1976, %v1999
    %v2016 = vadd.f32 %v1977, %v2000
    %v2017 = vadd.f32 %v1978, %v2001
    %v2018 = vadd.f32 %v1979, %v2002
    %v2019 = vadd.f32 %v1980, %v2003
    %v2020 = vadd.f32 %v1981, %v2004
    %v2021 = vadd.f32 %v1982, %v2005
    %v2022 = vadd.f32 %v1983, %v2006
    %v2023 = vadd.f32 %v1984, %v2007
    %v2024 = vld [vmem:[#allocation2 + $0xc1] sm:$0xff]
    %v2025 = vld [vmem:[#allocation2 + $0xc9] sm:$0xff]
    %v2026 = vld [vmem:[%s1 + $0x1c] sm:$0x1]
    %v2027 = vlaneseq
    %v2028 = vshrl.u32 %v2027, 7
    %v2029 = vsub.s32 0, %v2028
    %v2030 = vrot.slane %v2026, %v2029
    %v2031 = vmul.f32 %v2030, %v1878
    %v2032 = vmul.f32 %v2030, %v1879
    %v2033 = vmul.f32 %v2030, %v1880
    %v2034 = vmul.f32 %v2030, %v1881
    %v2035 = vmul.f32 %v2030, %v1882
    %v2036 = vmul.f32 %v2030, %v1883
    %v2037 = vmul.f32 %v2030, %v1884
    %v2038 = vmul.f32 %v2030, %v1885
    %v2039 = vmul.f32 %v2030, %v1907
    %v2040 = vmul.f32 %v2030, %v1908
    %v2041 = vmul.f32 %v2030, %v1946
    %v2042 = vmul.f32 %v2030, %v1947
    %v2043 = vmul.f32 %v2030, %v1985
    %v2044 = vmul.f32 %v2030, %v1986
    %v2045 = vmul.f32 %v2030, %v2024
    %v2046 = vmul.f32 %v2030, %v2025
    %v2047 = vadd.f32 %v2008, %v2031
    %v2048 = vadd.f32 %v2009, %v2032
    %v2049 = vadd.f32 %v2010, %v2033
    %v2050 = vadd.f32 %v2011, %v2034
    %v2051 = vadd.f32 %v2012, %v2035
    %v2052 = vadd.f32 %v2013, %v2036
    %v2053 = vadd.f32 %v2014, %v2037
    %v2054 = vadd.f32 %v2015, %v2038
    %v2055 = vadd.f32 %v2016, %v2039
    %v2056 = vadd.f32 %v2017, %v2040
    %v2057 = vadd.f32 %v2018, %v2041
    %v2058 = vadd.f32 %v2019, %v2042
    %v2059 = vadd.f32 %v2020, %v2043
    %v2060 = vadd.f32 %v2021, %v2044
    %v2061 = vadd.f32 %v2022, %v2045
    %v2062 = vadd.f32 %v2023, %v2046
    %v2063 = vld [vmem:[#allocation2 + $0xd1] sm:$0xff]
    %v2064 = vld [vmem:[#allocation2 + $0xd9] sm:$0xff]
    %v2065 = vld [vmem:[%s1 + $0x23] sm:$0x1]
    %v2066 = vlaneseq
    %v2067 = vshrl.u32 %v2066, 7
    %v2068 = vsub.s32 0, %v2067
    %v2069 = vrot.slane %v2065, %v2068
    %v2070 = vmul.f32 %v2069, %v1880
    %v2071 = vmul.f32 %v2069, %v1881
    %v2072 = vmul.f32 %v2069, %v1882
    %v2073 = vmul.f32 %v2069, %v1883
    %v2074 = vmul.f32 %v2069, %v1884
    %v2075 = vmul.f32 %v2069, %v1885
    %v2076 = vmul.f32 %v2069, %v1907
    %v2077 = vmul.f32 %v2069, %v1908
    %v2078 = vmul.f32 %v2069, %v1946
    %v2079 = vmul.f32 %v2069, %v1947
    %v2080 = vmul.f32 %v2069, %v1985
    %v2081 = vmul.f32 %v2069, %v1986
    %v2082 = vmul.f32 %v2069, %v2024
    %v2083 = vmul.f32 %v2069, %v2025
    %v2084 = vmul.f32 %v2069, %v2063
    %v2085 = vmul.f32 %v2069, %v2064
    %v2086 = vadd.f32 %v2047, %v2070
    %v2087 = vadd.f32 %v2048, %v2071
    %v2088 = vadd.f32 %v2049, %v2072
    %v2089 = vadd.f32 %v2050, %v2073
    %v2090 = vadd.f32 %v2051, %v2074
    %v2091 = vadd.f32 %v2052, %v2075
    %v2092 = vadd.f32 %v2053, %v2076
    %v2093 = vadd.f32 %v2054, %v2077
    %v2094 = vadd.f32 %v2055, %v2078
    %v2095 = vadd.f32 %v2056, %v2079
    %v2096 = vadd.f32 %v2057, %v2080
    %v2097 = vadd.f32 %v2058, %v2081
    %v2098 = vadd.f32 %v2059, %v2082
    %v2099 = vadd.f32 %v2060, %v2083
    %v2100 = vadd.f32 %v2061, %v2084
    %v2101 = vadd.f32 %v2062, %v2085
    %v2102 = vld [vmem:[#allocation2 + $0xe1] sm:$0xff]
    %v2103 = vld [vmem:[#allocation2 + $0xe9] sm:$0xff]
    %v2104 = vld [vmem:[%s1 + $0x26] sm:$0x1]
    %v2105 = vlaneseq
    %v2106 = vshrl.u32 %v2105, 7
    %v2107 = vsub.s32 0, %v2106
    %v2108 = vrot.slane %v2104, %v2107
    %v2109 = vmul.f32 %v2108, %v1882
    %v2110 = vmul.f32 %v2108, %v1883
    %v2111 = vmul.f32 %v2108, %v1884
    %v2112 = vmul.f32 %v2108, %v1885
    %v2113 = vmul.f32 %v2108, %v1907
    %v2114 = vmul.f32 %v2108, %v1908
    %v2115 = vmul.f32 %v2108, %v1946
    %v2116 = vmul.f32 %v2108, %v1947
    %v2117 = vmul.f32 %v2108, %v1985
    %v2118 = vmul.f32 %v2108, %v1986
    %v2119 = vmul.f32 %v2108, %v2024
    %v2120 = vmul.f32 %v2108, %v2025
    %v2121 = vmul.f32 %v2108, %v2063
    %v2122 = vmul.f32 %v2108, %v2064
    %v2123 = vmul.f32 %v2108, %v2102
    %v2124 = vmul.f32 %v2108, %v2103
    %v2125 = vadd.f32 %v2086, %v2109
    %v2126 = vadd.f32 %v2087, %v2110
    %v2127 = vadd.f32 %v2088, %v2111
    %v2128 = vadd.f32 %v2089, %v2112
    %v2129 = vadd.f32 %v2090, %v2113
    %v2130 = vadd.f32 %v2091, %v2114
    %v2131 = vadd.f32 %v2092, %v2115
    %v2132 = vadd.f32 %v2093, %v2116
    %v2133 = vadd.f32 %v2094, %v2117
    %v2134 = vadd.f32 %v2095, %v2118
    %v2135 = vadd.f32 %v2096, %v2119
    %v2136 = vadd.f32 %v2097, %v2120
    %v2137 = vadd.f32 %v2098, %v2121
    %v2138 = vadd.f32 %v2099, %v2122
    %v2139 = vadd.f32 %v2100, %v2123
    %v2140 = vadd.f32 %v2101, %v2124
    %v2141 = vld [vmem:[#allocation2 + $0xf1] sm:$0xff]
    %v2142 = vld [vmem:[#allocation2 + $0xf9] sm:$0xff]
    %v2143 = vld [vmem:[%s1 + $0x29] sm:$0x1]
    %v2144 = vlaneseq
    %v2145 = vshrl.u32 %v2144, 7
    %v2146 = vsub.s32 0, %v2145
    %v2147 = vrot.slane %v2143, %v2146
    %v2148 = vmul.f32 %v2147, %v1884
    %v2149 = vmul.f32 %v2147, %v1885
    %v2150 = vmul.f32 %v2147, %v1907
    %v2151 = vmul.f32 %v2147, %v1908
    %v2152 = vmul.f32 %v2147, %v1946
    %v2153 = vmul.f32 %v2147, %v1947
    %v2154 = vmul.f32 %v2147, %v1985
    %v2155 = vmul.f32 %v2147, %v1986
    %v2156 = vmul.f32 %v2147, %v2024
    %v2157 = vmul.f32 %v2147, %v2025
    %v2158 = vmul.f32 %v2147, %v2063
    %v2159 = vmul.f32 %v2147, %v2064
    %v2160 = vmul.f32 %v2147, %v2102
    %v2161 = vmul.f32 %v2147, %v2103
    %v2162 = vmul.f32 %v2147, %v2141
    %v2163 = vmul.f32 %v2147, %v2142
    %v2164 = vadd.f32 %v2125, %v2148
    %v2165 = vadd.f32 %v2126, %v2149
    %v2166 = vadd.f32 %v2127, %v2150
    %v2167 = vadd.f32 %v2128, %v2151
    %v2168 = vadd.f32 %v2129, %v2152
    %v2169 = vadd.f32 %v2130, %v2153
    %v2170 = vadd.f32 %v2131, %v2154
    %v2171 = vadd.f32 %v2132, %v2155
    %v2172 = vadd.f32 %v2133, %v2156
    %v2173 = vadd.f32 %v2134, %v2157
    %v2174 = vadd.f32 %v2135, %v2158
    %v2175 = vadd.f32 %v2136, %v2159
    %v2176 = vadd.f32 %v2137, %v2160
    %v2177 = vadd.f32 %v2138, %v2161
    %v2178 = vadd.f32 %v2139, %v2162
    %v2179 = vadd.f32 %v2140, %v2163
    %v2180 = vld [vmem:[#allocation2 + $0x101] sm:$0xff]
    %v2181 = vld [vmem:[#allocation2 + $0x109] sm:$0xff]
    %v2182 = vld [vmem:[%s1 + $0x2c] sm:$0x1]
    %v2183 = vlaneseq
    %v2184 = vshrl.u32 %v2183, 7
    %v2185 = vsub.s32 0, %v2184
    %v2186 = vrot.slane %v2182, %v2185
    %v2187 = vmul.f32 %v2186, %v1907
    %v2188 = vmul.f32 %v2186, %v1908
    %v2189 = vmul.f32 %v2186, %v1946
    %v2190 = vmul.f32 %v2186, %v1947
    %v2191 = vmul.f32 %v2186, %v1985
    %v2192 = vmul.f32 %v2186, %v1986
    %v2193 = vmul.f32 %v2186, %v2024
    %v2194 = vmul.f32 %v2186, %v2025
    %v2195 = vmul.f32 %v2186, %v2063
    %v2196 = vmul.f32 %v2186, %v2064
    %v2197 = vmul.f32 %v2186, %v2102
    %v2198 = vmul.f32 %v2186, %v2103
    %v2199 = vmul.f32 %v2186, %v2141
    %v2200 = vmul.f32 %v2186, %v2142
    %v2201 = vmul.f32 %v2186, %v2180
    %v2202 = vmul.f32 %v2186, %v2181
    %v2203 = vadd.f32 %v2164, %v2187
    %v2204 = vadd.f32 %v2165, %v2188
    %v2205 = vadd.f32 %v2166, %v2189
    %v2206 = vadd.f32 %v2167, %v2190
    %v2207 = vadd.f32 %v2168, %v2191
    %v2208 = vadd.f32 %v2169, %v2192
    %v2209 = vadd.f32 %v2170, %v2193
    %v2210 = vadd.f32 %v2171, %v2194
    %v2211 = vadd.f32 %v2172, %v2195
    %v2212 = vadd.f32 %v2173, %v2196
    %v2213 = vadd.f32 %v2174, %v2197
    %v2214 = vadd.f32 %v2175, %v2198
    %v2215 = vadd.f32 %v2176, %v2199
    %v2216 = vadd.f32 %v2177, %v2200
    %v2217 = vadd.f32 %v2178, %v2201
    %v2218 = vadd.f32 %v2179, %v2202
    %v2219 = vsel %vm520, 1, 0
    %v2220 = vsel %vm521, 1, 0
    %v2221 = vsel %vm522, 1, 0
    %v2222 = vsel %vm523, 1, 0
    %v2223 = vsel %vm524, 1, 0
    %v2224 = vsel %vm525, 1, 0
    %v2225 = vsel %vm526, 1, 0
    %v2226 = vsel %vm527, 1, 0
    %v2227 = vsel %vm528, 1, 0
    %v2228 = vsel %vm529, 1, 0
    %v2229 = vsel %vm530, 1, 0
    %v2230 = vsel %vm531, 1, 0
    %v2231 = vsel %vm532, 1, 0
    %v2232 = vsel %vm533, 1, 0
    %v2233 = vsel %vm534, 1, 0
    %v2234 = vsel %vm535, 1, 0
    %vm2235 = vcmp.eq.s32.totalorder %v2219, 1
    %vm2236 = vcmp.eq.s32.totalorder %v2220, 1
    %vm2237 = vcmp.eq.s32.totalorder %v2221, 1
    %vm2238 = vcmp.eq.s32.totalorder %v2222, 1
    %vm2239 = vcmp.eq.s32.totalorder %v2223, 1
    %vm2240 = vcmp.eq.s32.totalorder %v2224, 1
    %vm2241 = vcmp.eq.s32.totalorder %v2225, 1
    %vm2242 = vcmp.eq.s32.totalorder %v2226, 1
    %vm2243 = vcmp.eq.s32.totalorder %v2227, 1
    %vm2244 = vcmp.eq.s32.totalorder %v2228, 1
    %vm2245 = vcmp.eq.s32.totalorder %v2229, 1
    %vm2246 = vcmp.eq.s32.totalorder %v2230, 1
    %vm2247 = vcmp.eq.s32.totalorder %v2231, 1
    %vm2248 = vcmp.eq.s32.totalorder %v2232, 1
    %vm2249 = vcmp.eq.s32.totalorder %v2233, 1
    %vm2250 = vcmp.eq.s32.totalorder %v2234, 1
    %v2251 = vsel %vm2235, %v2203, 0.0
    %v2252 = vsel %vm2236, %v2204, 0.0
    %v2253 = vsel %vm2237, %v2205, 0.0
    %v2254 = vsel %vm2238, %v2206, 0.0
    %v2255 = vsel %vm2239, %v2207, 0.0
    %v2256 = vsel %vm2240, %v2208, 0.0
    %v2257 = vsel %vm2241, %v2209, 0.0
    %v2258 = vsel %vm2242, %v2210, 0.0
    %v2259 = vsel %vm2243, %v2211, 0.0
    %v2260 = vsel %vm2244, %v2212, 0.0
    %v2261 = vsel %vm2245, %v2213, 0.0
    %v2262 = vsel %vm2246, %v2214, 0.0
    %v2263 = vsel %vm2247, %v2215, 0.0
    %v2264 = vsel %vm2248, %v2216, 0.0
    %v2265 = vsel %vm2249, %v2217, 0.0
    %v2266 = vsel %vm2250, %v2218, 0.0
    %v2267 = vadd.f32 %v1854, %v2251
    %v2268 = vadd.f32 %v1855, %v2252
    %v2269 = vadd.f32 %v1856, %v2253
    %v2270 = vadd.f32 %v1857, %v2254
    %v2271 = vadd.f32 %v1858, %v2255
    %v2272 = vadd.f32 %v1859, %v2256
    %v2273 = vadd.f32 %v1860, %v2257
    %v2274 = vadd.f32 %v1861, %v2258
    %v2275 = vadd.f32 %v1862, %v2259
    %v2276 = vadd.f32 %v1863, %v2260
    %v2277 = vadd.f32 %v1864, %v2261
    %v2278 = vadd.f32 %v1865, %v2262
    %v2279 = vadd.f32 %v1866, %v2263
    %v2280 = vadd.f32 %v1867, %v2264
    %v2281 = vadd.f32 %v1868, %v2265
    %v2282 = vadd.f32 %v1869, %v2266
    %v2283 = vld [vmem:[#allocation2 + $0x32] sm:$0xff]
    %v2284 = vld [vmem:[#allocation2 + $0x3a] sm:$0xff]
    %v2285 = vld [vmem:[#allocation2 + $0x42] sm:$0xff]
    %v2286 = vld [vmem:[#allocation2 + $0x4a] sm:$0xff]
    %v2287 = vld [vmem:[#allocation2 + $0x52] sm:$0xff]
    %v2288 = vld [vmem:[#allocation2 + $0x5a] sm:$0xff]
    %v2289 = vld [vmem:[#allocation2 + $0x62] sm:$0xff]
    %v2290 = vld [vmem:[#allocation2 + $0x6a] sm:$0xff]
    %v2291 = vld [vmem:[#allocation2 + $0x72] sm:$0xff]
    %v2292 = vld [vmem:[#allocation2 + $0x7a] sm:$0xff]
    %v2293 = vld [vmem:[#allocation2 + $0x82] sm:$0xff]
    %v2294 = vld [vmem:[#allocation2 + $0x8a] sm:$0xff]
    %v2295 = vld [vmem:[#allocation2 + $0x92] sm:$0xff]
    %v2296 = vld [vmem:[#allocation2 + $0x9a] sm:$0xff]
    %v2297 = vld [vmem:[#allocation2 + $0xa2] sm:$0xff]
    %v2298 = vld [vmem:[#allocation2 + $0xaa] sm:$0xff]
    %v2299 = vld [vmem:[%s1 + $0xb] sm:$0x1]
    %v2300 = vlaneseq
    %v2301 = vshrl.u32 %v2300, 7
    %v2302 = vsub.s32 0, %v2301
    %v2303 = vrot.slane %v2299, %v2302
    %v2304 = vmul.f32 %v2303, %v2283
    %v2305 = vmul.f32 %v2303, %v2284
    %v2306 = vmul.f32 %v2303, %v2285
    %v2307 = vmul.f32 %v2303, %v2286
    %v2308 = vmul.f32 %v2303, %v2287
    %v2309 = vmul.f32 %v2303, %v2288
    %v2310 = vmul.f32 %v2303, %v2289
    %v2311 = vmul.f32 %v2303, %v2290
    %v2312 = vmul.f32 %v2303, %v2291
    %v2313 = vmul.f32 %v2303, %v2292
    %v2314 = vmul.f32 %v2303, %v2293
    %v2315 = vmul.f32 %v2303, %v2294
    %v2316 = vmul.f32 %v2303, %v2295
    %v2317 = vmul.f32 %v2303, %v2296
    %v2318 = vmul.f32 %v2303, %v2297
    %v2319 = vmul.f32 %v2303, %v2298
    %v2320 = vld [vmem:[#allocation2 + $0xb2] sm:$0xff]
    %v2321 = vld [vmem:[#allocation2 + $0xba] sm:$0xff]
    %v2322 = vld [vmem:[%s1 + $0x14] sm:$0x1]
    %v2323 = vlaneseq
    %v2324 = vshrl.u32 %v2323, 7
    %v2325 = vsub.s32 0, %v2324
    %v2326 = vrot.slane %v2322, %v2325
    %v2327 = vmul.f32 %v2326, %v2285
    %v2328 = vmul.f32 %v2326, %v2286
    %v2329 = vmul.f32 %v2326, %v2287
    %v2330 = vmul.f32 %v2326, %v2288
    %v2331 = vmul.f32 %v2326, %v2289
    %v2332 = vmul.f32 %v2326, %v2290
    %v2333 = vmul.f32 %v2326, %v2291
    %v2334 = vmul.f32 %v2326, %v2292
    %v2335 = vmul.f32 %v2326, %v2293
    %v2336 = vmul.f32 %v2326, %v2294
    %v2337 = vmul.f32 %v2326, %v2295
    %v2338 = vmul.f32 %v2326, %v2296
    %v2339 = vmul.f32 %v2326, %v2297
    %v2340 = vmul.f32 %v2326, %v2298
    %v2341 = vmul.f32 %v2326, %v2320
    %v2342 = vmul.f32 %v2326, %v2321
    %v2343 = vadd.f32 %v2304, %v2327
    %v2344 = vadd.f32 %v2305, %v2328
    %v2345 = vadd.f32 %v2306, %v2329
    %v2346 = vadd.f32 %v2307, %v2330
    %v2347 = vadd.f32 %v2308, %v2331
    %v2348 = vadd.f32 %v2309, %v2332
    %v2349 = vadd.f32 %v2310, %v2333
    %v2350 = vadd.f32 %v2311, %v2334
    %v2351 = vadd.f32 %v2312, %v2335
    %v2352 = vadd.f32 %v2313, %v2336
    %v2353 = vadd.f32 %v2314, %v2337
    %v2354 = vadd.f32 %v2315, %v2338
    %v2355 = vadd.f32 %v2316, %v2339
    %v2356 = vadd.f32 %v2317, %v2340
    %v2357 = vadd.f32 %v2318, %v2341
    %v2358 = vadd.f32 %v2319, %v2342
    %v2359 = vld [vmem:[#allocation2 + $0xc2] sm:$0xff]
    %v2360 = vld [vmem:[#allocation2 + $0xca] sm:$0xff]
    %v2361 = vld [vmem:[%s1 + $0x1d] sm:$0x1]
    %v2362 = vlaneseq
    %v2363 = vshrl.u32 %v2362, 7
    %v2364 = vsub.s32 0, %v2363
    %v2365 = vrot.slane %v2361, %v2364
    %v2366 = vmul.f32 %v2365, %v2287
    %v2367 = vmul.f32 %v2365, %v2288
    %v2368 = vmul.f32 %v2365, %v2289
    %v2369 = vmul.f32 %v2365, %v2290
    %v2370 = vmul.f32 %v2365, %v2291
    %v2371 = vmul.f32 %v2365, %v2292
    %v2372 = vmul.f32 %v2365, %v2293
    %v2373 = vmul.f32 %v2365, %v2294
    %v2374 = vmul.f32 %v2365, %v2295
    %v2375 = vmul.f32 %v2365, %v2296
    %v2376 = vmul.f32 %v2365, %v2297
    %v2377 = vmul.f32 %v2365, %v2298
    %v2378 = vmul.f32 %v2365, %v2320
    %v2379 = vmul.f32 %v2365, %v2321
    %v2380 = vmul.f32 %v2365, %v2359
    %v2381 = vmul.f32 %v2365, %v2360
    %v2382 = vadd.f32 %v2343, %v2366
    %v2383 = vadd.f32 %v2344, %v2367
    %v2384 = vadd.f32 %v2345, %v2368
    %v2385 = vadd.f32 %v2346, %v2369
    %v2386 = vadd.f32 %v2347, %v2370
    %v2387 = vadd.f32 %v2348, %v2371
    %v2388 = vadd.f32 %v2349, %v2372
    %v2389 = vadd.f32 %v2350, %v2373
    %v2390 = vadd.f32 %v2351, %v2374
    %v2391 = vadd.f32 %v2352, %v2375
    %v2392 = vadd.f32 %v2353, %v2376
    %v2393 = vadd.f32 %v2354, %v2377
    %v2394 = vadd.f32 %v2355, %v2378
    %v2395 = vadd.f32 %v2356, %v2379
    %v2396 = vadd.f32 %v2357, %v2380
    %v2397 = vadd.f32 %v2358, %v2381
    %v2398 = vsel %vm568, 1, 0
    %v2399 = vsel %vm569, 1, 0
    %v2400 = vsel %vm570, 1, 0
    %v2401 = vsel %vm571, 1, 0
    %v2402 = vsel %vm572, 1, 0
    %v2403 = vsel %vm573, 1, 0
    %v2404 = vsel %vm574, 1, 0
    %v2405 = vsel %vm575, 1, 0
    %v2406 = vsel %vm576, 1, 0
    %v2407 = vsel %vm577, 1, 0
    %v2408 = vsel %vm578, 1, 0
    %v2409 = vsel %vm579, 1, 0
    %v2410 = vsel %vm580, 1, 0
    %v2411 = vsel %vm581, 1, 0
    %v2412 = vsel %vm582, 1, 0
    %v2413 = vsel %vm583, 1, 0
    %vm2414 = vcmp.eq.s32.totalorder %v2398, 1
    %vm2415 = vcmp.eq.s32.totalorder %v2399, 1
    %vm2416 = vcmp.eq.s32.totalorder %v2400, 1
    %vm2417 = vcmp.eq.s32.totalorder %v2401, 1
    %vm2418 = vcmp.eq.s32.totalorder %v2402, 1
    %vm2419 = vcmp.eq.s32.totalorder %v2403, 1
    %vm2420 = vcmp.eq.s32.totalorder %v2404, 1
    %vm2421 = vcmp.eq.s32.totalorder %v2405, 1
    %vm2422 = vcmp.eq.s32.totalorder %v2406, 1
    %vm2423 = vcmp.eq.s32.totalorder %v2407, 1
    %vm2424 = vcmp.eq.s32.totalorder %v2408, 1
    %vm2425 = vcmp.eq.s32.totalorder %v2409, 1
    %vm2426 = vcmp.eq.s32.totalorder %v2410, 1
    %vm2427 = vcmp.eq.s32.totalorder %v2411, 1
    %vm2428 = vcmp.eq.s32.totalorder %v2412, 1
    %vm2429 = vcmp.eq.s32.totalorder %v2413, 1
    %v2430 = vsel %vm2414, %v2382, 0.0
    %v2431 = vsel %vm2415, %v2383, 0.0
    %v2432 = vsel %vm2416, %v2384, 0.0
    %v2433 = vsel %vm2417, %v2385, 0.0
    %v2434 = vsel %vm2418, %v2386, 0.0
    %v2435 = vsel %vm2419, %v2387, 0.0
    %v2436 = vsel %vm2420, %v2388, 0.0
    %v2437 = vsel %vm2421, %v2389, 0.0
    %v2438 = vsel %vm2422, %v2390, 0.0
    %v2439 = vsel %vm2423, %v2391, 0.0
    %v2440 = vsel %vm2424, %v2392, 0.0
    %v2441 = vsel %vm2425, %v2393, 0.0
    %v2442 = vsel %vm2426, %v2394, 0.0
    %v2443 = vsel %vm2427, %v2395, 0.0
    %v2444 = vsel %vm2428, %v2396, 0.0
    %v2445 = vsel %vm2429, %v2397, 0.0
    %v2446 = vadd.f32 %v2267, %v2430
    %v2447 = vadd.f32 %v2268, %v2431
    %v2448 = vadd.f32 %v2269, %v2432
    %v2449 = vadd.f32 %v2270, %v2433
    %v2450 = vadd.f32 %v2271, %v2434
    %v2451 = vadd.f32 %v2272, %v2435
    %v2452 = vadd.f32 %v2273, %v2436
    %v2453 = vadd.f32 %v2274, %v2437
    %v2454 = vadd.f32 %v2275, %v2438
    %v2455 = vadd.f32 %v2276, %v2439
    %v2456 = vadd.f32 %v2277, %v2440
    %v2457 = vadd.f32 %v2278, %v2441
    %v2458 = vadd.f32 %v2279, %v2442
    %v2459 = vadd.f32 %v2280, %v2443
    %v2460 = vadd.f32 %v2281, %v2444
    %v2461 = vadd.f32 %v2282, %v2445
    %v2462 = vld [vmem:[#allocation2 + $0x33] sm:$0xff]
    %v2463 = vld [vmem:[#allocation2 + $0x3b] sm:$0xff]
    %v2464 = vld [vmem:[#allocation2 + $0x43] sm:$0xff]
    %v2465 = vld [vmem:[#allocation2 + $0x4b] sm:$0xff]
    %v2466 = vld [vmem:[#allocation2 + $0x53] sm:$0xff]
    %v2467 = vld [vmem:[#allocation2 + $0x5b] sm:$0xff]
    %v2468 = vld [vmem:[#allocation2 + $0x63] sm:$0xff]
    %v2469 = vld [vmem:[#allocation2 + $0x6b] sm:$0xff]
    %v2470 = vld [vmem:[#allocation2 + $0x73] sm:$0xff]
    %v2471 = vld [vmem:[#allocation2 + $0x7b] sm:$0xff]
    %v2472 = vld [vmem:[#allocation2 + $0x83] sm:$0xff]
    %v2473 = vld [vmem:[#allocation2 + $0x8b] sm:$0xff]
    %v2474 = vld [vmem:[#allocation2 + $0x93] sm:$0xff]
    %v2475 = vld [vmem:[#allocation2 + $0x9b] sm:$0xff]
    %v2476 = vld [vmem:[#allocation2 + $0xa3] sm:$0xff]
    %v2477 = vld [vmem:[#allocation2 + $0xab] sm:$0xff]
    %v2478 = vld [vmem:[%s1 + $0xc] sm:$0x1]
    %v2479 = vlaneseq
    %v2480 = vshrl.u32 %v2479, 7
    %v2481 = vsub.s32 0, %v2480
    %v2482 = vrot.slane %v2478, %v2481
    %v2483 = vmul.f32 %v2482, %v2462
    %v2484 = vmul.f32 %v2482, %v2463
    %v2485 = vmul.f32 %v2482, %v2464
    %v2486 = vmul.f32 %v2482, %v2465
    %v2487 = vmul.f32 %v2482, %v2466
    %v2488 = vmul.f32 %v2482, %v2467
    %v2489 = vmul.f32 %v2482, %v2468
    %v2490 = vmul.f32 %v2482, %v2469
    %v2491 = vmul.f32 %v2482, %v2470
    %v2492 = vmul.f32 %v2482, %v2471
    %v2493 = vmul.f32 %v2482, %v2472
    %v2494 = vmul.f32 %v2482, %v2473
    %v2495 = vmul.f32 %v2482, %v2474
    %v2496 = vmul.f32 %v2482, %v2475
    %v2497 = vmul.f32 %v2482, %v2476
    %v2498 = vmul.f32 %v2482, %v2477
    %v2499 = vld [vmem:[#allocation2 + $0xb3] sm:$0xff]
    %v2500 = vld [vmem:[#allocation2 + $0xbb] sm:$0xff]
    %v2501 = vld [vmem:[%s1 + $0x15] sm:$0x1]
    %v2502 = vlaneseq
    %v2503 = vshrl.u32 %v2502, 7
    %v2504 = vsub.s32 0, %v2503
    %v2505 = vrot.slane %v2501, %v2504
    %v2506 = vmul.f32 %v2505, %v2464
    %v2507 = vmul.f32 %v2505, %v2465
    %v2508 = vmul.f32 %v2505, %v2466
    %v2509 = vmul.f32 %v2505, %v2467
    %v2510 = vmul.f32 %v2505, %v2468
    %v2511 = vmul.f32 %v2505, %v2469
    %v2512 = vmul.f32 %v2505, %v2470
    %v2513 = vmul.f32 %v2505, %v2471
    %v2514 = vmul.f32 %v2505, %v2472
    %v2515 = vmul.f32 %v2505, %v2473
    %v2516 = vmul.f32 %v2505, %v2474
    %v2517 = vmul.f32 %v2505, %v2475
    %v2518 = vmul.f32 %v2505, %v2476
    %v2519 = vmul.f32 %v2505, %v2477
    %v2520 = vmul.f32 %v2505, %v2499
    %v2521 = vmul.f32 %v2505, %v2500
    %v2522 = vadd.f32 %v2483, %v2506
    %v2523 = vadd.f32 %v2484, %v2507
    %v2524 = vadd.f32 %v2485, %v2508
    %v2525 = vadd.f32 %v2486, %v2509
    %v2526 = vadd.f32 %v2487, %v2510
    %v2527 = vadd.f32 %v2488, %v2511
    %v2528 = vadd.f32 %v2489, %v2512
    %v2529 = vadd.f32 %v2490, %v2513
    %v2530 = vadd.f32 %v2491, %v2514
    %v2531 = vadd.f32 %v2492, %v2515
    %v2532 = vadd.f32 %v2493, %v2516
    %v2533 = vadd.f32 %v2494, %v2517
    %v2534 = vadd.f32 %v2495, %v2518
    %v2535 = vadd.f32 %v2496, %v2519
    %v2536 = vadd.f32 %v2497, %v2520
    %v2537 = vadd.f32 %v2498, %v2521
    %v2538 = vld [vmem:[#allocation2 + $0xc3] sm:$0xff]
    %v2539 = vld [vmem:[#allocation2 + $0xcb] sm:$0xff]
    %v2540 = vld [vmem:[%s1 + $0x1e] sm:$0x1]
    %v2541 = vlaneseq
    %v2542 = vshrl.u32 %v2541, 7
    %v2543 = vsub.s32 0, %v2542
    %v2544 = vrot.slane %v2540, %v2543
    %v2545 = vmul.f32 %v2544, %v2466
    %v2546 = vmul.f32 %v2544, %v2467
    %v2547 = vmul.f32 %v2544, %v2468
    %v2548 = vmul.f32 %v2544, %v2469
    %v2549 = vmul.f32 %v2544, %v2470
    %v2550 = vmul.f32 %v2544, %v2471
    %v2551 = vmul.f32 %v2544, %v2472
    %v2552 = vmul.f32 %v2544, %v2473
    %v2553 = vmul.f32 %v2544, %v2474
    %v2554 = vmul.f32 %v2544, %v2475
    %v2555 = vmul.f32 %v2544, %v2476
    %v2556 = vmul.f32 %v2544, %v2477
    %v2557 = vmul.f32 %v2544, %v2499
    %v2558 = vmul.f32 %v2544, %v2500
    %v2559 = vmul.f32 %v2544, %v2538
    %v2560 = vmul.f32 %v2544, %v2539
    %v2561 = vadd.f32 %v2522, %v2545
    %v2562 = vadd.f32 %v2523, %v2546
    %v2563 = vadd.f32 %v2524, %v2547
    %v2564 = vadd.f32 %v2525, %v2548
    %v2565 = vadd.f32 %v2526, %v2549
    %v2566 = vadd.f32 %v2527, %v2550
    %v2567 = vadd.f32 %v2528, %v2551
    %v2568 = vadd.f32 %v2529, %v2552
    %v2569 = vadd.f32 %v2530, %v2553
    %v2570 = vadd.f32 %v2531, %v2554
    %v2571 = vadd.f32 %v2532, %v2555
    %v2572 = vadd.f32 %v2533, %v2556
    %v2573 = vadd.f32 %v2534, %v2557
    %v2574 = vadd.f32 %v2535, %v2558
    %v2575 = vadd.f32 %v2536, %v2559
    %v2576 = vadd.f32 %v2537, %v2560
    %v2577 = vsel %vm616, 1, 0
    %v2578 = vsel %vm617, 1, 0
    %v2579 = vsel %vm618, 1, 0
    %v2580 = vsel %vm619, 1, 0
    %v2581 = vsel %vm620, 1, 0
    %v2582 = vsel %vm621, 1, 0
    %v2583 = vsel %vm622, 1, 0
    %v2584 = vsel %vm623, 1, 0
    %v2585 = vsel %vm624, 1, 0
    %v2586 = vsel %vm625, 1, 0
    %v2587 = vsel %vm626, 1, 0
    %v2588 = vsel %vm627, 1, 0
    %v2589 = vsel %vm628, 1, 0
    %v2590 = vsel %vm629, 1, 0
    %v2591 = vsel %vm630, 1, 0
    %v2592 = vsel %vm631, 1, 0
    %vm2593 = vcmp.eq.s32.totalorder %v2577, 1
    %vm2594 = vcmp.eq.s32.totalorder %v2578, 1
    %vm2595 = vcmp.eq.s32.totalorder %v2579, 1
    %vm2596 = vcmp.eq.s32.totalorder %v2580, 1
    %vm2597 = vcmp.eq.s32.totalorder %v2581, 1
    %vm2598 = vcmp.eq.s32.totalorder %v2582, 1
    %vm2599 = vcmp.eq.s32.totalorder %v2583, 1
    %vm2600 = vcmp.eq.s32.totalorder %v2584, 1
    %vm2601 = vcmp.eq.s32.totalorder %v2585, 1
    %vm2602 = vcmp.eq.s32.totalorder %v2586, 1
    %vm2603 = vcmp.eq.s32.totalorder %v2587, 1
    %vm2604 = vcmp.eq.s32.totalorder %v2588, 1
    %vm2605 = vcmp.eq.s32.totalorder %v2589, 1
    %vm2606 = vcmp.eq.s32.totalorder %v2590, 1
    %vm2607 = vcmp.eq.s32.totalorder %v2591, 1
    %vm2608 = vcmp.eq.s32.totalorder %v2592, 1
    %v2609 = vsel %vm2593, %v2561, 0.0
    %v2610 = vsel %vm2594, %v2562, 0.0
    %v2611 = vsel %vm2595, %v2563, 0.0
    %v2612 = vsel %vm2596, %v2564, 0.0
    %v2613 = vsel %vm2597, %v2565, 0.0
    %v2614 = vsel %vm2598, %v2566, 0.0
    %v2615 = vsel %vm2599, %v2567, 0.0
    %v2616 = vsel %vm2600, %v2568, 0.0
    %v2617 = vsel %vm2601, %v2569, 0.0
    %v2618 = vsel %vm2602, %v2570, 0.0
    %v2619 = vsel %vm2603, %v2571, 0.0
    %v2620 = vsel %vm2604, %v2572, 0.0
    %v2621 = vsel %vm2605, %v2573, 0.0
    %v2622 = vsel %vm2606, %v2574, 0.0
    %v2623 = vsel %vm2607, %v2575, 0.0
    %v2624 = vsel %vm2608, %v2576, 0.0
    %v2625 = vadd.f32 %v2446, %v2609
    %v2626 = vadd.f32 %v2447, %v2610
    %v2627 = vadd.f32 %v2448, %v2611
    %v2628 = vadd.f32 %v2449, %v2612
    %v2629 = vadd.f32 %v2450, %v2613
    %v2630 = vadd.f32 %v2451, %v2614
    %v2631 = vadd.f32 %v2452, %v2615
    %v2632 = vadd.f32 %v2453, %v2616
    %v2633 = vadd.f32 %v2454, %v2617
    %v2634 = vadd.f32 %v2455, %v2618
    %v2635 = vadd.f32 %v2456, %v2619
    %v2636 = vadd.f32 %v2457, %v2620
    %v2637 = vadd.f32 %v2458, %v2621
    %v2638 = vadd.f32 %v2459, %v2622
    %v2639 = vadd.f32 %v2460, %v2623
    %v2640 = vadd.f32 %v2461, %v2624
    %v2641 = vld [vmem:[#allocation2 + $0x34] sm:$0xff]
    %v2642 = vld [vmem:[#allocation2 + $0x3c] sm:$0xff]
    %v2643 = vld [vmem:[#allocation2 + $0x44] sm:$0xff]
    %v2644 = vld [vmem:[#allocation2 + $0x4c] sm:$0xff]
    %v2645 = vld [vmem:[#allocation2 + $0x54] sm:$0xff]
    %v2646 = vld [vmem:[#allocation2 + $0x5c] sm:$0xff]
    %v2647 = vld [vmem:[#allocation2 + $0x64] sm:$0xff]
    %v2648 = vld [vmem:[#allocation2 + $0x6c] sm:$0xff]
    %v2649 = vld [vmem:[#allocation2 + $0x74] sm:$0xff]
    %v2650 = vld [vmem:[#allocation2 + $0x7c] sm:$0xff]
    %v2651 = vld [vmem:[#allocation2 + $0x84] sm:$0xff]
    %v2652 = vld [vmem:[#allocation2 + $0x8c] sm:$0xff]
    %v2653 = vld [vmem:[#allocation2 + $0x94] sm:$0xff]
    %v2654 = vld [vmem:[#allocation2 + $0x9c] sm:$0xff]
    %v2655 = vld [vmem:[#allocation2 + $0xa4] sm:$0xff]
    %v2656 = vld [vmem:[#allocation2 + $0xac] sm:$0xff]
    %v2657 = vld [vmem:[%s1 + $0xd] sm:$0x1]
    %v2658 = vlaneseq
    %v2659 = vshrl.u32 %v2658, 7
    %v2660 = vsub.s32 0, %v2659
    %v2661 = vrot.slane %v2657, %v2660
    %v2662 = vmul.f32 %v2661, %v2641
    %v2663 = vmul.f32 %v2661, %v2642
    %v2664 = vmul.f32 %v2661, %v2643
    %v2665 = vmul.f32 %v2661, %v2644
    %v2666 = vmul.f32 %v2661, %v2645
    %v2667 = vmul.f32 %v2661, %v2646
    %v2668 = vmul.f32 %v2661, %v2647
    %v2669 = vmul.f32 %v2661, %v2648
    %v2670 = vmul.f32 %v2661, %v2649
    %v2671 = vmul.f32 %v2661, %v2650
    %v2672 = vmul.f32 %v2661, %v2651
    %v2673 = vmul.f32 %v2661, %v2652
    %v2674 = vmul.f32 %v2661, %v2653
    %v2675 = vmul.f32 %v2661, %v2654
    %v2676 = vmul.f32 %v2661, %v2655
    %v2677 = vmul.f32 %v2661, %v2656
    %v2678 = vld [vmem:[#allocation2 + $0xb4] sm:$0xff]
    %v2679 = vld [vmem:[#allocation2 + $0xbc] sm:$0xff]
    %v2680 = vld [vmem:[%s1 + $0x16] sm:$0x1]
    %v2681 = vlaneseq
    %v2682 = vshrl.u32 %v2681, 7
    %v2683 = vsub.s32 0, %v2682
    %v2684 = vrot.slane %v2680, %v2683
    %v2685 = vmul.f32 %v2684, %v2643
    %v2686 = vmul.f32 %v2684, %v2644
    %v2687 = vmul.f32 %v2684, %v2645
    %v2688 = vmul.f32 %v2684, %v2646
    %v2689 = vmul.f32 %v2684, %v2647
    %v2690 = vmul.f32 %v2684, %v2648
    %v2691 = vmul.f32 %v2684, %v2649
    %v2692 = vmul.f32 %v2684, %v2650
    %v2693 = vmul.f32 %v2684, %v2651
    %v2694 = vmul.f32 %v2684, %v2652
    %v2695 = vmul.f32 %v2684, %v2653
    %v2696 = vmul.f32 %v2684, %v2654
    %v2697 = vmul.f32 %v2684, %v2655
    %v2698 = vmul.f32 %v2684, %v2656
    %v2699 = vmul.f32 %v2684, %v2678
    %v2700 = vmul.f32 %v2684, %v2679
    %v2701 = vadd.f32 %v2662, %v2685
    %v2702 = vadd.f32 %v2663, %v2686
    %v2703 = vadd.f32 %v2664, %v2687
    %v2704 = vadd.f32 %v2665, %v2688
    %v2705 = vadd.f32 %v2666, %v2689
    %v2706 = vadd.f32 %v2667, %v2690
    %v2707 = vadd.f32 %v2668, %v2691
    %v2708 = vadd.f32 %v2669, %v2692
    %v2709 = vadd.f32 %v2670, %v2693
    %v2710 = vadd.f32 %v2671, %v2694
    %v2711 = vadd.f32 %v2672, %v2695
    %v2712 = vadd.f32 %v2673, %v2696
    %v2713 = vadd.f32 %v2674, %v2697
    %v2714 = vadd.f32 %v2675, %v2698
    %v2715 = vadd.f32 %v2676, %v2699
    %v2716 = vadd.f32 %v2677, %v2700
    %v2717 = vld [vmem:[#allocation2 + $0xc4] sm:$0xff]
    %v2718 = vld [vmem:[#allocation2 + $0xcc] sm:$0xff]
    %v2719 = vld [vmem:[%s1 + $0x1f] sm:$0x1]
    %v2720 = vlaneseq
    %v2721 = vshrl.u32 %v2720, 7
    %v2722 = vsub.s32 0, %v2721
    %v2723 = vrot.slane %v2719, %v2722
    %v2724 = vmul.f32 %v2723, %v2645
    %v2725 = vmul.f32 %v2723, %v2646
    %v2726 = vmul.f32 %v2723, %v2647
    %v2727 = vmul.f32 %v2723, %v2648
    %v2728 = vmul.f32 %v2723, %v2649
    %v2729 = vmul.f32 %v2723, %v2650
    %v2730 = vmul.f32 %v2723, %v2651
    %v2731 = vmul.f32 %v2723, %v2652
    %v2732 = vmul.f32 %v2723, %v2653
    %v2733 = vmul.f32 %v2723, %v2654
    %v2734 = vmul.f32 %v2723, %v2655
    %v2735 = vmul.f32 %v2723, %v2656
    %v2736 = vmul.f32 %v2723, %v2678
    %v2737 = vmul.f32 %v2723, %v2679
    %v2738 = vmul.f32 %v2723, %v2717
    %v2739 = vmul.f32 %v2723, %v2718
    %v2740 = vadd.f32 %v2701, %v2724
    %v2741 = vadd.f32 %v2702, %v2725
    %v2742 = vadd.f32 %v2703, %v2726
    %v2743 = vadd.f32 %v2704, %v2727
    %v2744 = vadd.f32 %v2705, %v2728
    %v2745 = vadd.f32 %v2706, %v2729
    %v2746 = vadd.f32 %v2707, %v2730
    %v2747 = vadd.f32 %v2708, %v2731
    %v2748 = vadd.f32 %v2709, %v2732
    %v2749 = vadd.f32 %v2710, %v2733
    %v2750 = vadd.f32 %v2711, %v2734
    %v2751 = vadd.f32 %v2712, %v2735
    %v2752 = vadd.f32 %v2713, %v2736
    %v2753 = vadd.f32 %v2714, %v2737
    %v2754 = vadd.f32 %v2715, %v2738
    %v2755 = vadd.f32 %v2716, %v2739
    %v2756 = vsel %vm664, 1, 0
    %v2757 = vsel %vm665, 1, 0
    %v2758 = vsel %vm666, 1, 0
    %v2759 = vsel %vm667, 1, 0
    %v2760 = vsel %vm668, 1, 0
    %v2761 = vsel %vm669, 1, 0
    %v2762 = vsel %vm670, 1, 0
    %v2763 = vsel %vm671, 1, 0
    %v2764 = vsel %vm672, 1, 0
    %v2765 = vsel %vm673, 1, 0
    %v2766 = vsel %vm674, 1, 0
    %v2767 = vsel %vm675, 1, 0
    %v2768 = vsel %vm676, 1, 0
    %v2769 = vsel %vm677, 1, 0
    %v2770 = vsel %vm678, 1, 0
    %v2771 = vsel %vm679, 1, 0
    %vm2772 = vcmp.eq.s32.totalorder %v2756, 1
    %vm2773 = vcmp.eq.s32.totalorder %v2757, 1
    %vm2774 = vcmp.eq.s32.totalorder %v2758, 1
    %vm2775 = vcmp.eq.s32.totalorder %v2759, 1
    %vm2776 = vcmp.eq.s32.totalorder %v2760, 1
    %vm2777 = vcmp.eq.s32.totalorder %v2761, 1
    %vm2778 = vcmp.eq.s32.totalorder %v2762, 1
    %vm2779 = vcmp.eq.s32.totalorder %v2763, 1
    %vm2780 = vcmp.eq.s32.totalorder %v2764, 1
    %vm2781 = vcmp.eq.s32.totalorder %v2765, 1
    %vm2782 = vcmp.eq.s32.totalorder %v2766, 1
    %vm2783 = vcmp.eq.s32.totalorder %v2767, 1
    %vm2784 = vcmp.eq.s32.totalorder %v2768, 1
    %vm2785 = vcmp.eq.s32.totalorder %v2769, 1
    %vm2786 = vcmp.eq.s32.totalorder %v2770, 1
    %vm2787 = vcmp.eq.s32.totalorder %v2771, 1
    %v2788 = vsel %vm2772, %v2740, 0.0
    %v2789 = vsel %vm2773, %v2741, 0.0
    %v2790 = vsel %vm2774, %v2742, 0.0
    %v2791 = vsel %vm2775, %v2743, 0.0
    %v2792 = vsel %vm2776, %v2744, 0.0
    %v2793 = vsel %vm2777, %v2745, 0.0
    %v2794 = vsel %vm2778, %v2746, 0.0
    %v2795 = vsel %vm2779, %v2747, 0.0
    %v2796 = vsel %vm2780, %v2748, 0.0
    %v2797 = vsel %vm2781, %v2749, 0.0
    %v2798 = vsel %vm2782, %v2750, 0.0
    %v2799 = vsel %vm2783, %v2751, 0.0
    %v2800 = vsel %vm2784, %v2752, 0.0
    %v2801 = vsel %vm2785, %v2753, 0.0
    %v2802 = vsel %vm2786, %v2754, 0.0
    %v2803 = vsel %vm2787, %v2755, 0.0
    %v2804 = vadd.f32 %v2625, %v2788
    %v2805 = vadd.f32 %v2626, %v2789
    %v2806 = vadd.f32 %v2627, %v2790
    %v2807 = vadd.f32 %v2628, %v2791
    %v2808 = vadd.f32 %v2629, %v2792
    %v2809 = vadd.f32 %v2630, %v2793
    %v2810 = vadd.f32 %v2631, %v2794
    %v2811 = vadd.f32 %v2632, %v2795
    %v2812 = vadd.f32 %v2633, %v2796
    %v2813 = vadd.f32 %v2634, %v2797
    %v2814 = vadd.f32 %v2635, %v2798
    %v2815 = vadd.f32 %v2636, %v2799
    %v2816 = vadd.f32 %v2637, %v2800
    %v2817 = vadd.f32 %v2638, %v2801
    %v2818 = vadd.f32 %v2639, %v2802
    %v2819 = vadd.f32 %v2640, %v2803
    %v2820 = vld [vmem:[%s1 + $0xe] sm:$0x1]
    %v2821 = vlaneseq
    %v2822 = vshrl.u32 %v2821, 7
    %v2823 = vsub.s32 0, %v2822
    %v2824 = vrot.slane %v2820, %v2823
    %v2825 = vmul.f32 %v2824, %v735
    %v2826 = vmul.f32 %v2824, %v736
    %v2827 = vmul.f32 %v2824, %v737
    %v2828 = vmul.f32 %v2824, %v738
    %v2829 = vmul.f32 %v2824, %v739
    %v2830 = vmul.f32 %v2824, %v740
    %v2831 = vmul.f32 %v2824, %v741
    %v2832 = vmul.f32 %v2824, %v742
    %v2833 = vmul.f32 %v2824, %v743
    %v2834 = vmul.f32 %v2824, %v744
    %v2835 = vmul.f32 %v2824, %v745
    %v2836 = vmul.f32 %v2824, %v746
    %v2837 = vmul.f32 %v2824, %v747
    %v2838 = vmul.f32 %v2824, %v748
    %v2839 = vmul.f32 %v2824, %v749
    %v2840 = vmul.f32 %v2824, %v771
    %v2841 = vld [vmem:[%s1 + $0x17] sm:$0x1]
    %v2842 = vlaneseq
    %v2843 = vshrl.u32 %v2842, 7
    %v2844 = vsub.s32 0, %v2843
    %v2845 = vrot.slane %v2841, %v2844
    %v2846 = vmul.f32 %v2845, %v737
    %v2847 = vmul.f32 %v2845, %v738
    %v2848 = vmul.f32 %v2845, %v739
    %v2849 = vmul.f32 %v2845, %v740
    %v2850 = vmul.f32 %v2845, %v741
    %v2851 = vmul.f32 %v2845, %v742
    %v2852 = vmul.f32 %v2845, %v743
    %v2853 = vmul.f32 %v2845, %v744
    %v2854 = vmul.f32 %v2845, %v745
    %v2855 = vmul.f32 %v2845, %v746
    %v2856 = vmul.f32 %v2845, %v747
    %v2857 = vmul.f32 %v2845, %v748
    %v2858 = vmul.f32 %v2845, %v749
    %v2859 = vmul.f32 %v2845, %v771
    %v2860 = vmul.f32 %v2845, %v772
    %v2861 = vmul.f32 %v2845, %v810
    %v2862 = vadd.f32 %v2825, %v2846
    %v2863 = vadd.f32 %v2826, %v2847
    %v2864 = vadd.f32 %v2827, %v2848
    %v2865 = vadd.f32 %v2828, %v2849
    %v2866 = vadd.f32 %v2829, %v2850
    %v2867 = vadd.f32 %v2830, %v2851
    %v2868 = vadd.f32 %v2831, %v2852
    %v2869 = vadd.f32 %v2832, %v2853
    %v2870 = vadd.f32 %v2833, %v2854
    %v2871 = vadd.f32 %v2834, %v2855
    %v2872 = vadd.f32 %v2835, %v2856
    %v2873 = vadd.f32 %v2836, %v2857
    %v2874 = vadd.f32 %v2837, %v2858
    %v2875 = vadd.f32 %v2838, %v2859
    %v2876 = vadd.f32 %v2839, %v2860
    %v2877 = vadd.f32 %v2840, %v2861
    %v2878 = vld [vmem:[#allocation2 + $0xcd] sm:$0xff]
    %v2879 = vld [vmem:[%s1 + $0x20] sm:$0x1]
    %v2880 = vlaneseq
    %v2881 = vshrl.u32 %v2880, 7
    %v2882 = vsub.s32 0, %v2881
    %v2883 = vrot.slane %v2879, %v2882
    %v2884 = vmul.f32 %v2883, %v739
    %v2885 = vmul.f32 %v2883, %v740
    %v2886 = vmul.f32 %v2883, %v741
    %v2887 = vmul.f32 %v2883, %v742
    %v2888 = vmul.f32 %v2883, %v743
    %v2889 = vmul.f32 %v2883, %v744
    %v2890 = vmul.f32 %v2883, %v745
    %v2891 = vmul.f32 %v2883, %v746
    %v2892 = vmul.f32 %v2883, %v747
    %v2893 = vmul.f32 %v2883, %v748
    %v2894 = vmul.f32 %v2883, %v749
    %v2895 = vmul.f32 %v2883, %v771
    %v2896 = vmul.f32 %v2883, %v772
    %v2897 = vmul.f32 %v2883, %v810
    %v2898 = vmul.f32 %v2883, %v811
    %v2899 = vmul.f32 %v2883, %v2878
    %v2900 = vadd.f32 %v2862, %v2884
    %v2901 = vadd.f32 %v2863, %v2885
    %v2902 = vadd.f32 %v2864, %v2886
    %v2903 = vadd.f32 %v2865, %v2887
    %v2904 = vadd.f32 %v2866, %v2888
    %v2905 = vadd.f32 %v2867, %v2889
    %v2906 = vadd.f32 %v2868, %v2890
    %v2907 = vadd.f32 %v2869, %v2891
    %v2908 = vadd.f32 %v2870, %v2892
    %v2909 = vadd.f32 %v2871, %v2893
    %v2910 = vadd.f32 %v2872, %v2894
    %v2911 = vadd.f32 %v2873, %v2895
    %v2912 = vadd.f32 %v2874, %v2896
    %v2913 = vadd.f32 %v2875, %v2897
    %v2914 = vadd.f32 %v2876, %v2898
    %v2915 = vadd.f32 %v2877, %v2899
    %v2916 = vsel %vm712, 1, 0
    %v2917 = vsel %vm713, 1, 0
    %v2918 = vsel %vm714, 1, 0
    %v2919 = vsel %vm715, 1, 0
    %v2920 = vsel %vm716, 1, 0
    %v2921 = vsel %vm717, 1, 0
    %v2922 = vsel %vm718, 1, 0
    %v2923 = vsel %vm719, 1, 0
    %v2924 = vsel %vm720, 1, 0
    %v2925 = vsel %vm721, 1, 0
    %v2926 = vsel %vm722, 1, 0
    %v2927 = vsel %vm723, 1, 0
    %v2928 = vsel %vm724, 1, 0
    %v2929 = vsel %vm725, 1, 0
    %v2930 = vsel %vm726, 1, 0
    %v2931 = vsel %vm727, 1, 0
    %vm2932 = vcmp.eq.s32.totalorder %v2916, 1
    %vm2933 = vcmp.eq.s32.totalorder %v2917, 1
    %vm2934 = vcmp.eq.s32.totalorder %v2918, 1
    %vm2935 = vcmp.eq.s32.totalorder %v2919, 1
    %vm2936 = vcmp.eq.s32.totalorder %v2920, 1
    %vm2937 = vcmp.eq.s32.totalorder %v2921, 1
    %vm2938 = vcmp.eq.s32.totalorder %v2922, 1
    %vm2939 = vcmp.eq.s32.totalorder %v2923, 1
    %vm2940 = vcmp.eq.s32.totalorder %v2924, 1
    %vm2941 = vcmp.eq.s32.totalorder %v2925, 1
    %vm2942 = vcmp.eq.s32.totalorder %v2926, 1
    %vm2943 = vcmp.eq.s32.totalorder %v2927, 1
    %vm2944 = vcmp.eq.s32.totalorder %v2928, 1
    %vm2945 = vcmp.eq.s32.totalorder %v2929, 1
    %vm2946 = vcmp.eq.s32.totalorder %v2930, 1
    %vm2947 = vcmp.eq.s32.totalorder %v2931, 1
    %v2948 = vsel %vm2932, %v2900, 0.0
    %v2949 = vsel %vm2933, %v2901, 0.0
    %v2950 = vsel %vm2934, %v2902, 0.0
    %v2951 = vsel %vm2935, %v2903, 0.0
    %v2952 = vsel %vm2936, %v2904, 0.0
    %v2953 = vsel %vm2937, %v2905, 0.0
    %v2954 = vsel %vm2938, %v2906, 0.0
    %v2955 = vsel %vm2939, %v2907, 0.0
    %v2956 = vsel %vm2940, %v2908, 0.0
    %v2957 = vsel %vm2941, %v2909, 0.0
    %v2958 = vsel %vm2942, %v2910, 0.0
    %v2959 = vsel %vm2943, %v2911, 0.0
    %v2960 = vsel %vm2944, %v2912, 0.0
    %v2961 = vsel %vm2945, %v2913, 0.0
    %v2962 = vsel %vm2946, %v2914, 0.0
    %v2963 = vsel %vm2947, %v2915, 0.0
    %v2964 = vadd.f32 %v2804, %v2948
    %v2965 = vadd.f32 %v2805, %v2949
    %v2966 = vadd.f32 %v2806, %v2950
    %v2967 = vadd.f32 %v2807, %v2951
    %v2968 = vadd.f32 %v2808, %v2952
    %v2969 = vadd.f32 %v2809, %v2953
    %v2970 = vadd.f32 %v2810, %v2954
    %v2971 = vadd.f32 %v2811, %v2955
    %v2972 = vadd.f32 %v2812, %v2956
    %v2973 = vadd.f32 %v2813, %v2957
    %v2974 = vadd.f32 %v2814, %v2958
    %v2975 = vadd.f32 %v2815, %v2959
    %v2976 = vadd.f32 %v2816, %v2960
    %v2977 = vadd.f32 %v2817, %v2961
    %v2978 = vadd.f32 %v2818, %v2962
    %v2979 = vadd.f32 %v2819, %v2963
    %2980 = vxpose.xlu0.b32.start [1/16] %v2964, 128
    %2981 = vxpose.xlu0.b32.cont [2/16] %v2965, 128
    %2982 = vxpose.xlu0.b32.cont [3/16] %v2966, 128
    %2983 = vxpose.xlu0.b32.cont [4/16] %v2967, 128
    %2984 = vxpose.xlu0.b32.cont [5/16] %v2968, 128
    %2985 = vxpose.xlu0.b32.cont [6/16] %v2969, 128
    %2986 = vxpose.xlu0.b32.cont [7/16] %v2970, 128
    %2987 = vxpose.xlu0.b32.cont [8/16] %v2971, 128
    %2988 = vxpose.xlu0.b32.cont [9/16] %v2972, 128
    %2989 = vxpose.xlu0.b32.cont [10/16] %v2973, 128
    %2990 = vxpose.xlu0.b32.cont [11/16] %v2974, 128
    %2991 = vxpose.xlu0.b32.cont [12/16] %v2975, 128
    %2992 = vxpose.xlu0.b32.cont [13/16] %v2976, 128
    %2993 = vxpose.xlu0.b32.cont [14/16] %v2977, 128
    %2994 = vxpose.xlu0.b32.cont [15/16] %v2978, 128
    %2995 = vxpose.xlu0.b32.end [16/16] %v2979, 128
    %v2996 = vpop.trf.xlu0
    %v2997 = vpop.trf.xlu0
    %v2998 = vpop.trf.xlu0
    %v2999 = vpop.trf.xlu0
    %v3000 = vpop.trf.xlu0
    %v3001 = vpop.trf.xlu0
    %v3002 = vpop.trf.xlu0
    %v3003 = vpop.trf.xlu0
    %v3004 = vpop.trf.xlu0
    %v3005 = vpop.trf.xlu0
    %v3006 = vpop.trf.xlu0
    %v3007 = vpop.trf.xlu0
    %v3008 = vpop.trf.xlu0
    %v3009 = vpop.trf.xlu0
    %v3010 = vpop.trf.xlu0
    %v3011 = vpop.trf.xlu0
    %3012 = vst [vmem:[#allocation3] sm:$0xff] %v2996
    %v3013 = vld [vmem:[#allocation2 + $0xad] sm:$0xff]
    %v3014 = vld [vmem:[#allocation2 + $0xb5] sm:$0xff]
    %v3015 = vld [vmem:[#allocation2 + $0xbd] sm:$0xff]
    %v3016 = vld [vmem:[#allocation2 + $0xc5] sm:$0xff]
    %v3017 = vld [vmem:[#allocation2 + $0xcd] sm:$0xff]
    %v3018 = vld [vmem:[#allocation2 + $0xd5] sm:$0xff]
    %v3019 = vld [vmem:[#allocation2 + $0xdd] sm:$0xff]
    %v3020 = vld [vmem:[#allocation2 + $0xe5] sm:$0xff]
    %v3021 = vld [vmem:[#allocation2 + $0xed] sm:$0xff]
    %v3022 = vld [vmem:[#allocation2 + $0xf5] sm:$0xff]
    %v3023 = vld [vmem:[#allocation2 + $0xfd] sm:$0xff]
    %v3024 = vld [vmem:[#allocation2 + $0x105] sm:$0xff]
    %v3025 = vld [vmem:[#allocation2 + $0x10d] sm:$0xff]
    %v3026 = vld [vmem:[#allocation2 + $0x115] sm:$0xff]
    %v3027 = vld [vmem:[#allocation2 + $0x11d] sm:$0xff]
    %v3028 = vld [vmem:[#allocation2 + $0x125] sm:$0xff]
    %v3029 = vld [vmem:[%s1 + $0x6] sm:$0x1]
    %v3030 = vlaneseq
    %v3031 = vshrl.u32 %v3030, 7
    %v3032 = vsub.s32 0, %v3031
    %v3033 = vrot.slane %v3029, %v3032
    %v3034 = vmul.f32 %v3033, %v3013
    %v3035 = vmul.f32 %v3033, %v3014
    %v3036 = vmul.f32 %v3033, %v3015
    %v3037 = vmul.f32 %v3033, %v3016
    %v3038 = vmul.f32 %v3033, %v3017
    %v3039 = vmul.f32 %v3033, %v3018
    %v3040 = vmul.f32 %v3033, %v3019
    %v3041 = vmul.f32 %v3033, %v3020
    %v3042 = vmul.f32 %v3033, %v3021
    %v3043 = vmul.f32 %v3033, %v3022
    %v3044 = vmul.f32 %v3033, %v3023
    %v3045 = vmul.f32 %v3033, %v3024
    %v3046 = vmul.f32 %v3033, %v3025
    %v3047 = vmul.f32 %v3033, %v3026
    %v3048 = vmul.f32 %v3033, %v3027
    %v3049 = vmul.f32 %v3033, %v3028
    %v3050 = vld [vmem:[#allocation2 + $0x12d] sm:$0xff]
    %v3051 = vld [vmem:[#allocation2 + $0x135] sm:$0xff]
    %v3052 = vld [vmem:[%s1 + $0xf] sm:$0x1]
    %v3053 = vlaneseq
    %v3054 = vshrl.u32 %v3053, 7
    %v3055 = vsub.s32 0, %v3054
    %v3056 = vrot.slane %v3052, %v3055
    %v3057 = vmul.f32 %v3056, %v3015
    %v3058 = vmul.f32 %v3056, %v3016
    %v3059 = vmul.f32 %v3056, %v3017
    %v3060 = vmul.f32 %v3056, %v3018
    %v3061 = vmul.f32 %v3056, %v3019
    %v3062 = vmul.f32 %v3056, %v3020
    %v3063 = vmul.f32 %v3056, %v3021
    %v3064 = vmul.f32 %v3056, %v3022
    %v3065 = vmul.f32 %v3056, %v3023
    %v3066 = vmul.f32 %v3056, %v3024
    %v3067 = vmul.f32 %v3056, %v3025
    %v3068 = vmul.f32 %v3056, %v3026
    %v3069 = vmul.f32 %v3056, %v3027
    %v3070 = vmul.f32 %v3056, %v3028
    %v3071 = vmul.f32 %v3056, %v3050
    %v3072 = vmul.f32 %v3056, %v3051
    %v3073 = vadd.f32 %v3034, %v3057
    %v3074 = vadd.f32 %v3035, %v3058
    %v3075 = vadd.f32 %v3036, %v3059
    %v3076 = vadd.f32 %v3037, %v3060
    %v3077 = vadd.f32 %v3038, %v3061
    %v3078 = vadd.f32 %v3039, %v3062
    %v3079 = vadd.f32 %v3040, %v3063
    %v3080 = vadd.f32 %v3041, %v3064
    %v3081 = vadd.f32 %v3042, %v3065
    %v3082 = vadd.f32 %v3043, %v3066
    %v3083 = vadd.f32 %v3044, %v3067
    %v3084 = vadd.f32 %v3045, %v3068
    %v3085 = vadd.f32 %v3046, %v3069
    %v3086 = vadd.f32 %v3047, %v3070
    %v3087 = vadd.f32 %v3048, %v3071
    %v3088 = vadd.f32 %v3049, %v3072
    %v3089 = vld [vmem:[#allocation2 + $0x13d] sm:$0xff]
    %v3090 = vld [vmem:[#allocation2 + $0x145] sm:$0xff]
    %v3091 = vld [vmem:[%s1 + $0x18] sm:$0x1]
    %v3092 = vlaneseq
    %v3093 = vshrl.u32 %v3092, 7
    %v3094 = vsub.s32 0, %v3093
    %v3095 = vrot.slane %v3091, %v3094
    %v3096 = vmul.f32 %v3095, %v3017
    %v3097 = vmul.f32 %v3095, %v3018
    %v3098 = vmul.f32 %v3095, %v3019
    %v3099 = vmul.f32 %v3095, %v3020
    %v3100 = vmul.f32 %v3095, %v3021
    %v3101 = vmul.f32 %v3095, %v3022
    %v3102 = vmul.f32 %v3095, %v3023
    %v3103 = vmul.f32 %v3095, %v3024
    %v3104 = vmul.f32 %v3095, %v3025
    %v3105 = vmul.f32 %v3095, %v3026
    %v3106 = vmul.f32 %v3095, %v3027
    %v3107 = vmul.f32 %v3095, %v3028
    %v3108 = vmul.f32 %v3095, %v3050
    %v3109 = vmul.f32 %v3095, %v3051
    %v3110 = vmul.f32 %v3095, %v3089
    %v3111 = vmul.f32 %v3095, %v3090
    %v3112 = vadd.f32 %v3073, %v3096
    %v3113 = vadd.f32 %v3074, %v3097
    %v3114 = vadd.f32 %v3075, %v3098
    %v3115 = vadd.f32 %v3076, %v3099
    %v3116 = vadd.f32 %v3077, %v3100
    %v3117 = vadd.f32 %v3078, %v3101
    %v3118 = vadd.f32 %v3079, %v3102
    %v3119 = vadd.f32 %v3080, %v3103
    %v3120 = vadd.f32 %v3081, %v3104
    %v3121 = vadd.f32 %v3082, %v3105
    %v3122 = vadd.f32 %v3083, %v3106
    %v3123 = vadd.f32 %v3084, %v3107
    %v3124 = vadd.f32 %v3085, %v3108
    %v3125 = vadd.f32 %v3086, %v3109
    %v3126 = vadd.f32 %v3087, %v3110
    %v3127 = vadd.f32 %v3088, %v3111
    %v3128 = vsel %vm865, %v3112, 0.0
    %v3129 = vsel %vm866, %v3113, 0.0
    %v3130 = vsel %vm867, %v3114, 0.0
    %v3131 = vsel %vm868, %v3115, 0.0
    %v3132 = vsel %vm869, %v3116, 0.0
    %v3133 = vsel %vm870, %v3117, 0.0
    %v3134 = vsel %vm871, %v3118, 0.0
    %v3135 = vsel %vm872, %v3119, 0.0
    %v3136 = vsel %vm873, %v3120, 0.0
    %v3137 = vsel %vm874, %v3121, 0.0
    %v3138 = vsel %vm875, %v3122, 0.0
    %v3139 = vsel %vm876, %v3123, 0.0
    %v3140 = vsel %vm877, %v3124, 0.0
    %v3141 = vsel %vm878, %v3125, 0.0
    %v3142 = vsel %vm879, %v3126, 0.0
    %v3143 = vsel %vm880, %v3127, 0.0
    %v3144 = vadd.f32 %v732, %v3128
    %v3145 = vadd.f32 %v732, %v3129
    %v3146 = vadd.f32 %v732, %v3130
    %v3147 = vadd.f32 %v732, %v3131
    %v3148 = vadd.f32 %v732, %v3132
    %v3149 = vadd.f32 %v732, %v3133
    %v3150 = vadd.f32 %v732, %v3134
    %v3151 = vadd.f32 %v732, %v3135
    %v3152 = vadd.f32 %v732, %v3136
    %v3153 = vadd.f32 %v732, %v3137
    %v3154 = vadd.f32 %v732, %v3138
    %v3155 = vadd.f32 %v732, %v3139
    %v3156 = vadd.f32 %v732, %v3140
    %v3157 = vadd.f32 %v732, %v3141
    %v3158 = vadd.f32 %v732, %v3142
    %v3159 = vadd.f32 %v732, %v3143
    %v3160 = vld [vmem:[#allocation2 + $0xae] sm:$0xff]
    %v3161 = vld [vmem:[#allocation2 + $0xb6] sm:$0xff]
    %v3162 = vld [vmem:[#allocation2 + $0xbe] sm:$0xff]
    %v3163 = vld [vmem:[#allocation2 + $0xc6] sm:$0xff]
    %v3164 = vld [vmem:[#allocation2 + $0xce] sm:$0xff]
    %v3165 = vld [vmem:[#allocation2 + $0xd6] sm:$0xff]
    %v3166 = vld [vmem:[#allocation2 + $0xde] sm:$0xff]
    %v3167 = vld [vmem:[#allocation2 + $0xe6] sm:$0xff]
    %v3168 = vld [vmem:[#allocation2 + $0xee] sm:$0xff]
    %v3169 = vld [vmem:[#allocation2 + $0xf6] sm:$0xff]
    %v3170 = vld [vmem:[#allocation2 + $0xfe] sm:$0xff]
    %v3171 = vld [vmem:[#allocation2 + $0x106] sm:$0xff]
    %v3172 = vld [vmem:[#allocation2 + $0x10e] sm:$0xff]
    %v3173 = vld [vmem:[#allocation2 + $0x116] sm:$0xff]
    %v3174 = vld [vmem:[#allocation2 + $0x11e] sm:$0xff]
    %v3175 = vld [vmem:[#allocation2 + $0x126] sm:$0xff]
    %v3176 = vld [vmem:[%s1 + $0x7] sm:$0x1]
    %v3177 = vlaneseq
    %v3178 = vshrl.u32 %v3177, 7
    %v3179 = vsub.s32 0, %v3178
    %v3180 = vrot.slane %v3176, %v3179
    %v3181 = vmul.f32 %v3180, %v3160
    %v3182 = vmul.f32 %v3180, %v3161
    %v3183 = vmul.f32 %v3180, %v3162
    %v3184 = vmul.f32 %v3180, %v3163
    %v3185 = vmul.f32 %v3180, %v3164
    %v3186 = vmul.f32 %v3180, %v3165
    %v3187 = vmul.f32 %v3180, %v3166
    %v3188 = vmul.f32 %v3180, %v3167
    %v3189 = vmul.f32 %v3180, %v3168
    %v3190 = vmul.f32 %v3180, %v3169
    %v3191 = vmul.f32 %v3180, %v3170
    %v3192 = vmul.f32 %v3180, %v3171
    %v3193 = vmul.f32 %v3180, %v3172
    %v3194 = vmul.f32 %v3180, %v3173
    %v3195 = vmul.f32 %v3180, %v3174
    %v3196 = vmul.f32 %v3180, %v3175
    %v3197 = vld [vmem:[#allocation2 + $0x12e] sm:$0xff]
    %v3198 = vld [vmem:[#allocation2 + $0x136] sm:$0xff]
    %v3199 = vld [vmem:[%s1 + $0x10] sm:$0x1]
    %v3200 = vlaneseq
    %v3201 = vshrl.u32 %v3200, 7
    %v3202 = vsub.s32 0, %v3201
    %v3203 = vrot.slane %v3199, %v3202
    %v3204 = vmul.f32 %v3203, %v3162
    %v3205 = vmul.f32 %v3203, %v3163
    %v3206 = vmul.f32 %v3203, %v3164
    %v3207 = vmul.f32 %v3203, %v3165
    %v3208 = vmul.f32 %v3203, %v3166
    %v3209 = vmul.f32 %v3203, %v3167
    %v3210 = vmul.f32 %v3203, %v3168
    %v3211 = vmul.f32 %v3203, %v3169
    %v3212 = vmul.f32 %v3203, %v3170
    %v3213 = vmul.f32 %v3203, %v3171
    %v3214 = vmul.f32 %v3203, %v3172
    %v3215 = vmul.f32 %v3203, %v3173
    %v3216 = vmul.f32 %v3203, %v3174
    %v3217 = vmul.f32 %v3203, %v3175
    %v3218 = vmul.f32 %v3203, %v3197
    %v3219 = vmul.f32 %v3203, %v3198
    %v3220 = vadd.f32 %v3181, %v3204
    %v3221 = vadd.f32 %v3182, %v3205
    %v3222 = vadd.f32 %v3183, %v3206
    %v3223 = vadd.f32 %v3184, %v3207
    %v3224 = vadd.f32 %v3185, %v3208
    %v3225 = vadd.f32 %v3186, %v3209
    %v3226 = vadd.f32 %v3187, %v3210
    %v3227 = vadd.f32 %v3188, %v3211
    %v3228 = vadd.f32 %v3189, %v3212
    %v3229 = vadd.f32 %v3190, %v3213
    %v3230 = vadd.f32 %v3191, %v3214
    %v3231 = vadd.f32 %v3192, %v3215
    %v3232 = vadd.f32 %v3193, %v3216
    %v3233 = vadd.f32 %v3194, %v3217
    %v3234 = vadd.f32 %v3195, %v3218
    %v3235 = vadd.f32 %v3196, %v3219
    %v3236 = vld [vmem:[#allocation2 + $0x13e] sm:$0xff]
    %v3237 = vld [vmem:[#allocation2 + $0x146] sm:$0xff]
    %v3238 = vld [vmem:[%s1 + $0x19] sm:$0x1]
    %v3239 = vlaneseq
    %v3240 = vshrl.u32 %v3239, 7
    %v3241 = vsub.s32 0, %v3240
    %v3242 = vrot.slane %v3238, %v3241
    %v3243 = vmul.f32 %v3242, %v3164
    %v3244 = vmul.f32 %v3242, %v3165
    %v3245 = vmul.f32 %v3242, %v3166
    %v3246 = vmul.f32 %v3242, %v3167
    %v3247 = vmul.f32 %v3242, %v3168
    %v3248 = vmul.f32 %v3242, %v3169
    %v3249 = vmul.f32 %v3242, %v3170
    %v3250 = vmul.f32 %v3242, %v3171
    %v3251 = vmul.f32 %v3242, %v3172
    %v3252 = vmul.f32 %v3242, %v3173
    %v3253 = vmul.f32 %v3242, %v3174
    %v3254 = vmul.f32 %v3242, %v3175
    %v3255 = vmul.f32 %v3242, %v3197
    %v3256 = vmul.f32 %v3242, %v3198
    %v3257 = vmul.f32 %v3242, %v3236
    %v3258 = vmul.f32 %v3242, %v3237
    %v3259 = vadd.f32 %v3220, %v3243
    %v3260 = vadd.f32 %v3221, %v3244
    %v3261 = vadd.f32 %v3222, %v3245
    %v3262 = vadd.f32 %v3223, %v3246
    %v3263 = vadd.f32 %v3224, %v3247
    %v3264 = vadd.f32 %v3225, %v3248
    %v3265 = vadd.f32 %v3226, %v3249
    %v3266 = vadd.f32 %v3227, %v3250
    %v3267 = vadd.f32 %v3228, %v3251
    %v3268 = vadd.f32 %v3229, %v3252
    %v3269 = vadd.f32 %v3230, %v3253
    %v3270 = vadd.f32 %v3231, %v3254
    %v3271 = vadd.f32 %v3232, %v3255
    %v3272 = vadd.f32 %v3233, %v3256
    %v3273 = vadd.f32 %v3234, %v3257
    %v3274 = vadd.f32 %v3235, %v3258
    %v3275 = vsel %vm1044, %v3259, 0.0
    %v3276 = vsel %vm1045, %v3260, 0.0
    %v3277 = vsel %vm1046, %v3261, 0.0
    %v3278 = vsel %vm1047, %v3262, 0.0
    %v3279 = vsel %vm1048, %v3263, 0.0
    %v3280 = vsel %vm1049, %v3264, 0.0
    %v3281 = vsel %vm1050, %v3265, 0.0
    %v3282 = vsel %vm1051, %v3266, 0.0
    %v3283 = vsel %vm1052, %v3267, 0.0
    %v3284 = vsel %vm1053, %v3268, 0.0
    %v3285 = vsel %vm1054, %v3269, 0.0
    %v3286 = vsel %vm1055, %v3270, 0.0
    %v3287 = vsel %vm1056, %v3271, 0.0
    %v3288 = vsel %vm1057, %v3272, 0.0
    %v3289 = vsel %vm1058, %v3273, 0.0
    %v3290 = vsel %vm1059, %v3274, 0.0
    %v3291 = vadd.f32 %v3144, %v3275
    %v3292 = vadd.f32 %v3145, %v3276
    %v3293 = vadd.f32 %v3146, %v3277
    %v3294 = vadd.f32 %v3147, %v3278
    %v3295 = vadd.f32 %v3148, %v3279
    %v3296 = vadd.f32 %v3149, %v3280
    %v3297 = vadd.f32 %v3150, %v3281
    %v3298 = vadd.f32 %v3151, %v3282
    %v3299 = vadd.f32 %v3152, %v3283
    %v3300 = vadd.f32 %v3153, %v3284
    %v3301 = vadd.f32 %v3154, %v3285
    %v3302 = vadd.f32 %v3155, %v3286
    %v3303 = vadd.f32 %v3156, %v3287
    %v3304 = vadd.f32 %v3157, %v3288
    %v3305 = vadd.f32 %v3158, %v3289
    %v3306 = vadd.f32 %v3159, %v3290
    %v3307 = vld [vmem:[#allocation2 + $0x8f] sm:$0xff]
    %v3308 = vld [vmem:[#allocation2 + $0x97] sm:$0xff]
    %v3309 = vld [vmem:[#allocation2 + $0x9f] sm:$0xff]
    %v3310 = vld [vmem:[#allocation2 + $0xa7] sm:$0xff]
    %v3311 = vld [vmem:[#allocation2 + $0xaf] sm:$0xff]
    %v3312 = vld [vmem:[#allocation2 + $0xb7] sm:$0xff]
    %v3313 = vld [vmem:[#allocation2 + $0xbf] sm:$0xff]
    %v3314 = vld [vmem:[#allocation2 + $0xc7] sm:$0xff]
    %v3315 = vld [vmem:[#allocation2 + $0xcf] sm:$0xff]
    %v3316 = vld [vmem:[#allocation2 + $0xd7] sm:$0xff]
    %v3317 = vld [vmem:[#allocation2 + $0xdf] sm:$0xff]
    %v3318 = vld [vmem:[#allocation2 + $0xe7] sm:$0xff]
    %v3319 = vld [vmem:[#allocation2 + $0xef] sm:$0xff]
    %v3320 = vld [vmem:[#allocation2 + $0xf7] sm:$0xff]
    %v3321 = vld [vmem:[#allocation2 + $0xff] sm:$0xff]
    %v3322 = vld [vmem:[#allocation2 + $0x107] sm:$0xff]
    %v3323 = vld [vmem:[%s1] sm:$0x1]
    %v3324 = vlaneseq
    %v3325 = vshrl.u32 %v3324, 7
    %v3326 = vsub.s32 0, %v3325
    %v3327 = vrot.slane %v3323, %v3326
    %v3328 = vmul.f32 %v3327, %v3307
    %v3329 = vmul.f32 %v3327, %v3308
    %v3330 = vmul.f32 %v3327, %v3309
    %v3331 = vmul.f32 %v3327, %v3310
    %v3332 = vmul.f32 %v3327, %v3311
    %v3333 = vmul.f32 %v3327, %v3312
    %v3334 = vmul.f32 %v3327, %v3313
    %v3335 = vmul.f32 %v3327, %v3314
    %v3336 = vmul.f32 %v3327, %v3315
    %v3337 = vmul.f32 %v3327, %v3316
    %v3338 = vmul.f32 %v3327, %v3317
    %v3339 = vmul.f32 %v3327, %v3318
    %v3340 = vmul.f32 %v3327, %v3319
    %v3341 = vmul.f32 %v3327, %v3320
    %v3342 = vmul.f32 %v3327, %v3321
    %v3343 = vmul.f32 %v3327, %v3322
    %v3344 = vld [vmem:[#allocation2 + $0x10f] sm:$0xff]
    %v3345 = vld [vmem:[#allocation2 + $0x117] sm:$0xff]
    %v3346 = vld [vmem:[%s1 + $0x3] sm:$0x1]
    %v3347 = vlaneseq
    %v3348 = vshrl.u32 %v3347, 7
    %v3349 = vsub.s32 0, %v3348
    %v3350 = vrot.slane %v3346, %v3349
    %v3351 = vmul.f32 %v3350, %v3309
    %v3352 = vmul.f32 %v3350, %v3310
    %v3353 = vmul.f32 %v3350, %v3311
    %v3354 = vmul.f32 %v3350, %v3312
    %v3355 = vmul.f32 %v3350, %v3313
    %v3356 = vmul.f32 %v3350, %v3314
    %v3357 = vmul.f32 %v3350, %v3315
    %v3358 = vmul.f32 %v3350, %v3316
    %v3359 = vmul.f32 %v3350, %v3317
    %v3360 = vmul.f32 %v3350, %v3318
    %v3361 = vmul.f32 %v3350, %v3319
    %v3362 = vmul.f32 %v3350, %v3320
    %v3363 = vmul.f32 %v3350, %v3321
    %v3364 = vmul.f32 %v3350, %v3322
    %v3365 = vmul.f32 %v3350, %v3344
    %v3366 = vmul.f32 %v3350, %v3345
    %v3367 = vadd.f32 %v3328, %v3351
    %v3368 = vadd.f32 %v3329, %v3352
    %v3369 = vadd.f32 %v3330, %v3353
    %v3370 = vadd.f32 %v3331, %v3354
    %v3371 = vadd.f32 %v3332, %v3355
    %v3372 = vadd.f32 %v3333, %v3356
    %v3373 = vadd.f32 %v3334, %v3357
    %v3374 = vadd.f32 %v3335, %v3358
    %v3375 = vadd.f32 %v3336, %v3359
    %v3376 = vadd.f32 %v3337, %v3360
    %v3377 = vadd.f32 %v3338, %v3361
    %v3378 = vadd.f32 %v3339, %v3362
    %v3379 = vadd.f32 %v3340, %v3363
    %v3380 = vadd.f32 %v3341, %v3364
    %v3381 = vadd.f32 %v3342, %v3365
    %v3382 = vadd.f32 %v3343, %v3366
    %v3383 = vld [vmem:[#allocation2 + $0x11f] sm:$0xff]
    %v3384 = vld [vmem:[#allocation2 + $0x127] sm:$0xff]
    %v3385 = vld [vmem:[%s1 + $0x8] sm:$0x1]
    %v3386 = vlaneseq
    %v3387 = vshrl.u32 %v3386, 7
    %v3388 = vsub.s32 0, %v3387
    %v3389 = vrot.slane %v3385, %v3388
    %v3390 = vmul.f32 %v3389, %v3311
    %v3391 = vmul.f32 %v3389, %v3312
    %v3392 = vmul.f32 %v3389, %v3313
    %v3393 = vmul.f32 %v3389, %v3314
    %v3394 = vmul.f32 %v3389, %v3315
    %v3395 = vmul.f32 %v3389, %v3316
    %v3396 = vmul.f32 %v3389, %v3317
    %v3397 = vmul.f32 %v3389, %v3318
    %v3398 = vmul.f32 %v3389, %v3319
    %v3399 = vmul.f32 %v3389, %v3320
    %v3400 = vmul.f32 %v3389, %v3321
    %v3401 = vmul.f32 %v3389, %v3322
    %v3402 = vmul.f32 %v3389, %v3344
    %v3403 = vmul.f32 %v3389, %v3345
    %v3404 = vmul.f32 %v3389, %v3383
    %v3405 = vmul.f32 %v3389, %v3384
    %v3406 = vadd.f32 %v3367, %v3390
    %v3407 = vadd.f32 %v3368, %v3391
    %v3408 = vadd.f32 %v3369, %v3392
    %v3409 = vadd.f32 %v3370, %v3393
    %v3410 = vadd.f32 %v3371, %v3394
    %v3411 = vadd.f32 %v3372, %v3395
    %v3412 = vadd.f32 %v3373, %v3396
    %v3413 = vadd.f32 %v3374, %v3397
    %v3414 = vadd.f32 %v3375, %v3398
    %v3415 = vadd.f32 %v3376, %v3399
    %v3416 = vadd.f32 %v3377, %v3400
    %v3417 = vadd.f32 %v3378, %v3401
    %v3418 = vadd.f32 %v3379, %v3402
    %v3419 = vadd.f32 %v3380, %v3403
    %v3420 = vadd.f32 %v3381, %v3404
    %v3421 = vadd.f32 %v3382, %v3405
    %v3422 = vld [vmem:[#allocation2 + $0x12f] sm:$0xff]
    %v3423 = vld [vmem:[#allocation2 + $0x137] sm:$0xff]
    %v3424 = vld [vmem:[%s1 + $0x11] sm:$0x1]
    %v3425 = vlaneseq
    %v3426 = vshrl.u32 %v3425, 7
    %v3427 = vsub.s32 0, %v3426
    %v3428 = vrot.slane %v3424, %v3427
    %v3429 = vmul.f32 %v3428, %v3313
    %v3430 = vmul.f32 %v3428, %v3314
    %v3431 = vmul.f32 %v3428, %v3315
    %v3432 = vmul.f32 %v3428, %v3316
    %v3433 = vmul.f32 %v3428, %v3317
    %v3434 = vmul.f32 %v3428, %v3318
    %v3435 = vmul.f32 %v3428, %v3319
    %v3436 = vmul.f32 %v3428, %v3320
    %v3437 = vmul.f32 %v3428, %v3321
    %v3438 = vmul.f32 %v3428, %v3322
    %v3439 = vmul.f32 %v3428, %v3344
    %v3440 = vmul.f32 %v3428, %v3345
    %v3441 = vmul.f32 %v3428, %v3383
    %v3442 = vmul.f32 %v3428, %v3384
    %v3443 = vmul.f32 %v3428, %v3422
    %v3444 = vmul.f32 %v3428, %v3423
    %v3445 = vadd.f32 %v3406, %v3429
    %v3446 = vadd.f32 %v3407, %v3430
    %v3447 = vadd.f32 %v3408, %v3431
    %v3448 = vadd.f32 %v3409, %v3432
    %v3449 = vadd.f32 %v3410, %v3433
    %v3450 = vadd.f32 %v3411, %v3434
    %v3451 = vadd.f32 %v3412, %v3435
    %v3452 = vadd.f32 %v3413, %v3436
    %v3453 = vadd.f32 %v3414, %v3437
    %v3454 = vadd.f32 %v3415, %v3438
    %v3455 = vadd.f32 %v3416, %v3439
    %v3456 = vadd.f32 %v3417, %v3440
    %v3457 = vadd.f32 %v3418, %v3441
    %v3458 = vadd.f32 %v3419, %v3442
    %v3459 = vadd.f32 %v3420, %v3443
    %v3460 = vadd.f32 %v3421, %v3444
    %v3461 = vld [vmem:[#allocation2 + $0x13f] sm:$0xff]
    %v3462 = vld [vmem:[#allocation2 + $0x147] sm:$0xff]
    %v3463 = vld [vmem:[%s1 + $0x1a] sm:$0x1]
    %v3464 = vlaneseq
    %v3465 = vshrl.u32 %v3464, 7
    %v3466 = vsub.s32 0, %v3465
    %v3467 = vrot.slane %v3463, %v3466
    %v3468 = vmul.f32 %v3467, %v3315
    %v3469 = vmul.f32 %v3467, %v3316
    %v3470 = vmul.f32 %v3467, %v3317
    %v3471 = vmul.f32 %v3467, %v3318
    %v3472 = vmul.f32 %v3467, %v3319
    %v3473 = vmul.f32 %v3467, %v3320
    %v3474 = vmul.f32 %v3467, %v3321
    %v3475 = vmul.f32 %v3467, %v3322
    %v3476 = vmul.f32 %v3467, %v3344
    %v3477 = vmul.f32 %v3467, %v3345
    %v3478 = vmul.f32 %v3467, %v3383
    %v3479 = vmul.f32 %v3467, %v3384
    %v3480 = vmul.f32 %v3467, %v3422
    %v3481 = vmul.f32 %v3467, %v3423
    %v3482 = vmul.f32 %v3467, %v3461
    %v3483 = vmul.f32 %v3467, %v3462
    %v3484 = vadd.f32 %v3445, %v3468
    %v3485 = vadd.f32 %v3446, %v3469
    %v3486 = vadd.f32 %v3447, %v3470
    %v3487 = vadd.f32 %v3448, %v3471
    %v3488 = vadd.f32 %v3449, %v3472
    %v3489 = vadd.f32 %v3450, %v3473
    %v3490 = vadd.f32 %v3451, %v3474
    %v3491 = vadd.f32 %v3452, %v3475
    %v3492 = vadd.f32 %v3453, %v3476
    %v3493 = vadd.f32 %v3454, %v3477
    %v3494 = vadd.f32 %v3455, %v3478
    %v3495 = vadd.f32 %v3456, %v3479
    %v3496 = vadd.f32 %v3457, %v3480
    %v3497 = vadd.f32 %v3458, %v3481
    %v3498 = vadd.f32 %v3459, %v3482
    %v3499 = vadd.f32 %v3460, %v3483
    %v3500 = vld [vmem:[#allocation2 + $0x14f] sm:$0xff]
    %v3501 = vld [vmem:[#allocation2 + $0x157] sm:$0xff]
    %v3502 = vld [vmem:[%s1 + $0x21] sm:$0x1]
    %v3503 = vlaneseq
    %v3504 = vshrl.u32 %v3503, 7
    %v3505 = vsub.s32 0, %v3504
    %v3506 = vrot.slane %v3502, %v3505
    %v3507 = vmul.f32 %v3506, %v3317
    %v3508 = vmul.f32 %v3506, %v3318
    %v3509 = vmul.f32 %v3506, %v3319
    %v3510 = vmul.f32 %v3506, %v3320
    %v3511 = vmul.f32 %v3506, %v3321
    %v3512 = vmul.f32 %v3506, %v3322
    %v3513 = vmul.f32 %v3506, %v3344
    %v3514 = vmul.f32 %v3506, %v3345
    %v3515 = vmul.f32 %v3506, %v3383
    %v3516 = vmul.f32 %v3506, %v3384
    %v3517 = vmul.f32 %v3506, %v3422
    %v3518 = vmul.f32 %v3506, %v3423
    %v3519 = vmul.f32 %v3506, %v3461
    %v3520 = vmul.f32 %v3506, %v3462
    %v3521 = vmul.f32 %v3506, %v3500
    %v3522 = vmul.f32 %v3506, %v3501
    %v3523 = vadd.f32 %v3484, %v3507
    %v3524 = vadd.f32 %v3485, %v3508
    %v3525 = vadd.f32 %v3486, %v3509
    %v3526 = vadd.f32 %v3487, %v3510
    %v3527 = vadd.f32 %v3488, %v3511
    %v3528 = vadd.f32 %v3489, %v3512
    %v3529 = vadd.f32 %v3490, %v3513
    %v3530 = vadd.f32 %v3491, %v3514
    %v3531 = vadd.f32 %v3492, %v3515
    %v3532 = vadd.f32 %v3493, %v3516
    %v3533 = vadd.f32 %v3494, %v3517
    %v3534 = vadd.f32 %v3495, %v3518
    %v3535 = vadd.f32 %v3496, %v3519
    %v3536 = vadd.f32 %v3497, %v3520
    %v3537 = vadd.f32 %v3498, %v3521
    %v3538 = vadd.f32 %v3499, %v3522
    %v3539 = vld [vmem:[#allocation2 + $0x15f] sm:$0xff]
    %v3540 = vld [vmem:[#allocation2 + $0x167] sm:$0xff]
    %v3541 = vld [vmem:[%s1 + $0x24] sm:$0x1]
    %v3542 = vlaneseq
    %v3543 = vshrl.u32 %v3542, 7
    %v3544 = vsub.s32 0, %v3543
    %v3545 = vrot.slane %v3541, %v3544
    %v3546 = vmul.f32 %v3545, %v3319
    %v3547 = vmul.f32 %v3545, %v3320
    %v3548 = vmul.f32 %v3545, %v3321
    %v3549 = vmul.f32 %v3545, %v3322
    %v3550 = vmul.f32 %v3545, %v3344
    %v3551 = vmul.f32 %v3545, %v3345
    %v3552 = vmul.f32 %v3545, %v3383
    %v3553 = vmul.f32 %v3545, %v3384
    %v3554 = vmul.f32 %v3545, %v3422
    %v3555 = vmul.f32 %v3545, %v3423
    %v3556 = vmul.f32 %v3545, %v3461
    %v3557 = vmul.f32 %v3545, %v3462
    %v3558 = vmul.f32 %v3545, %v3500
    %v3559 = vmul.f32 %v3545, %v3501
    %v3560 = vmul.f32 %v3545, %v3539
    %v3561 = vmul.f32 %v3545, %v3540
    %v3562 = vadd.f32 %v3523, %v3546
    %v3563 = vadd.f32 %v3524, %v3547
    %v3564 = vadd.f32 %v3525, %v3548
    %v3565 = vadd.f32 %v3526, %v3549
    %v3566 = vadd.f32 %v3527, %v3550
    %v3567 = vadd.f32 %v3528, %v3551
    %v3568 = vadd.f32 %v3529, %v3552
    %v3569 = vadd.f32 %v3530, %v3553
    %v3570 = vadd.f32 %v3531, %v3554
    %v3571 = vadd.f32 %v3532, %v3555
    %v3572 = vadd.f32 %v3533, %v3556
    %v3573 = vadd.f32 %v3534, %v3557
    %v3574 = vadd.f32 %v3535, %v3558
    %v3575 = vadd.f32 %v3536, %v3559
    %v3576 = vadd.f32 %v3537, %v3560
    %v3577 = vadd.f32 %v3538, %v3561
    %v3578 = vld [vmem:[#allocation2 + $0x16f] sm:$0xff]
    %v3579 = vld [vmem:[#allocation2 + $0x177] sm:$0xff]
    %v3580 = vld [vmem:[%s1 + $0x27] sm:$0x1]
    %v3581 = vlaneseq
    %v3582 = vshrl.u32 %v3581, 7
    %v3583 = vsub.s32 0, %v3582
    %v3584 = vrot.slane %v3580, %v3583
    %v3585 = vmul.f32 %v3584, %v3321
    %v3586 = vmul.f32 %v3584, %v3322
    %v3587 = vmul.f32 %v3584, %v3344
    %v3588 = vmul.f32 %v3584, %v3345
    %v3589 = vmul.f32 %v3584, %v3383
    %v3590 = vmul.f32 %v3584, %v3384
    %v3591 = vmul.f32 %v3584, %v3422
    %v3592 = vmul.f32 %v3584, %v3423
    %v3593 = vmul.f32 %v3584, %v3461
    %v3594 = vmul.f32 %v3584, %v3462
    %v3595 = vmul.f32 %v3584, %v3500
    %v3596 = vmul.f32 %v3584, %v3501
    %v3597 = vmul.f32 %v3584, %v3539
    %v3598 = vmul.f32 %v3584, %v3540
    %v3599 = vmul.f32 %v3584, %v3578
    %v3600 = vmul.f32 %v3584, %v3579
    %v3601 = vadd.f32 %v3562, %v3585
    %v3602 = vadd.f32 %v3563, %v3586
    %v3603 = vadd.f32 %v3564, %v3587
    %v3604 = vadd.f32 %v3565, %v3588
    %v3605 = vadd.f32 %v3566, %v3589
    %v3606 = vadd.f32 %v3567, %v3590
    %v3607 = vadd.f32 %v3568, %v3591
    %v3608 = vadd.f32 %v3569, %v3592
    %v3609 = vadd.f32 %v3570, %v3593
    %v3610 = vadd.f32 %v3571, %v3594
    %v3611 = vadd.f32 %v3572, %v3595
    %v3612 = vadd.f32 %v3573, %v3596
    %v3613 = vadd.f32 %v3574, %v3597
    %v3614 = vadd.f32 %v3575, %v3598
    %v3615 = vadd.f32 %v3576, %v3599
    %v3616 = vadd.f32 %v3577, %v3600
    %v3617 = vld [vmem:[#allocation2 + $0x17f] sm:$0xff]
    %v3618 = vld [vmem:[#allocation2 + $0x187] sm:$0xff]
    %v3619 = vld [vmem:[%s1 + $0x2a] sm:$0x1]
    %v3620 = vlaneseq
    %v3621 = vshrl.u32 %v3620, 7
    %v3622 = vsub.s32 0, %v3621
    %v3623 = vrot.slane %v3619, %v3622
    %v3624 = vmul.f32 %v3623, %v3344
    %v3625 = vmul.f32 %v3623, %v3345
    %v3626 = vmul.f32 %v3623, %v3383
    %v3627 = vmul.f32 %v3623, %v3384
    %v3628 = vmul.f32 %v3623, %v3422
    %v3629 = vmul.f32 %v3623, %v3423
    %v3630 = vmul.f32 %v3623, %v3461
    %v3631 = vmul.f32 %v3623, %v3462
    %v3632 = vmul.f32 %v3623, %v3500
    %v3633 = vmul.f32 %v3623, %v3501
    %v3634 = vmul.f32 %v3623, %v3539
    %v3635 = vmul.f32 %v3623, %v3540
    %v3636 = vmul.f32 %v3623, %v3578
    %v3637 = vmul.f32 %v3623, %v3579
    %v3638 = vmul.f32 %v3623, %v3617
    %v3639 = vmul.f32 %v3623, %v3618
    %v3640 = vadd.f32 %v3601, %v3624
    %v3641 = vadd.f32 %v3602, %v3625
    %v3642 = vadd.f32 %v3603, %v3626
    %v3643 = vadd.f32 %v3604, %v3627
    %v3644 = vadd.f32 %v3605, %v3628
    %v3645 = vadd.f32 %v3606, %v3629
    %v3646 = vadd.f32 %v3607, %v3630
    %v3647 = vadd.f32 %v3608, %v3631
    %v3648 = vadd.f32 %v3609, %v3632
    %v3649 = vadd.f32 %v3610, %v3633
    %v3650 = vadd.f32 %v3611, %v3634
    %v3651 = vadd.f32 %v3612, %v3635
    %v3652 = vadd.f32 %v3613, %v3636
    %v3653 = vadd.f32 %v3614, %v3637
    %v3654 = vadd.f32 %v3615, %v3638
    %v3655 = vadd.f32 %v3616, %v3639
    %v3656 = vsel %vm1457, %v3640, 0.0
    %v3657 = vsel %vm1458, %v3641, 0.0
    %v3658 = vsel %vm1459, %v3642, 0.0
    %v3659 = vsel %vm1460, %v3643, 0.0
    %v3660 = vsel %vm1461, %v3644, 0.0
    %v3661 = vsel %vm1462, %v3645, 0.0
    %v3662 = vsel %vm1463, %v3646, 0.0
    %v3663 = vsel %vm1464, %v3647, 0.0
    %v3664 = vsel %vm1465, %v3648, 0.0
    %v3665 = vsel %vm1466, %v3649, 0.0
    %v3666 = vsel %vm1467, %v3650, 0.0
    %v3667 = vsel %vm1468, %v3651, 0.0
    %v3668 = vsel %vm1469, %v3652, 0.0
    %v3669 = vsel %vm1470, %v3653, 0.0
    %v3670 = vsel %vm1471, %v3654, 0.0
    %v3671 = vsel %vm1472, %v3655, 0.0
    %v3672 = vadd.f32 %v3291, %v3656
    %v3673 = vadd.f32 %v3292, %v3657
    %v3674 = vadd.f32 %v3293, %v3658
    %v3675 = vadd.f32 %v3294, %v3659
    %v3676 = vadd.f32 %v3295, %v3660
    %v3677 = vadd.f32 %v3296, %v3661
    %v3678 = vadd.f32 %v3297, %v3662
    %v3679 = vadd.f32 %v3298, %v3663
    %v3680 = vadd.f32 %v3299, %v3664
    %v3681 = vadd.f32 %v3300, %v3665
    %v3682 = vadd.f32 %v3301, %v3666
    %v3683 = vadd.f32 %v3302, %v3667
    %v3684 = vadd.f32 %v3303, %v3668
    %v3685 = vadd.f32 %v3304, %v3669
    %v3686 = vadd.f32 %v3305, %v3670
    %v3687 = vadd.f32 %v3306, %v3671
    %v3688 = vld [vmem:[#allocation2 + $0x90] sm:$0xff]
    %v3689 = vld [vmem:[#allocation2 + $0x98] sm:$0xff]
    %v3690 = vld [vmem:[#allocation2 + $0xa0] sm:$0xff]
    %v3691 = vld [vmem:[#allocation2 + $0xa8] sm:$0xff]
    %v3692 = vld [vmem:[#allocation2 + $0xb0] sm:$0xff]
    %v3693 = vld [vmem:[#allocation2 + $0xb8] sm:$0xff]
    %v3694 = vld [vmem:[#allocation2 + $0xc0] sm:$0xff]
    %v3695 = vld [vmem:[#allocation2 + $0xc8] sm:$0xff]
    %v3696 = vld [vmem:[#allocation2 + $0xd0] sm:$0xff]
    %v3697 = vld [vmem:[#allocation2 + $0xd8] sm:$0xff]
    %v3698 = vld [vmem:[#allocation2 + $0xe0] sm:$0xff]
    %v3699 = vld [vmem:[#allocation2 + $0xe8] sm:$0xff]
    %v3700 = vld [vmem:[#allocation2 + $0xf0] sm:$0xff]
    %v3701 = vld [vmem:[#allocation2 + $0xf8] sm:$0xff]
    %v3702 = vld [vmem:[#allocation2 + $0x100] sm:$0xff]
    %v3703 = vld [vmem:[#allocation2 + $0x108] sm:$0xff]
    %v3704 = vld [vmem:[%s1 + $0x1] sm:$0x1]
    %v3705 = vlaneseq
    %v3706 = vshrl.u32 %v3705, 7
    %v3707 = vsub.s32 0, %v3706
    %v3708 = vrot.slane %v3704, %v3707
    %v3709 = vmul.f32 %v3708, %v3688
    %v3710 = vmul.f32 %v3708, %v3689
    %v3711 = vmul.f32 %v3708, %v3690
    %v3712 = vmul.f32 %v3708, %v3691
    %v3713 = vmul.f32 %v3708, %v3692
    %v3714 = vmul.f32 %v3708, %v3693
    %v3715 = vmul.f32 %v3708, %v3694
    %v3716 = vmul.f32 %v3708, %v3695
    %v3717 = vmul.f32 %v3708, %v3696
    %v3718 = vmul.f32 %v3708, %v3697
    %v3719 = vmul.f32 %v3708, %v3698
    %v3720 = vmul.f32 %v3708, %v3699
    %v3721 = vmul.f32 %v3708, %v3700
    %v3722 = vmul.f32 %v3708, %v3701
    %v3723 = vmul.f32 %v3708, %v3702
    %v3724 = vmul.f32 %v3708, %v3703
    %v3725 = vld [vmem:[#allocation2 + $0x110] sm:$0xff]
    %v3726 = vld [vmem:[#allocation2 + $0x118] sm:$0xff]
    %v3727 = vld [vmem:[%s1 + $0x4] sm:$0x1]
    %v3728 = vlaneseq
    %v3729 = vshrl.u32 %v3728, 7
    %v3730 = vsub.s32 0, %v3729
    %v3731 = vrot.slane %v3727, %v3730
    %v3732 = vmul.f32 %v3731, %v3690
    %v3733 = vmul.f32 %v3731, %v3691
    %v3734 = vmul.f32 %v3731, %v3692
    %v3735 = vmul.f32 %v3731, %v3693
    %v3736 = vmul.f32 %v3731, %v3694
    %v3737 = vmul.f32 %v3731, %v3695
    %v3738 = vmul.f32 %v3731, %v3696
    %v3739 = vmul.f32 %v3731, %v3697
    %v3740 = vmul.f32 %v3731, %v3698
    %v3741 = vmul.f32 %v3731, %v3699
    %v3742 = vmul.f32 %v3731, %v3700
    %v3743 = vmul.f32 %v3731, %v3701
    %v3744 = vmul.f32 %v3731, %v3702
    %v3745 = vmul.f32 %v3731, %v3703
    %v3746 = vmul.f32 %v3731, %v3725
    %v3747 = vmul.f32 %v3731, %v3726
    %v3748 = vadd.f32 %v3709, %v3732
    %v3749 = vadd.f32 %v3710, %v3733
    %v3750 = vadd.f32 %v3711, %v3734
    %v3751 = vadd.f32 %v3712, %v3735
    %v3752 = vadd.f32 %v3713, %v3736
    %v3753 = vadd.f32 %v3714, %v3737
    %v3754 = vadd.f32 %v3715, %v3738
    %v3755 = vadd.f32 %v3716, %v3739
    %v3756 = vadd.f32 %v3717, %v3740
    %v3757 = vadd.f32 %v3718, %v3741
    %v3758 = vadd.f32 %v3719, %v3742
    %v3759 = vadd.f32 %v3720, %v3743
    %v3760 = vadd.f32 %v3721, %v3744
    %v3761 = vadd.f32 %v3722, %v3745
    %v3762 = vadd.f32 %v3723, %v3746
    %v3763 = vadd.f32 %v3724, %v3747
    %v3764 = vld [vmem:[#allocation2 + $0x120] sm:$0xff]
    %v3765 = vld [vmem:[#allocation2 + $0x128] sm:$0xff]
    %v3766 = vld [vmem:[%s1 + $0x9] sm:$0x1]
    %v3767 = vlaneseq
    %v3768 = vshrl.u32 %v3767, 7
    %v3769 = vsub.s32 0, %v3768
    %v3770 = vrot.slane %v3766, %v3769
    %v3771 = vmul.f32 %v3770, %v3692
    %v3772 = vmul.f32 %v3770, %v3693
    %v3773 = vmul.f32 %v3770, %v3694
    %v3774 = vmul.f32 %v3770, %v3695
    %v3775 = vmul.f32 %v3770, %v3696
    %v3776 = vmul.f32 %v3770, %v3697
    %v3777 = vmul.f32 %v3770, %v3698
    %v3778 = vmul.f32 %v3770, %v3699
    %v3779 = vmul.f32 %v3770, %v3700
    %v3780 = vmul.f32 %v3770, %v3701
    %v3781 = vmul.f32 %v3770, %v3702
    %v3782 = vmul.f32 %v3770, %v3703
    %v3783 = vmul.f32 %v3770, %v3725
    %v3784 = vmul.f32 %v3770, %v3726
    %v3785 = vmul.f32 %v3770, %v3764
    %v3786 = vmul.f32 %v3770, %v3765
    %v3787 = vadd.f32 %v3748, %v3771
    %v3788 = vadd.f32 %v3749, %v3772
    %v3789 = vadd.f32 %v3750, %v3773
    %v3790 = vadd.f32 %v3751, %v3774
    %v3791 = vadd.f32 %v3752, %v3775
    %v3792 = vadd.f32 %v3753, %v3776
    %v3793 = vadd.f32 %v3754, %v3777
    %v3794 = vadd.f32 %v3755, %v3778
    %v3795 = vadd.f32 %v3756, %v3779
    %v3796 = vadd.f32 %v3757, %v3780
    %v3797 = vadd.f32 %v3758, %v3781
    %v3798 = vadd.f32 %v3759, %v3782
    %v3799 = vadd.f32 %v3760, %v3783
    %v3800 = vadd.f32 %v3761, %v3784
    %v3801 = vadd.f32 %v3762, %v3785
    %v3802 = vadd.f32 %v3763, %v3786
    %v3803 = vld [vmem:[#allocation2 + $0x130] sm:$0xff]
    %v3804 = vld [vmem:[#allocation2 + $0x138] sm:$0xff]
    %v3805 = vld [vmem:[%s1 + $0x12] sm:$0x1]
    %v3806 = vlaneseq
    %v3807 = vshrl.u32 %v3806, 7
    %v3808 = vsub.s32 0, %v3807
    %v3809 = vrot.slane %v3805, %v3808
    %v3810 = vmul.f32 %v3809, %v3694
    %v3811 = vmul.f32 %v3809, %v3695
    %v3812 = vmul.f32 %v3809, %v3696
    %v3813 = vmul.f32 %v3809, %v3697
    %v3814 = vmul.f32 %v3809, %v3698
    %v3815 = vmul.f32 %v3809, %v3699
    %v3816 = vmul.f32 %v3809, %v3700
    %v3817 = vmul.f32 %v3809, %v3701
    %v3818 = vmul.f32 %v3809, %v3702
    %v3819 = vmul.f32 %v3809, %v3703
    %v3820 = vmul.f32 %v3809, %v3725
    %v3821 = vmul.f32 %v3809, %v3726
    %v3822 = vmul.f32 %v3809, %v3764
    %v3823 = vmul.f32 %v3809, %v3765
    %v3824 = vmul.f32 %v3809, %v3803
    %v3825 = vmul.f32 %v3809, %v3804
    %v3826 = vadd.f32 %v3787, %v3810
    %v3827 = vadd.f32 %v3788, %v3811
    %v3828 = vadd.f32 %v3789, %v3812
    %v3829 = vadd.f32 %v3790, %v3813
    %v3830 = vadd.f32 %v3791, %v3814
    %v3831 = vadd.f32 %v3792, %v3815
    %v3832 = vadd.f32 %v3793, %v3816
    %v3833 = vadd.f32 %v3794, %v3817
    %v3834 = vadd.f32 %v3795, %v3818
    %v3835 = vadd.f32 %v3796, %v3819
    %v3836 = vadd.f32 %v3797, %v3820
    %v3837 = vadd.f32 %v3798, %v3821
    %v3838 = vadd.f32 %v3799, %v3822
    %v3839 = vadd.f32 %v3800, %v3823
    %v3840 = vadd.f32 %v3801, %v3824
    %v3841 = vadd.f32 %v3802, %v3825
    %v3842 = vld [vmem:[#allocation2 + $0x140] sm:$0xff]
    %v3843 = vld [vmem:[#allocation2 + $0x148] sm:$0xff]
    %v3844 = vld [vmem:[%s1 + $0x1b] sm:$0x1]
    %v3845 = vlaneseq
    %v3846 = vshrl.u32 %v3845, 7
    %v3847 = vsub.s32 0, %v3846
    %v3848 = vrot.slane %v3844, %v3847
    %v3849 = vmul.f32 %v3848, %v3696
    %v3850 = vmul.f32 %v3848, %v3697
    %v3851 = vmul.f32 %v3848, %v3698
    %v3852 = vmul.f32 %v3848, %v3699
    %v3853 = vmul.f32 %v3848, %v3700
    %v3854 = vmul.f32 %v3848, %v3701
    %v3855 = vmul.f32 %v3848, %v3702
    %v3856 = vmul.f32 %v3848, %v3703
    %v3857 = vmul.f32 %v3848, %v3725
    %v3858 = vmul.f32 %v3848, %v3726
    %v3859 = vmul.f32 %v3848, %v3764
    %v3860 = vmul.f32 %v3848, %v3765
    %v3861 = vmul.f32 %v3848, %v3803
    %v3862 = vmul.f32 %v3848, %v3804
    %v3863 = vmul.f32 %v3848, %v3842
    %v3864 = vmul.f32 %v3848, %v3843
    %v3865 = vadd.f32 %v3826, %v3849
    %v3866 = vadd.f32 %v3827, %v3850
    %v3867 = vadd.f32 %v3828, %v3851
    %v3868 = vadd.f32 %v3829, %v3852
    %v3869 = vadd.f32 %v3830, %v3853
    %v3870 = vadd.f32 %v3831, %v3854
    %v3871 = vadd.f32 %v3832, %v3855
    %v3872 = vadd.f32 %v3833, %v3856
    %v3873 = vadd.f32 %v3834, %v3857
    %v3874 = vadd.f32 %v3835, %v3858
    %v3875 = vadd.f32 %v3836, %v3859
    %v3876 = vadd.f32 %v3837, %v3860
    %v3877 = vadd.f32 %v3838, %v3861
    %v3878 = vadd.f32 %v3839, %v3862
    %v3879 = vadd.f32 %v3840, %v3863
    %v3880 = vadd.f32 %v3841, %v3864
    %v3881 = vld [vmem:[#allocation2 + $0x150] sm:$0xff]
    %v3882 = vld [vmem:[#allocation2 + $0x158] sm:$0xff]
    %v3883 = vld [vmem:[%s1 + $0x22] sm:$0x1]
    %v3884 = vlaneseq
    %v3885 = vshrl.u32 %v3884, 7
    %v3886 = vsub.s32 0, %v3885
    %v3887 = vrot.slane %v3883, %v3886
    %v3888 = vmul.f32 %v3887, %v3698
    %v3889 = vmul.f32 %v3887, %v3699
    %v3890 = vmul.f32 %v3887, %v3700
    %v3891 = vmul.f32 %v3887, %v3701
    %v3892 = vmul.f32 %v3887, %v3702
    %v3893 = vmul.f32 %v3887, %v3703
    %v3894 = vmul.f32 %v3887, %v3725
    %v3895 = vmul.f32 %v3887, %v3726
    %v3896 = vmul.f32 %v3887, %v3764
    %v3897 = vmul.f32 %v3887, %v3765
    %v3898 = vmul.f32 %v3887, %v3803
    %v3899 = vmul.f32 %v3887, %v3804
    %v3900 = vmul.f32 %v3887, %v3842
    %v3901 = vmul.f32 %v3887, %v3843
    %v3902 = vmul.f32 %v3887, %v3881
    %v3903 = vmul.f32 %v3887, %v3882
    %v3904 = vadd.f32 %v3865, %v3888
    %v3905 = vadd.f32 %v3866, %v3889
    %v3906 = vadd.f32 %v3867, %v3890
    %v3907 = vadd.f32 %v3868, %v3891
    %v3908 = vadd.f32 %v3869, %v3892
    %v3909 = vadd.f32 %v3870, %v3893
    %v3910 = vadd.f32 %v3871, %v3894
    %v3911 = vadd.f32 %v3872, %v3895
    %v3912 = vadd.f32 %v3873, %v3896
    %v3913 = vadd.f32 %v3874, %v3897
    %v3914 = vadd.f32 %v3875, %v3898
    %v3915 = vadd.f32 %v3876, %v3899
    %v3916 = vadd.f32 %v3877, %v3900
    %v3917 = vadd.f32 %v3878, %v3901
    %v3918 = vadd.f32 %v3879, %v3902
    %v3919 = vadd.f32 %v3880, %v3903
    %v3920 = vld [vmem:[#allocation2 + $0x160] sm:$0xff]
    %v3921 = vld [vmem:[#allocation2 + $0x168] sm:$0xff]
    %v3922 = vld [vmem:[%s1 + $0x25] sm:$0x1]
    %v3923 = vlaneseq
    %v3924 = vshrl.u32 %v3923, 7
    %v3925 = vsub.s32 0, %v3924
    %v3926 = vrot.slane %v3922, %v3925
    %v3927 = vmul.f32 %v3926, %v3700
    %v3928 = vmul.f32 %v3926, %v3701
    %v3929 = vmul.f32 %v3926, %v3702
    %v3930 = vmul.f32 %v3926, %v3703
    %v3931 = vmul.f32 %v3926, %v3725
    %v3932 = vmul.f32 %v3926, %v3726
    %v3933 = vmul.f32 %v3926, %v3764
    %v3934 = vmul.f32 %v3926, %v3765
    %v3935 = vmul.f32 %v3926, %v3803
    %v3936 = vmul.f32 %v3926, %v3804
    %v3937 = vmul.f32 %v3926, %v3842
    %v3938 = vmul.f32 %v3926, %v3843
    %v3939 = vmul.f32 %v3926, %v3881
    %v3940 = vmul.f32 %v3926, %v3882
    %v3941 = vmul.f32 %v3926, %v3920
    %v3942 = vmul.f32 %v3926, %v3921
    %v3943 = vadd.f32 %v3904, %v3927
    %v3944 = vadd.f32 %v3905, %v3928
    %v3945 = vadd.f32 %v3906, %v3929
    %v3946 = vadd.f32 %v3907, %v3930
    %v3947 = vadd.f32 %v3908, %v3931
    %v3948 = vadd.f32 %v3909, %v3932
    %v3949 = vadd.f32 %v3910, %v3933
    %v3950 = vadd.f32 %v3911, %v3934
    %v3951 = vadd.f32 %v3912, %v3935
    %v3952 = vadd.f32 %v3913, %v3936
    %v3953 = vadd.f32 %v3914, %v3937
    %v3954 = vadd.f32 %v3915, %v3938
    %v3955 = vadd.f32 %v3916, %v3939
    %v3956 = vadd.f32 %v3917, %v3940
    %v3957 = vadd.f32 %v3918, %v3941
    %v3958 = vadd.f32 %v3919, %v3942
    %v3959 = vld [vmem:[#allocation2 + $0x170] sm:$0xff]
    %v3960 = vld [vmem:[#allocation2 + $0x178] sm:$0xff]
    %v3961 = vld [vmem:[%s1 + $0x28] sm:$0x1]
    %v3962 = vlaneseq
    %v3963 = vshrl.u32 %v3962, 7
    %v3964 = vsub.s32 0, %v3963
    %v3965 = vrot.slane %v3961, %v3964
    %v3966 = vmul.f32 %v3965, %v3702
    %v3967 = vmul.f32 %v3965, %v3703
    %v3968 = vmul.f32 %v3965, %v3725
    %v3969 = vmul.f32 %v3965, %v3726
    %v3970 = vmul.f32 %v3965, %v3764
    %v3971 = vmul.f32 %v3965, %v3765
    %v3972 = vmul.f32 %v3965, %v3803
    %v3973 = vmul.f32 %v3965, %v3804
    %v3974 = vmul.f32 %v3965, %v3842
    %v3975 = vmul.f32 %v3965, %v3843
    %v3976 = vmul.f32 %v3965, %v3881
    %v3977 = vmul.f32 %v3965, %v3882
    %v3978 = vmul.f32 %v3965, %v3920
    %v3979 = vmul.f32 %v3965, %v3921
    %v3980 = vmul.f32 %v3965, %v3959
    %v3981 = vmul.f32 %v3965, %v3960
    %v3982 = vadd.f32 %v3943, %v3966
    %v3983 = vadd.f32 %v3944, %v3967
    %v3984 = vadd.f32 %v3945, %v3968
    %v3985 = vadd.f32 %v3946, %v3969
    %v3986 = vadd.f32 %v3947, %v3970
    %v3987 = vadd.f32 %v3948, %v3971
    %v3988 = vadd.f32 %v3949, %v3972
    %v3989 = vadd.f32 %v3950, %v3973
    %v3990 = vadd.f32 %v3951, %v3974
    %v3991 = vadd.f32 %v3952, %v3975
    %v3992 = vadd.f32 %v3953, %v3976
    %v3993 = vadd.f32 %v3954, %v3977
    %v3994 = vadd.f32 %v3955, %v3978
    %v3995 = vadd.f32 %v3956, %v3979
    %v3996 = vadd.f32 %v3957, %v3980
    %v3997 = vadd.f32 %v3958, %v3981
    %v3998 = vld [vmem:[#allocation2 + $0x180] sm:$0xff]
    %v3999 = vld [vmem:[#allocation2 + $0x188] sm:$0xff]
    %v4000 = vld [vmem:[%s1 + $0x2b] sm:$0x1]
    %v4001 = vlaneseq
    %v4002 = vshrl.u32 %v4001, 7
    %v4003 = vsub.s32 0, %v4002
    %v4004 = vrot.slane %v4000, %v4003
    %v4005 = vmul.f32 %v4004, %v3725
    %v4006 = vmul.f32 %v4004, %v3726
    %v4007 = vmul.f32 %v4004, %v3764
    %v4008 = vmul.f32 %v4004, %v3765
    %v4009 = vmul.f32 %v4004, %v3803
    %v4010 = vmul.f32 %v4004, %v3804
    %v4011 = vmul.f32 %v4004, %v3842
    %v4012 = vmul.f32 %v4004, %v3843
    %v4013 = vmul.f32 %v4004, %v3881
    %v4014 = vmul.f32 %v4004, %v3882
    %v4015 = vmul.f32 %v4004, %v3920
    %v4016 = vmul.f32 %v4004, %v3921
    %v4017 = vmul.f32 %v4004, %v3959
    %v4018 = vmul.f32 %v4004, %v3960
    %v4019 = vmul.f32 %v4004, %v3998
    %v4020 = vmul.f32 %v4004, %v3999
    %v4021 = vadd.f32 %v3982, %v4005
    %v4022 = vadd.f32 %v3983, %v4006
    %v4023 = vadd.f32 %v3984, %v4007
    %v4024 = vadd.f32 %v3985, %v4008
    %v4025 = vadd.f32 %v3986, %v4009
    %v4026 = vadd.f32 %v3987, %v4010
    %v4027 = vadd.f32 %v3988, %v4011
    %v4028 = vadd.f32 %v3989, %v4012
    %v4029 = vadd.f32 %v3990, %v4013
    %v4030 = vadd.f32 %v3991, %v4014
    %v4031 = vadd.f32 %v3992, %v4015
    %v4032 = vadd.f32 %v3993, %v4016
    %v4033 = vadd.f32 %v3994, %v4017
    %v4034 = vadd.f32 %v3995, %v4018
    %v4035 = vadd.f32 %v3996, %v4019
    %v4036 = vadd.f32 %v3997, %v4020
    %v4037 = vadd.f32 %v3672, %v4021
    %v4038 = vadd.f32 %v3673, %v4022
    %v4039 = vadd.f32 %v3674, %v4023
    %v4040 = vadd.f32 %v3675, %v4024
    %v4041 = vadd.f32 %v3676, %v4025
    %v4042 = vadd.f32 %v3677, %v4026
    %v4043 = vadd.f32 %v3678, %v4027
    %v4044 = vadd.f32 %v3679, %v4028
    %v4045 = vadd.f32 %v3680, %v4029
    %v4046 = vadd.f32 %v3681, %v4030
    %v4047 = vadd.f32 %v3682, %v4031
    %v4048 = vadd.f32 %v3683, %v4032
    %v4049 = vadd.f32 %v3684, %v4033
    %v4050 = vadd.f32 %v3685, %v4034
    %v4051 = vadd.f32 %v3686, %v4035
    %v4052 = vadd.f32 %v3687, %v4036
    %v4053 = vld [vmem:[#allocation2 + $0x91] sm:$0xff]
    %v4054 = vld [vmem:[#allocation2 + $0x99] sm:$0xff]
    %v4055 = vld [vmem:[#allocation2 + $0xa1] sm:$0xff]
    %v4056 = vld [vmem:[#allocation2 + $0xa9] sm:$0xff]
    %v4057 = vld [vmem:[#allocation2 + $0xb1] sm:$0xff]
    %v4058 = vld [vmem:[#allocation2 + $0xb9] sm:$0xff]
    %v4059 = vld [vmem:[#allocation2 + $0xc1] sm:$0xff]
    %v4060 = vld [vmem:[#allocation2 + $0xc9] sm:$0xff]
    %v4061 = vld [vmem:[#allocation2 + $0xd1] sm:$0xff]
    %v4062 = vld [vmem:[#allocation2 + $0xd9] sm:$0xff]
    %v4063 = vld [vmem:[#allocation2 + $0xe1] sm:$0xff]
    %v4064 = vld [vmem:[#allocation2 + $0xe9] sm:$0xff]
    %v4065 = vld [vmem:[#allocation2 + $0xf1] sm:$0xff]
    %v4066 = vld [vmem:[#allocation2 + $0xf9] sm:$0xff]
    %v4067 = vld [vmem:[#allocation2 + $0x101] sm:$0xff]
    %v4068 = vld [vmem:[#allocation2 + $0x109] sm:$0xff]
    %v4069 = vld [vmem:[%s1 + $0x2] sm:$0x1]
    %v4070 = vlaneseq
    %v4071 = vshrl.u32 %v4070, 7
    %v4072 = vsub.s32 0, %v4071
    %v4073 = vrot.slane %v4069, %v4072
    %v4074 = vmul.f32 %v4073, %v4053
    %v4075 = vmul.f32 %v4073, %v4054
    %v4076 = vmul.f32 %v4073, %v4055
    %v4077 = vmul.f32 %v4073, %v4056
    %v4078 = vmul.f32 %v4073, %v4057
    %v4079 = vmul.f32 %v4073, %v4058
    %v4080 = vmul.f32 %v4073, %v4059
    %v4081 = vmul.f32 %v4073, %v4060
    %v4082 = vmul.f32 %v4073, %v4061
    %v4083 = vmul.f32 %v4073, %v4062
    %v4084 = vmul.f32 %v4073, %v4063
    %v4085 = vmul.f32 %v4073, %v4064
    %v4086 = vmul.f32 %v4073, %v4065
    %v4087 = vmul.f32 %v4073, %v4066
    %v4088 = vmul.f32 %v4073, %v4067
    %v4089 = vmul.f32 %v4073, %v4068
    %v4090 = vld [vmem:[#allocation2 + $0x111] sm:$0xff]
    %v4091 = vld [vmem:[#allocation2 + $0x119] sm:$0xff]
    %v4092 = vld [vmem:[%s1 + $0x5] sm:$0x1]
    %v4093 = vlaneseq
    %v4094 = vshrl.u32 %v4093, 7
    %v4095 = vsub.s32 0, %v4094
    %v4096 = vrot.slane %v4092, %v4095
    %v4097 = vmul.f32 %v4096, %v4055
    %v4098 = vmul.f32 %v4096, %v4056
    %v4099 = vmul.f32 %v4096, %v4057
    %v4100 = vmul.f32 %v4096, %v4058
    %v4101 = vmul.f32 %v4096, %v4059
    %v4102 = vmul.f32 %v4096, %v4060
    %v4103 = vmul.f32 %v4096, %v4061
    %v4104 = vmul.f32 %v4096, %v4062
    %v4105 = vmul.f32 %v4096, %v4063
    %v4106 = vmul.f32 %v4096, %v4064
    %v4107 = vmul.f32 %v4096, %v4065
    %v4108 = vmul.f32 %v4096, %v4066
    %v4109 = vmul.f32 %v4096, %v4067
    %v4110 = vmul.f32 %v4096, %v4068
    %v4111 = vmul.f32 %v4096, %v4090
    %v4112 = vmul.f32 %v4096, %v4091
    %v4113 = vadd.f32 %v4074, %v4097
    %v4114 = vadd.f32 %v4075, %v4098
    %v4115 = vadd.f32 %v4076, %v4099
    %v4116 = vadd.f32 %v4077, %v4100
    %v4117 = vadd.f32 %v4078, %v4101
    %v4118 = vadd.f32 %v4079, %v4102
    %v4119 = vadd.f32 %v4080, %v4103
    %v4120 = vadd.f32 %v4081, %v4104
    %v4121 = vadd.f32 %v4082, %v4105
    %v4122 = vadd.f32 %v4083, %v4106
    %v4123 = vadd.f32 %v4084, %v4107
    %v4124 = vadd.f32 %v4085, %v4108
    %v4125 = vadd.f32 %v4086, %v4109
    %v4126 = vadd.f32 %v4087, %v4110
    %v4127 = vadd.f32 %v4088, %v4111
    %v4128 = vadd.f32 %v4089, %v4112
    %v4129 = vld [vmem:[#allocation2 + $0x121] sm:$0xff]
    %v4130 = vld [vmem:[#allocation2 + $0x129] sm:$0xff]
    %v4131 = vld [vmem:[%s1 + $0xa] sm:$0x1]
    %v4132 = vlaneseq
    %v4133 = vshrl.u32 %v4132, 7
    %v4134 = vsub.s32 0, %v4133
    %v4135 = vrot.slane %v4131, %v4134
    %v4136 = vmul.f32 %v4135, %v4057
    %v4137 = vmul.f32 %v4135, %v4058
    %v4138 = vmul.f32 %v4135, %v4059
    %v4139 = vmul.f32 %v4135, %v4060
    %v4140 = vmul.f32 %v4135, %v4061
    %v4141 = vmul.f32 %v4135, %v4062
    %v4142 = vmul.f32 %v4135, %v4063
    %v4143 = vmul.f32 %v4135, %v4064
    %v4144 = vmul.f32 %v4135, %v4065
    %v4145 = vmul.f32 %v4135, %v4066
    %v4146 = vmul.f32 %v4135, %v4067
    %v4147 = vmul.f32 %v4135, %v4068
    %v4148 = vmul.f32 %v4135, %v4090
    %v4149 = vmul.f32 %v4135, %v4091
    %v4150 = vmul.f32 %v4135, %v4129
    %v4151 = vmul.f32 %v4135, %v4130
    %v4152 = vadd.f32 %v4113, %v4136
    %v4153 = vadd.f32 %v4114, %v4137
    %v4154 = vadd.f32 %v4115, %v4138
    %v4155 = vadd.f32 %v4116, %v4139
    %v4156 = vadd.f32 %v4117, %v4140
    %v4157 = vadd.f32 %v4118, %v4141
    %v4158 = vadd.f32 %v4119, %v4142
    %v4159 = vadd.f32 %v4120, %v4143
    %v4160 = vadd.f32 %v4121, %v4144
    %v4161 = vadd.f32 %v4122, %v4145
    %v4162 = vadd.f32 %v4123, %v4146
    %v4163 = vadd.f32 %v4124, %v4147
    %v4164 = vadd.f32 %v4125, %v4148
    %v4165 = vadd.f32 %v4126, %v4149
    %v4166 = vadd.f32 %v4127, %v4150
    %v4167 = vadd.f32 %v4128, %v4151
    %v4168 = vld [vmem:[#allocation2 + $0x131] sm:$0xff]
    %v4169 = vld [vmem:[#allocation2 + $0x139] sm:$0xff]
    %v4170 = vld [vmem:[%s1 + $0x13] sm:$0x1]
    %v4171 = vlaneseq
    %v4172 = vshrl.u32 %v4171, 7
    %v4173 = vsub.s32 0, %v4172
    %v4174 = vrot.slane %v4170, %v4173
    %v4175 = vmul.f32 %v4174, %v4059
    %v4176 = vmul.f32 %v4174, %v4060
    %v4177 = vmul.f32 %v4174, %v4061
    %v4178 = vmul.f32 %v4174, %v4062
    %v4179 = vmul.f32 %v4174, %v4063
    %v4180 = vmul.f32 %v4174, %v4064
    %v4181 = vmul.f32 %v4174, %v4065
    %v4182 = vmul.f32 %v4174, %v4066
    %v4183 = vmul.f32 %v4174, %v4067
    %v4184 = vmul.f32 %v4174, %v4068
    %v4185 = vmul.f32 %v4174, %v4090
    %v4186 = vmul.f32 %v4174, %v4091
    %v4187 = vmul.f32 %v4174, %v4129
    %v4188 = vmul.f32 %v4174, %v4130
    %v4189 = vmul.f32 %v4174, %v4168
    %v4190 = vmul.f32 %v4174, %v4169
    %v4191 = vadd.f32 %v4152, %v4175
    %v4192 = vadd.f32 %v4153, %v4176
    %v4193 = vadd.f32 %v4154, %v4177
    %v4194 = vadd.f32 %v4155, %v4178
    %v4195 = vadd.f32 %v4156, %v4179
    %v4196 = vadd.f32 %v4157, %v4180
    %v4197 = vadd.f32 %v4158, %v4181
    %v4198 = vadd.f32 %v4159, %v4182
    %v4199 = vadd.f32 %v4160, %v4183
    %v4200 = vadd.f32 %v4161, %v4184
    %v4201 = vadd.f32 %v4162, %v4185
    %v4202 = vadd.f32 %v4163, %v4186
    %v4203 = vadd.f32 %v4164, %v4187
    %v4204 = vadd.f32 %v4165, %v4188
    %v4205 = vadd.f32 %v4166, %v4189
    %v4206 = vadd.f32 %v4167, %v4190
    %v4207 = vld [vmem:[#allocation2 + $0x141] sm:$0xff]
    %v4208 = vld [vmem:[#allocation2 + $0x149] sm:$0xff]
    %v4209 = vld [vmem:[%s1 + $0x1c] sm:$0x1]
    %v4210 = vlaneseq
    %v4211 = vshrl.u32 %v4210, 7
    %v4212 = vsub.s32 0, %v4211
    %v4213 = vrot.slane %v4209, %v4212
    %v4214 = vmul.f32 %v4213, %v4061
    %v4215 = vmul.f32 %v4213, %v4062
    %v4216 = vmul.f32 %v4213, %v4063
    %v4217 = vmul.f32 %v4213, %v4064
    %v4218 = vmul.f32 %v4213, %v4065
    %v4219 = vmul.f32 %v4213, %v4066
    %v4220 = vmul.f32 %v4213, %v4067
    %v4221 = vmul.f32 %v4213, %v4068
    %v4222 = vmul.f32 %v4213, %v4090
    %v4223 = vmul.f32 %v4213, %v4091
    %v4224 = vmul.f32 %v4213, %v4129
    %v4225 = vmul.f32 %v4213, %v4130
    %v4226 = vmul.f32 %v4213, %v4168
    %v4227 = vmul.f32 %v4213, %v4169
    %v4228 = vmul.f32 %v4213, %v4207
    %v4229 = vmul.f32 %v4213, %v4208
    %v4230 = vadd.f32 %v4191, %v4214
    %v4231 = vadd.f32 %v4192, %v4215
    %v4232 = vadd.f32 %v4193, %v4216
    %v4233 = vadd.f32 %v4194, %v4217
    %v4234 = vadd.f32 %v4195, %v4218
    %v4235 = vadd.f32 %v4196, %v4219
    %v4236 = vadd.f32 %v4197, %v4220
    %v4237 = vadd.f32 %v4198, %v4221
    %v4238 = vadd.f32 %v4199, %v4222
    %v4239 = vadd.f32 %v4200, %v4223
    %v4240 = vadd.f32 %v4201, %v4224
    %v4241 = vadd.f32 %v4202, %v4225
    %v4242 = vadd.f32 %v4203, %v4226
    %v4243 = vadd.f32 %v4204, %v4227
    %v4244 = vadd.f32 %v4205, %v4228
    %v4245 = vadd.f32 %v4206, %v4229
    %v4246 = vld [vmem:[#allocation2 + $0x151] sm:$0xff]
    %v4247 = vld [vmem:[#allocation2 + $0x159] sm:$0xff]
    %v4248 = vld [vmem:[%s1 + $0x23] sm:$0x1]
    %v4249 = vlaneseq
    %v4250 = vshrl.u32 %v4249, 7
    %v4251 = vsub.s32 0, %v4250
    %v4252 = vrot.slane %v4248, %v4251
    %v4253 = vmul.f32 %v4252, %v4063
    %v4254 = vmul.f32 %v4252, %v4064
    %v4255 = vmul.f32 %v4252, %v4065
    %v4256 = vmul.f32 %v4252, %v4066
    %v4257 = vmul.f32 %v4252, %v4067
    %v4258 = vmul.f32 %v4252, %v4068
    %v4259 = vmul.f32 %v4252, %v4090
    %v4260 = vmul.f32 %v4252, %v4091
    %v4261 = vmul.f32 %v4252, %v4129
    %v4262 = vmul.f32 %v4252, %v4130
    %v4263 = vmul.f32 %v4252, %v4168
    %v4264 = vmul.f32 %v4252, %v4169
    %v4265 = vmul.f32 %v4252, %v4207
    %v4266 = vmul.f32 %v4252, %v4208
    %v4267 = vmul.f32 %v4252, %v4246
    %v4268 = vmul.f32 %v4252, %v4247
    %v4269 = vadd.f32 %v4230, %v4253
    %v4270 = vadd.f32 %v4231, %v4254
    %v4271 = vadd.f32 %v4232, %v4255
    %v4272 = vadd.f32 %v4233, %v4256
    %v4273 = vadd.f32 %v4234, %v4257
    %v4274 = vadd.f32 %v4235, %v4258
    %v4275 = vadd.f32 %v4236, %v4259
    %v4276 = vadd.f32 %v4237, %v4260
    %v4277 = vadd.f32 %v4238, %v4261
    %v4278 = vadd.f32 %v4239, %v4262
    %v4279 = vadd.f32 %v4240, %v4263
    %v4280 = vadd.f32 %v4241, %v4264
    %v4281 = vadd.f32 %v4242, %v4265
    %v4282 = vadd.f32 %v4243, %v4266
    %v4283 = vadd.f32 %v4244, %v4267
    %v4284 = vadd.f32 %v4245, %v4268
    %v4285 = vld [vmem:[#allocation2 + $0x161] sm:$0xff]
    %v4286 = vld [vmem:[#allocation2 + $0x169] sm:$0xff]
    %v4287 = vld [vmem:[%s1 + $0x26] sm:$0x1]
    %v4288 = vlaneseq
    %v4289 = vshrl.u32 %v4288, 7
    %v4290 = vsub.s32 0, %v4289
    %v4291 = vrot.slane %v4287, %v4290
    %v4292 = vmul.f32 %v4291, %v4065
    %v4293 = vmul.f32 %v4291, %v4066
    %v4294 = vmul.f32 %v4291, %v4067
    %v4295 = vmul.f32 %v4291, %v4068
    %v4296 = vmul.f32 %v4291, %v4090
    %v4297 = vmul.f32 %v4291, %v4091
    %v4298 = vmul.f32 %v4291, %v4129
    %v4299 = vmul.f32 %v4291, %v4130
    %v4300 = vmul.f32 %v4291, %v4168
    %v4301 = vmul.f32 %v4291, %v4169
    %v4302 = vmul.f32 %v4291, %v4207
    %v4303 = vmul.f32 %v4291, %v4208
    %v4304 = vmul.f32 %v4291, %v4246
    %v4305 = vmul.f32 %v4291, %v4247
    %v4306 = vmul.f32 %v4291, %v4285
    %v4307 = vmul.f32 %v4291, %v4286
    %v4308 = vadd.f32 %v4269, %v4292
    %v4309 = vadd.f32 %v4270, %v4293
    %v4310 = vadd.f32 %v4271, %v4294
    %v4311 = vadd.f32 %v4272, %v4295
    %v4312 = vadd.f32 %v4273, %v4296
    %v4313 = vadd.f32 %v4274, %v4297
    %v4314 = vadd.f32 %v4275, %v4298
    %v4315 = vadd.f32 %v4276, %v4299
    %v4316 = vadd.f32 %v4277, %v4300
    %v4317 = vadd.f32 %v4278, %v4301
    %v4318 = vadd.f32 %v4279, %v4302
    %v4319 = vadd.f32 %v4280, %v4303
    %v4320 = vadd.f32 %v4281, %v4304
    %v4321 = vadd.f32 %v4282, %v4305
    %v4322 = vadd.f32 %v4283, %v4306
    %v4323 = vadd.f32 %v4284, %v4307
    %v4324 = vld [vmem:[#allocation2 + $0x171] sm:$0xff]
    %v4325 = vld [vmem:[#allocation2 + $0x179] sm:$0xff]
    %v4326 = vld [vmem:[%s1 + $0x29] sm:$0x1]
    %v4327 = vlaneseq
    %v4328 = vshrl.u32 %v4327, 7
    %v4329 = vsub.s32 0, %v4328
    %v4330 = vrot.slane %v4326, %v4329
    %v4331 = vmul.f32 %v4330, %v4067
    %v4332 = vmul.f32 %v4330, %v4068
    %v4333 = vmul.f32 %v4330, %v4090
    %v4334 = vmul.f32 %v4330, %v4091
    %v4335 = vmul.f32 %v4330, %v4129
    %v4336 = vmul.f32 %v4330, %v4130
    %v4337 = vmul.f32 %v4330, %v4168
    %v4338 = vmul.f32 %v4330, %v4169
    %v4339 = vmul.f32 %v4330, %v4207
    %v4340 = vmul.f32 %v4330, %v4208
    %v4341 = vmul.f32 %v4330, %v4246
    %v4342 = vmul.f32 %v4330, %v4247
    %v4343 = vmul.f32 %v4330, %v4285
    %v4344 = vmul.f32 %v4330, %v4286
    %v4345 = vmul.f32 %v4330, %v4324
    %v4346 = vmul.f32 %v4330, %v4325
    %v4347 = vadd.f32 %v4308, %v4331
    %v4348 = vadd.f32 %v4309, %v4332
    %v4349 = vadd.f32 %v4310, %v4333
    %v4350 = vadd.f32 %v4311, %v4334
    %v4351 = vadd.f32 %v4312, %v4335
    %v4352 = vadd.f32 %v4313, %v4336
    %v4353 = vadd.f32 %v4314, %v4337
    %v4354 = vadd.f32 %v4315, %v4338
    %v4355 = vadd.f32 %v4316, %v4339
    %v4356 = vadd.f32 %v4317, %v4340
    %v4357 = vadd.f32 %v4318, %v4341
    %v4358 = vadd.f32 %v4319, %v4342
    %v4359 = vadd.f32 %v4320, %v4343
    %v4360 = vadd.f32 %v4321, %v4344
    %v4361 = vadd.f32 %v4322, %v4345
    %v4362 = vadd.f32 %v4323, %v4346
    %v4363 = vld [vmem:[#allocation2 + $0x181] sm:$0xff]
    %v4364 = vld [vmem:[#allocation2 + $0x189] sm:$0xff]
    %v4365 = vld [vmem:[%s1 + $0x2c] sm:$0x1]
    %v4366 = vlaneseq
    %v4367 = vshrl.u32 %v4366, 7
    %v4368 = vsub.s32 0, %v4367
    %v4369 = vrot.slane %v4365, %v4368
    %v4370 = vmul.f32 %v4369, %v4090
    %v4371 = vmul.f32 %v4369, %v4091
    %v4372 = vmul.f32 %v4369, %v4129
    %v4373 = vmul.f32 %v4369, %v4130
    %v4374 = vmul.f32 %v4369, %v4168
    %v4375 = vmul.f32 %v4369, %v4169
    %v4376 = vmul.f32 %v4369, %v4207
    %v4377 = vmul.f32 %v4369, %v4208
    %v4378 = vmul.f32 %v4369, %v4246
    %v4379 = vmul.f32 %v4369, %v4247
    %v4380 = vmul.f32 %v4369, %v4285
    %v4381 = vmul.f32 %v4369, %v4286
    %v4382 = vmul.f32 %v4369, %v4324
    %v4383 = vmul.f32 %v4369, %v4325
    %v4384 = vmul.f32 %v4369, %v4363
    %v4385 = vmul.f32 %v4369, %v4364
    %v4386 = vadd.f32 %v4347, %v4370
    %v4387 = vadd.f32 %v4348, %v4371
    %v4388 = vadd.f32 %v4349, %v4372
    %v4389 = vadd.f32 %v4350, %v4373
    %v4390 = vadd.f32 %v4351, %v4374
    %v4391 = vadd.f32 %v4352, %v4375
    %v4392 = vadd.f32 %v4353, %v4376
    %v4393 = vadd.f32 %v4354, %v4377
    %v4394 = vadd.f32 %v4355, %v4378
    %v4395 = vadd.f32 %v4356, %v4379
    %v4396 = vadd.f32 %v4357, %v4380
    %v4397 = vadd.f32 %v4358, %v4381
    %v4398 = vadd.f32 %v4359, %v4382
    %v4399 = vadd.f32 %v4360, %v4383
    %v4400 = vadd.f32 %v4361, %v4384
    %v4401 = vadd.f32 %v4362, %v4385
    %v4402 = vsel %vm2235, %v4386, 0.0
    %v4403 = vsel %vm2236, %v4387, 0.0
    %v4404 = vsel %vm2237, %v4388, 0.0
    %v4405 = vsel %vm2238, %v4389, 0.0
    %v4406 = vsel %vm2239, %v4390, 0.0
    %v4407 = vsel %vm2240, %v4391, 0.0
    %v4408 = vsel %vm2241, %v4392, 0.0
    %v4409 = vsel %vm2242, %v4393, 0.0
    %v4410 = vsel %vm2243, %v4394, 0.0
    %v4411 = vsel %vm2244, %v4395, 0.0
    %v4412 = vsel %vm2245, %v4396, 0.0
    %v4413 = vsel %vm2246, %v4397, 0.0
    %v4414 = vsel %vm2247, %v4398, 0.0
    %v4415 = vsel %vm2248, %v4399, 0.0
    %v4416 = vsel %vm2249, %v4400, 0.0
    %v4417 = vsel %vm2250, %v4401, 0.0
    %v4418 = vadd.f32 %v4037, %v4402
    %v4419 = vadd.f32 %v4038, %v4403
    %v4420 = vadd.f32 %v4039, %v4404
    %v4421 = vadd.f32 %v4040, %v4405
    %v4422 = vadd.f32 %v4041, %v4406
    %v4423 = vadd.f32 %v4042, %v4407
    %v4424 = vadd.f32 %v4043, %v4408
    %v4425 = vadd.f32 %v4044, %v4409
    %v4426 = vadd.f32 %v4045, %v4410
    %v4427 = vadd.f32 %v4046, %v4411
    %v4428 = vadd.f32 %v4047, %v4412
    %v4429 = vadd.f32 %v4048, %v4413
    %v4430 = vadd.f32 %v4049, %v4414
    %v4431 = vadd.f32 %v4050, %v4415
    %v4432 = vadd.f32 %v4051, %v4416
    %v4433 = vadd.f32 %v4052, %v4417
    %v4434 = vld [vmem:[#allocation2 + $0xb2] sm:$0xff]
    %v4435 = vld [vmem:[#allocation2 + $0xba] sm:$0xff]
    %v4436 = vld [vmem:[#allocation2 + $0xc2] sm:$0xff]
    %v4437 = vld [vmem:[#allocation2 + $0xca] sm:$0xff]
    %v4438 = vld [vmem:[#allocation2 + $0xd2] sm:$0xff]
    %v4439 = vld [vmem:[#allocation2 + $0xda] sm:$0xff]
    %v4440 = vld [vmem:[#allocation2 + $0xe2] sm:$0xff]
    %v4441 = vld [vmem:[#allocation2 + $0xea] sm:$0xff]
    %v4442 = vld [vmem:[#allocation2 + $0xf2] sm:$0xff]
    %v4443 = vld [vmem:[#allocation2 + $0xfa] sm:$0xff]
    %v4444 = vld [vmem:[#allocation2 + $0x102] sm:$0xff]
    %v4445 = vld [vmem:[#allocation2 + $0x10a] sm:$0xff]
    %v4446 = vld [vmem:[#allocation2 + $0x112] sm:$0xff]
    %v4447 = vld [vmem:[#allocation2 + $0x11a] sm:$0xff]
    %v4448 = vld [vmem:[#allocation2 + $0x122] sm:$0xff]
    %v4449 = vld [vmem:[#allocation2 + $0x12a] sm:$0xff]
    %v4450 = vld [vmem:[%s1 + $0xb] sm:$0x1]
    %v4451 = vlaneseq
    %v4452 = vshrl.u32 %v4451, 7
    %v4453 = vsub.s32 0, %v4452
    %v4454 = vrot.slane %v4450, %v4453
    %v4455 = vmul.f32 %v4454, %v4434
    %v4456 = vmul.f32 %v4454, %v4435
    %v4457 = vmul.f32 %v4454, %v4436
    %v4458 = vmul.f32 %v4454, %v4437
    %v4459 = vmul.f32 %v4454, %v4438
    %v4460 = vmul.f32 %v4454, %v4439
    %v4461 = vmul.f32 %v4454, %v4440
    %v4462 = vmul.f32 %v4454, %v4441
    %v4463 = vmul.f32 %v4454, %v4442
    %v4464 = vmul.f32 %v4454, %v4443
    %v4465 = vmul.f32 %v4454, %v4444
    %v4466 = vmul.f32 %v4454, %v4445
    %v4467 = vmul.f32 %v4454, %v4446
    %v4468 = vmul.f32 %v4454, %v4447
    %v4469 = vmul.f32 %v4454, %v4448
    %v4470 = vmul.f32 %v4454, %v4449
    %v4471 = vld [vmem:[#allocation2 + $0x132] sm:$0xff]
    %v4472 = vld [vmem:[#allocation2 + $0x13a] sm:$0xff]
    %v4473 = vld [vmem:[%s1 + $0x14] sm:$0x1]
    %v4474 = vlaneseq
    %v4475 = vshrl.u32 %v4474, 7
    %v4476 = vsub.s32 0, %v4475
    %v4477 = vrot.slane %v4473, %v4476
    %v4478 = vmul.f32 %v4477, %v4436
    %v4479 = vmul.f32 %v4477, %v4437
    %v4480 = vmul.f32 %v4477, %v4438
    %v4481 = vmul.f32 %v4477, %v4439
    %v4482 = vmul.f32 %v4477, %v4440
    %v4483 = vmul.f32 %v4477, %v4441
    %v4484 = vmul.f32 %v4477, %v4442
    %v4485 = vmul.f32 %v4477, %v4443
    %v4486 = vmul.f32 %v4477, %v4444
    %v4487 = vmul.f32 %v4477, %v4445
    %v4488 = vmul.f32 %v4477, %v4446
    %v4489 = vmul.f32 %v4477, %v4447
    %v4490 = vmul.f32 %v4477, %v4448
    %v4491 = vmul.f32 %v4477, %v4449
    %v4492 = vmul.f32 %v4477, %v4471
    %v4493 = vmul.f32 %v4477, %v4472
    %v4494 = vadd.f32 %v4455, %v4478
    %v4495 = vadd.f32 %v4456, %v4479
    %v4496 = vadd.f32 %v4457, %v4480
    %v4497 = vadd.f32 %v4458, %v4481
    %v4498 = vadd.f32 %v4459, %v4482
    %v4499 = vadd.f32 %v4460, %v4483
    %v4500 = vadd.f32 %v4461, %v4484
    %v4501 = vadd.f32 %v4462, %v4485
    %v4502 = vadd.f32 %v4463, %v4486
    %v4503 = vadd.f32 %v4464, %v4487
    %v4504 = vadd.f32 %v4465, %v4488
    %v4505 = vadd.f32 %v4466, %v4489
    %v4506 = vadd.f32 %v4467, %v4490
    %v4507 = vadd.f32 %v4468, %v4491
    %v4508 = vadd.f32 %v4469, %v4492
    %v4509 = vadd.f32 %v4470, %v4493
    %v4510 = vld [vmem:[#allocation2 + $0x142] sm:$0xff]
    %v4511 = vld [vmem:[#allocation2 + $0x14a] sm:$0xff]
    %v4512 = vld [vmem:[%s1 + $0x1d] sm:$0x1]
    %v4513 = vlaneseq
    %v4514 = vshrl.u32 %v4513, 7
    %v4515 = vsub.s32 0, %v4514
    %v4516 = vrot.slane %v4512, %v4515
    %v4517 = vmul.f32 %v4516, %v4438
    %v4518 = vmul.f32 %v4516, %v4439
    %v4519 = vmul.f32 %v4516, %v4440
    %v4520 = vmul.f32 %v4516, %v4441
    %v4521 = vmul.f32 %v4516, %v4442
    %v4522 = vmul.f32 %v4516, %v4443
    %v4523 = vmul.f32 %v4516, %v4444
    %v4524 = vmul.f32 %v4516, %v4445
    %v4525 = vmul.f32 %v4516, %v4446
    %v4526 = vmul.f32 %v4516, %v4447
    %v4527 = vmul.f32 %v4516, %v4448
    %v4528 = vmul.f32 %v4516, %v4449
    %v4529 = vmul.f32 %v4516, %v4471
    %v4530 = vmul.f32 %v4516, %v4472
    %v4531 = vmul.f32 %v4516, %v4510
    %v4532 = vmul.f32 %v4516, %v4511
    %v4533 = vadd.f32 %v4494, %v4517
    %v4534 = vadd.f32 %v4495, %v4518
    %v4535 = vadd.f32 %v4496, %v4519
    %v4536 = vadd.f32 %v4497, %v4520
    %v4537 = vadd.f32 %v4498, %v4521
    %v4538 = vadd.f32 %v4499, %v4522
    %v4539 = vadd.f32 %v4500, %v4523
    %v4540 = vadd.f32 %v4501, %v4524
    %v4541 = vadd.f32 %v4502, %v4525
    %v4542 = vadd.f32 %v4503, %v4526
    %v4543 = vadd.f32 %v4504, %v4527
    %v4544 = vadd.f32 %v4505, %v4528
    %v4545 = vadd.f32 %v4506, %v4529
    %v4546 = vadd.f32 %v4507, %v4530
    %v4547 = vadd.f32 %v4508, %v4531
    %v4548 = vadd.f32 %v4509, %v4532
    %v4549 = vsel %vm2414, %v4533, 0.0
    %v4550 = vsel %vm2415, %v4534, 0.0
    %v4551 = vsel %vm2416, %v4535, 0.0
    %v4552 = vsel %vm2417, %v4536, 0.0
    %v4553 = vsel %vm2418, %v4537, 0.0
    %v4554 = vsel %vm2419, %v4538, 0.0
    %v4555 = vsel %vm2420, %v4539, 0.0
    %v4556 = vsel %vm2421, %v4540, 0.0
    %v4557 = vsel %vm2422, %v4541, 0.0
    %v4558 = vsel %vm2423, %v4542, 0.0
    %v4559 = vsel %vm2424, %v4543, 0.0
    %v4560 = vsel %vm2425, %v4544, 0.0
    %v4561 = vsel %vm2426, %v4545, 0.0
    %v4562 = vsel %vm2427, %v4546, 0.0
    %v4563 = vsel %vm2428, %v4547, 0.0
    %v4564 = vsel %vm2429, %v4548, 0.0
    %v4565 = vadd.f32 %v4418, %v4549
    %v4566 = vadd.f32 %v4419, %v4550
    %v4567 = vadd.f32 %v4420, %v4551
    %v4568 = vadd.f32 %v4421, %v4552
    %v4569 = vadd.f32 %v4422, %v4553
    %v4570 = vadd.f32 %v4423, %v4554
    %v4571 = vadd.f32 %v4424, %v4555
    %v4572 = vadd.f32 %v4425, %v4556
    %v4573 = vadd.f32 %v4426, %v4557
    %v4574 = vadd.f32 %v4427, %v4558
    %v4575 = vadd.f32 %v4428, %v4559
    %v4576 = vadd.f32 %v4429, %v4560
    %v4577 = vadd.f32 %v4430, %v4561
    %v4578 = vadd.f32 %v4431, %v4562
    %v4579 = vadd.f32 %v4432, %v4563
    %v4580 = vadd.f32 %v4433, %v4564
    %v4581 = vld [vmem:[#allocation2 + $0xb3] sm:$0xff]
    %v4582 = vld [vmem:[#allocation2 + $0xbb] sm:$0xff]
    %v4583 = vld [vmem:[#allocation2 + $0xc3] sm:$0xff]
    %v4584 = vld [vmem:[#allocation2 + $0xcb] sm:$0xff]
    %v4585 = vld [vmem:[#allocation2 + $0xd3] sm:$0xff]
    %v4586 = vld [vmem:[#allocation2 + $0xdb] sm:$0xff]
    %v4587 = vld [vmem:[#allocation2 + $0xe3] sm:$0xff]
    %v4588 = vld [vmem:[#allocation2 + $0xeb] sm:$0xff]
    %v4589 = vld [vmem:[#allocation2 + $0xf3] sm:$0xff]
    %v4590 = vld [vmem:[#allocation2 + $0xfb] sm:$0xff]
    %v4591 = vld [vmem:[#allocation2 + $0x103] sm:$0xff]
    %v4592 = vld [vmem:[#allocation2 + $0x10b] sm:$0xff]
    %v4593 = vld [vmem:[#allocation2 + $0x113] sm:$0xff]
    %v4594 = vld [vmem:[#allocation2 + $0x11b] sm:$0xff]
    %v4595 = vld [vmem:[#allocation2 + $0x123] sm:$0xff]
    %v4596 = vld [vmem:[#allocation2 + $0x12b] sm:$0xff]
    %v4597 = vld [vmem:[%s1 + $0xc] sm:$0x1]
    %v4598 = vlaneseq
    %v4599 = vshrl.u32 %v4598, 7
    %v4600 = vsub.s32 0, %v4599
    %v4601 = vrot.slane %v4597, %v4600
    %v4602 = vmul.f32 %v4601, %v4581
    %v4603 = vmul.f32 %v4601, %v4582
    %v4604 = vmul.f32 %v4601, %v4583
    %v4605 = vmul.f32 %v4601, %v4584
    %v4606 = vmul.f32 %v4601, %v4585
    %v4607 = vmul.f32 %v4601, %v4586
    %v4608 = vmul.f32 %v4601, %v4587
    %v4609 = vmul.f32 %v4601, %v4588
    %v4610 = vmul.f32 %v4601, %v4589
    %v4611 = vmul.f32 %v4601, %v4590
    %v4612 = vmul.f32 %v4601, %v4591
    %v4613 = vmul.f32 %v4601, %v4592
    %v4614 = vmul.f32 %v4601, %v4593
    %v4615 = vmul.f32 %v4601, %v4594
    %v4616 = vmul.f32 %v4601, %v4595
    %v4617 = vmul.f32 %v4601, %v4596
    %v4618 = vld [vmem:[#allocation2 + $0x133] sm:$0xff]
    %v4619 = vld [vmem:[#allocation2 + $0x13b] sm:$0xff]
    %v4620 = vld [vmem:[%s1 + $0x15] sm:$0x1]
    %v4621 = vlaneseq
    %v4622 = vshrl.u32 %v4621, 7
    %v4623 = vsub.s32 0, %v4622
    %v4624 = vrot.slane %v4620, %v4623
    %v4625 = vmul.f32 %v4624, %v4583
    %v4626 = vmul.f32 %v4624, %v4584
    %v4627 = vmul.f32 %v4624, %v4585
    %v4628 = vmul.f32 %v4624, %v4586
    %v4629 = vmul.f32 %v4624, %v4587
    %v4630 = vmul.f32 %v4624, %v4588
    %v4631 = vmul.f32 %v4624, %v4589
    %v4632 = vmul.f32 %v4624, %v4590
    %v4633 = vmul.f32 %v4624, %v4591
    %v4634 = vmul.f32 %v4624, %v4592
    %v4635 = vmul.f32 %v4624, %v4593
    %v4636 = vmul.f32 %v4624, %v4594
    %v4637 = vmul.f32 %v4624, %v4595
    %v4638 = vmul.f32 %v4624, %v4596
    %v4639 = vmul.f32 %v4624, %v4618
    %v4640 = vmul.f32 %v4624, %v4619
    %v4641 = vadd.f32 %v4602, %v4625
    %v4642 = vadd.f32 %v4603, %v4626
    %v4643 = vadd.f32 %v4604, %v4627
    %v4644 = vadd.f32 %v4605, %v4628
    %v4645 = vadd.f32 %v4606, %v4629
    %v4646 = vadd.f32 %v4607, %v4630
    %v4647 = vadd.f32 %v4608, %v4631
    %v4648 = vadd.f32 %v4609, %v4632
    %v4649 = vadd.f32 %v4610, %v4633
    %v4650 = vadd.f32 %v4611, %v4634
    %v4651 = vadd.f32 %v4612, %v4635
    %v4652 = vadd.f32 %v4613, %v4636
    %v4653 = vadd.f32 %v4614, %v4637
    %v4654 = vadd.f32 %v4615, %v4638
    %v4655 = vadd.f32 %v4616, %v4639
    %v4656 = vadd.f32 %v4617, %v4640
    %v4657 = vld [vmem:[#allocation2 + $0x143] sm:$0xff]
    %v4658 = vld [vmem:[#allocation2 + $0x14b] sm:$0xff]
    %v4659 = vld [vmem:[%s1 + $0x1e] sm:$0x1]
    %v4660 = vlaneseq
    %v4661 = vshrl.u32 %v4660, 7
    %v4662 = vsub.s32 0, %v4661
    %v4663 = vrot.slane %v4659, %v4662
    %v4664 = vmul.f32 %v4663, %v4585
    %v4665 = vmul.f32 %v4663, %v4586
    %v4666 = vmul.f32 %v4663, %v4587
    %v4667 = vmul.f32 %v4663, %v4588
    %v4668 = vmul.f32 %v4663, %v4589
    %v4669 = vmul.f32 %v4663, %v4590
    %v4670 = vmul.f32 %v4663, %v4591
    %v4671 = vmul.f32 %v4663, %v4592
    %v4672 = vmul.f32 %v4663, %v4593
    %v4673 = vmul.f32 %v4663, %v4594
    %v4674 = vmul.f32 %v4663, %v4595
    %v4675 = vmul.f32 %v4663, %v4596
    %v4676 = vmul.f32 %v4663, %v4618
    %v4677 = vmul.f32 %v4663, %v4619
    %v4678 = vmul.f32 %v4663, %v4657
    %v4679 = vmul.f32 %v4663, %v4658
    %v4680 = vadd.f32 %v4641, %v4664
    %v4681 = vadd.f32 %v4642, %v4665
    %v4682 = vadd.f32 %v4643, %v4666
    %v4683 = vadd.f32 %v4644, %v4667
    %v4684 = vadd.f32 %v4645, %v4668
    %v4685 = vadd.f32 %v4646, %v4669
    %v4686 = vadd.f32 %v4647, %v4670
    %v4687 = vadd.f32 %v4648, %v4671
    %v4688 = vadd.f32 %v4649, %v4672
    %v4689 = vadd.f32 %v4650, %v4673
    %v4690 = vadd.f32 %v4651, %v4674
    %v4691 = vadd.f32 %v4652, %v4675
    %v4692 = vadd.f32 %v4653, %v4676
    %v4693 = vadd.f32 %v4654, %v4677
    %v4694 = vadd.f32 %v4655, %v4678
    %v4695 = vadd.f32 %v4656, %v4679
    %v4696 = vsel %vm2593, %v4680, 0.0
    %v4697 = vsel %vm2594, %v4681, 0.0
    %v4698 = vsel %vm2595, %v4682, 0.0
    %v4699 = vsel %vm2596, %v4683, 0.0
    %v4700 = vsel %vm2597, %v4684, 0.0
    %v4701 = vsel %vm2598, %v4685, 0.0
    %v4702 = vsel %vm2599, %v4686, 0.0
    %v4703 = vsel %vm2600, %v4687, 0.0
    %v4704 = vsel %vm2601, %v4688, 0.0
    %v4705 = vsel %vm2602, %v4689, 0.0
    %v4706 = vsel %vm2603, %v4690, 0.0
    %v4707 = vsel %vm2604, %v4691, 0.0
    %v4708 = vsel %vm2605, %v4692, 0.0
    %v4709 = vsel %vm2606, %v4693, 0.0
    %v4710 = vsel %vm2607, %v4694, 0.0
    %v4711 = vsel %vm2608, %v4695, 0.0
    %v4712 = vadd.f32 %v4565, %v4696
    %v4713 = vadd.f32 %v4566, %v4697
    %v4714 = vadd.f32 %v4567, %v4698
    %v4715 = vadd.f32 %v4568, %v4699
    %v4716 = vadd.f32 %v4569, %v4700
    %v4717 = vadd.f32 %v4570, %v4701
    %v4718 = vadd.f32 %v4571, %v4702
    %v4719 = vadd.f32 %v4572, %v4703
    %v4720 = vadd.f32 %v4573, %v4704
    %v4721 = vadd.f32 %v4574, %v4705
    %v4722 = vadd.f32 %v4575, %v4706
    %v4723 = vadd.f32 %v4576, %v4707
    %v4724 = vadd.f32 %v4577, %v4708
    %v4725 = vadd.f32 %v4578, %v4709
    %v4726 = vadd.f32 %v4579, %v4710
    %v4727 = vadd.f32 %v4580, %v4711
    %v4728 = vld [vmem:[#allocation2 + $0xb4] sm:$0xff]
    %v4729 = vld [vmem:[#allocation2 + $0xbc] sm:$0xff]
    %v4730 = vld [vmem:[#allocation2 + $0xc4] sm:$0xff]
    %v4731 = vld [vmem:[#allocation2 + $0xcc] sm:$0xff]
    %v4732 = vld [vmem:[#allocation2 + $0xd4] sm:$0xff]
    %v4733 = vld [vmem:[#allocation2 + $0xdc] sm:$0xff]
    %v4734 = vld [vmem:[#allocation2 + $0xe4] sm:$0xff]
    %v4735 = vld [vmem:[#allocation2 + $0xec] sm:$0xff]
    %v4736 = vld [vmem:[#allocation2 + $0xf4] sm:$0xff]
    %v4737 = vld [vmem:[#allocation2 + $0xfc] sm:$0xff]
    %v4738 = vld [vmem:[#allocation2 + $0x104] sm:$0xff]
    %v4739 = vld [vmem:[#allocation2 + $0x10c] sm:$0xff]
    %v4740 = vld [vmem:[#allocation2 + $0x114] sm:$0xff]
    %v4741 = vld [vmem:[#allocation2 + $0x11c] sm:$0xff]
    %v4742 = vld [vmem:[#allocation2 + $0x124] sm:$0xff]
    %v4743 = vld [vmem:[#allocation2 + $0x12c] sm:$0xff]
    %v4744 = vld [vmem:[%s1 + $0xd] sm:$0x1]
    %v4745 = vlaneseq
    %v4746 = vshrl.u32 %v4745, 7
    %v4747 = vsub.s32 0, %v4746
    %v4748 = vrot.slane %v4744, %v4747
    %v4749 = vmul.f32 %v4748, %v4728
    %v4750 = vmul.f32 %v4748, %v4729
    %v4751 = vmul.f32 %v4748, %v4730
    %v4752 = vmul.f32 %v4748, %v4731
    %v4753 = vmul.f32 %v4748, %v4732
    %v4754 = vmul.f32 %v4748, %v4733
    %v4755 = vmul.f32 %v4748, %v4734
    %v4756 = vmul.f32 %v4748, %v4735
    %v4757 = vmul.f32 %v4748, %v4736
    %v4758 = vmul.f32 %v4748, %v4737
    %v4759 = vmul.f32 %v4748, %v4738
    %v4760 = vmul.f32 %v4748, %v4739
    %v4761 = vmul.f32 %v4748, %v4740
    %v4762 = vmul.f32 %v4748, %v4741
    %v4763 = vmul.f32 %v4748, %v4742
    %v4764 = vmul.f32 %v4748, %v4743
    %v4765 = vld [vmem:[#allocation2 + $0x134] sm:$0xff]
    %v4766 = vld [vmem:[#allocation2 + $0x13c] sm:$0xff]
    %v4767 = vld [vmem:[%s1 + $0x16] sm:$0x1]
    %v4768 = vlaneseq
    %v4769 = vshrl.u32 %v4768, 7
    %v4770 = vsub.s32 0, %v4769
    %v4771 = vrot.slane %v4767, %v4770
    %v4772 = vmul.f32 %v4771, %v4730
    %v4773 = vmul.f32 %v4771, %v4731
    %v4774 = vmul.f32 %v4771, %v4732
    %v4775 = vmul.f32 %v4771, %v4733
    %v4776 = vmul.f32 %v4771, %v4734
    %v4777 = vmul.f32 %v4771, %v4735
    %v4778 = vmul.f32 %v4771, %v4736
    %v4779 = vmul.f32 %v4771, %v4737
    %v4780 = vmul.f32 %v4771, %v4738
    %v4781 = vmul.f32 %v4771, %v4739
    %v4782 = vmul.f32 %v4771, %v4740
    %v4783 = vmul.f32 %v4771, %v4741
    %v4784 = vmul.f32 %v4771, %v4742
    %v4785 = vmul.f32 %v4771, %v4743
    %v4786 = vmul.f32 %v4771, %v4765
    %v4787 = vmul.f32 %v4771, %v4766
    %v4788 = vadd.f32 %v4749, %v4772
    %v4789 = vadd.f32 %v4750, %v4773
    %v4790 = vadd.f32 %v4751, %v4774
    %v4791 = vadd.f32 %v4752, %v4775
    %v4792 = vadd.f32 %v4753, %v4776
    %v4793 = vadd.f32 %v4754, %v4777
    %v4794 = vadd.f32 %v4755, %v4778
    %v4795 = vadd.f32 %v4756, %v4779
    %v4796 = vadd.f32 %v4757, %v4780
    %v4797 = vadd.f32 %v4758, %v4781
    %v4798 = vadd.f32 %v4759, %v4782
    %v4799 = vadd.f32 %v4760, %v4783
    %v4800 = vadd.f32 %v4761, %v4784
    %v4801 = vadd.f32 %v4762, %v4785
    %v4802 = vadd.f32 %v4763, %v4786
    %v4803 = vadd.f32 %v4764, %v4787
    %v4804 = vld [vmem:[#allocation2 + $0x144] sm:$0xff]
    %v4805 = vld [vmem:[#allocation2 + $0x14c] sm:$0xff]
    %v4806 = vld [vmem:[%s1 + $0x1f] sm:$0x1]
    %v4807 = vlaneseq
    %v4808 = vshrl.u32 %v4807, 7
    %v4809 = vsub.s32 0, %v4808
    %v4810 = vrot.slane %v4806, %v4809
    %v4811 = vmul.f32 %v4810, %v4732
    %v4812 = vmul.f32 %v4810, %v4733
    %v4813 = vmul.f32 %v4810, %v4734
    %v4814 = vmul.f32 %v4810, %v4735
    %v4815 = vmul.f32 %v4810, %v4736
    %v4816 = vmul.f32 %v4810, %v4737
    %v4817 = vmul.f32 %v4810, %v4738
    %v4818 = vmul.f32 %v4810, %v4739
    %v4819 = vmul.f32 %v4810, %v4740
    %v4820 = vmul.f32 %v4810, %v4741
    %v4821 = vmul.f32 %v4810, %v4742
    %v4822 = vmul.f32 %v4810, %v4743
    %v4823 = vmul.f32 %v4810, %v4765
    %v4824 = vmul.f32 %v4810, %v4766
    %v4825 = vmul.f32 %v4810, %v4804
    %v4826 = vmul.f32 %v4810, %v4805
    %v4827 = vadd.f32 %v4788, %v4811
    %v4828 = vadd.f32 %v4789, %v4812
    %v4829 = vadd.f32 %v4790, %v4813
    %v4830 = vadd.f32 %v4791, %v4814
    %v4831 = vadd.f32 %v4792, %v4815
    %v4832 = vadd.f32 %v4793, %v4816
    %v4833 = vadd.f32 %v4794, %v4817
    %v4834 = vadd.f32 %v4795, %v4818
    %v4835 = vadd.f32 %v4796, %v4819
    %v4836 = vadd.f32 %v4797, %v4820
    %v4837 = vadd.f32 %v4798, %v4821
    %v4838 = vadd.f32 %v4799, %v4822
    %v4839 = vadd.f32 %v4800, %v4823
    %v4840 = vadd.f32 %v4801, %v4824
    %v4841 = vadd.f32 %v4802, %v4825
    %v4842 = vadd.f32 %v4803, %v4826
    %v4843 = vsel %vm2772, %v4827, 0.0
    %v4844 = vsel %vm2773, %v4828, 0.0
    %v4845 = vsel %vm2774, %v4829, 0.0
    %v4846 = vsel %vm2775, %v4830, 0.0
    %v4847 = vsel %vm2776, %v4831, 0.0
    %v4848 = vsel %vm2777, %v4832, 0.0
    %v4849 = vsel %vm2778, %v4833, 0.0
    %v4850 = vsel %vm2779, %v4834, 0.0
    %v4851 = vsel %vm2780, %v4835, 0.0
    %v4852 = vsel %vm2781, %v4836, 0.0
    %v4853 = vsel %vm2782, %v4837, 0.0
    %v4854 = vsel %vm2783, %v4838, 0.0
    %v4855 = vsel %vm2784, %v4839, 0.0
    %v4856 = vsel %vm2785, %v4840, 0.0
    %v4857 = vsel %vm2786, %v4841, 0.0
    %v4858 = vsel %vm2787, %v4842, 0.0
    %v4859 = vadd.f32 %v4712, %v4843
    %v4860 = vadd.f32 %v4713, %v4844
    %v4861 = vadd.f32 %v4714, %v4845
    %v4862 = vadd.f32 %v4715, %v4846
    %v4863 = vadd.f32 %v4716, %v4847
    %v4864 = vadd.f32 %v4717, %v4848
    %v4865 = vadd.f32 %v4718, %v4849
    %v4866 = vadd.f32 %v4719, %v4850
    %v4867 = vadd.f32 %v4720, %v4851
    %v4868 = vadd.f32 %v4721, %v4852
    %v4869 = vadd.f32 %v4722, %v4853
    %v4870 = vadd.f32 %v4723, %v4854
    %v4871 = vadd.f32 %v4724, %v4855
    %v4872 = vadd.f32 %v4725, %v4856
    %v4873 = vadd.f32 %v4726, %v4857
    %v4874 = vadd.f32 %v4727, %v4858
    %v4875 = vld [vmem:[%s1 + $0xe] sm:$0x1]
    %v4876 = vlaneseq
    %v4877 = vshrl.u32 %v4876, 7
    %v4878 = vsub.s32 0, %v4877
    %v4879 = vrot.slane %v4875, %v4878
    %v4880 = vmul.f32 %v4879, %v3014
    %v4881 = vmul.f32 %v4879, %v3015
    %v4882 = vmul.f32 %v4879, %v3016
    %v4883 = vmul.f32 %v4879, %v3017
    %v4884 = vmul.f32 %v4879, %v3018
    %v4885 = vmul.f32 %v4879, %v3019
    %v4886 = vmul.f32 %v4879, %v3020
    %v4887 = vmul.f32 %v4879, %v3021
    %v4888 = vmul.f32 %v4879, %v3022
    %v4889 = vmul.f32 %v4879, %v3023
    %v4890 = vmul.f32 %v4879, %v3024
    %v4891 = vmul.f32 %v4879, %v3025
    %v4892 = vmul.f32 %v4879, %v3026
    %v4893 = vmul.f32 %v4879, %v3027
    %v4894 = vmul.f32 %v4879, %v3028
    %v4895 = vmul.f32 %v4879, %v3050
    %v4896 = vld [vmem:[%s1 + $0x17] sm:$0x1]
    %v4897 = vlaneseq
    %v4898 = vshrl.u32 %v4897, 7
    %v4899 = vsub.s32 0, %v4898
    %v4900 = vrot.slane %v4896, %v4899
    %v4901 = vmul.f32 %v4900, %v3016
    %v4902 = vmul.f32 %v4900, %v3017
    %v4903 = vmul.f32 %v4900, %v3018
    %v4904 = vmul.f32 %v4900, %v3019
    %v4905 = vmul.f32 %v4900, %v3020
    %v4906 = vmul.f32 %v4900, %v3021
    %v4907 = vmul.f32 %v4900, %v3022
    %v4908 = vmul.f32 %v4900, %v3023
    %v4909 = vmul.f32 %v4900, %v3024
    %v4910 = vmul.f32 %v4900, %v3025
    %v4911 = vmul.f32 %v4900, %v3026
    %v4912 = vmul.f32 %v4900, %v3027
    %v4913 = vmul.f32 %v4900, %v3028
    %v4914 = vmul.f32 %v4900, %v3050
    %v4915 = vmul.f32 %v4900, %v3051
    %v4916 = vmul.f32 %v4900, %v3089
    %v4917 = vadd.f32 %v4880, %v4901
    %v4918 = vadd.f32 %v4881, %v4902
    %v4919 = vadd.f32 %v4882, %v4903
    %v4920 = vadd.f32 %v4883, %v4904
    %v4921 = vadd.f32 %v4884, %v4905
    %v4922 = vadd.f32 %v4885, %v4906
    %v4923 = vadd.f32 %v4886, %v4907
    %v4924 = vadd.f32 %v4887, %v4908
    %v4925 = vadd.f32 %v4888, %v4909
    %v4926 = vadd.f32 %v4889, %v4910
    %v4927 = vadd.f32 %v4890, %v4911
    %v4928 = vadd.f32 %v4891, %v4912
    %v4929 = vadd.f32 %v4892, %v4913
    %v4930 = vadd.f32 %v4893, %v4914
    %v4931 = vadd.f32 %v4894, %v4915
    %v4932 = vadd.f32 %v4895, %v4916
    %v4933 = vld [vmem:[#allocation2 + $0x14d] sm:$0xff]
    %v4934 = vld [vmem:[%s1 + $0x20] sm:$0x1]
    %v4935 = vlaneseq
    %v4936 = vshrl.u32 %v4935, 7
    %v4937 = vsub.s32 0, %v4936
    %v4938 = vrot.slane %v4934, %v4937
    %v4939 = vmul.f32 %v4938, %v3018
    %v4940 = vmul.f32 %v4938, %v3019
    %v4941 = vmul.f32 %v4938, %v3020
    %v4942 = vmul.f32 %v4938, %v3021
    %v4943 = vmul.f32 %v4938, %v3022
    %v4944 = vmul.f32 %v4938, %v3023
    %v4945 = vmul.f32 %v4938, %v3024
    %v4946 = vmul.f32 %v4938, %v3025
    %v4947 = vmul.f32 %v4938, %v3026
    %v4948 = vmul.f32 %v4938, %v3027
    %v4949 = vmul.f32 %v4938, %v3028
    %v4950 = vmul.f32 %v4938, %v3050
    %v4951 = vmul.f32 %v4938, %v3051
    %v4952 = vmul.f32 %v4938, %v3089
    %v4953 = vmul.f32 %v4938, %v3090
    %v4954 = vmul.f32 %v4938, %v4933
    %v4955 = vadd.f32 %v4917, %v4939
    %v4956 = vadd.f32 %v4918, %v4940
    %v4957 = vadd.f32 %v4919, %v4941
    %v4958 = vadd.f32 %v4920, %v4942
    %v4959 = vadd.f32 %v4921, %v4943
    %v4960 = vadd.f32 %v4922, %v4944
    %v4961 = vadd.f32 %v4923, %v4945
    %v4962 = vadd.f32 %v4924, %v4946
    %v4963 = vadd.f32 %v4925, %v4947
    %v4964 = vadd.f32 %v4926, %v4948
    %v4965 = vadd.f32 %v4927, %v4949
    %v4966 = vadd.f32 %v4928, %v4950
    %v4967 = vadd.f32 %v4929, %v4951
    %v4968 = vadd.f32 %v4930, %v4952
    %v4969 = vadd.f32 %v4931, %v4953
    %v4970 = vadd.f32 %v4932, %v4954
    %v4971 = vsel %vm2932, %v4955, 0.0
    %v4972 = vsel %vm2933, %v4956, 0.0
    %v4973 = vsel %vm2934, %v4957, 0.0
    %v4974 = vsel %vm2935, %v4958, 0.0
    %v4975 = vsel %vm2936, %v4959, 0.0
    %v4976 = vsel %vm2937, %v4960, 0.0
    %v4977 = vsel %vm2938, %v4961, 0.0
    %v4978 = vsel %vm2939, %v4962, 0.0
    %v4979 = vsel %vm2940, %v4963, 0.0
    %v4980 = vsel %vm2941, %v4964, 0.0
    %v4981 = vsel %vm2942, %v4965, 0.0
    %v4982 = vsel %vm2943, %v4966, 0.0
    %v4983 = vsel %vm2944, %v4967, 0.0
    %v4984 = vsel %vm2945, %v4968, 0.0
    %v4985 = vsel %vm2946, %v4969, 0.0
    %v4986 = vsel %vm2947, %v4970, 0.0
    %v4987 = vadd.f32 %v4859, %v4971
    %v4988 = vadd.f32 %v4860, %v4972
    %v4989 = vadd.f32 %v4861, %v4973
    %v4990 = vadd.f32 %v4862, %v4974
    %v4991 = vadd.f32 %v4863, %v4975
    %v4992 = vadd.f32 %v4864, %v4976
    %v4993 = vadd.f32 %v4865, %v4977
    %v4994 = vadd.f32 %v4866, %v4978
    %v4995 = vadd.f32 %v4867, %v4979
    %v4996 = vadd.f32 %v4868, %v4980
    %v4997 = vadd.f32 %v4869, %v4981
    %v4998 = vadd.f32 %v4870, %v4982
    %v4999 = vadd.f32 %v4871, %v4983
    %v5000 = vadd.f32 %v4872, %v4984
    %v5001 = vadd.f32 %v4873, %v4985
    %v5002 = vadd.f32 %v4874, %v4986
    %5003 = vxpose.xlu0.b32.start [1/16] %v4987, 128
    %5004 = vxpose.xlu0.b32.cont [2/16] %v4988, 128
    %5005 = vxpose.xlu0.b32.cont [3/16] %v4989, 128
    %5006 = vxpose.xlu0.b32.cont [4/16] %v4990, 128
    %5007 = vxpose.xlu0.b32.cont [5/16] %v4991, 128
    %5008 = vxpose.xlu0.b32.cont [6/16] %v4992, 128
    %5009 = vxpose.xlu0.b32.cont [7/16] %v4993, 128
    %5010 = vxpose.xlu0.b32.cont [8/16] %v4994, 128
    %5011 = vxpose.xlu0.b32.cont [9/16] %v4995, 128
    %5012 = vxpose.xlu0.b32.cont [10/16] %v4996, 128
    %5013 = vxpose.xlu0.b32.cont [11/16] %v4997, 128
    %5014 = vxpose.xlu0.b32.cont [12/16] %v4998, 128
    %5015 = vxpose.xlu0.b32.cont [13/16] %v4999, 128
    %5016 = vxpose.xlu0.b32.cont [14/16] %v5000, 128
    %5017 = vxpose.xlu0.b32.cont [15/16] %v5001, 128
    %5018 = vxpose.xlu0.b32.end [16/16] %v5002, 128
    %v5019 = vpop.trf.xlu0
    %v5020 = vpop.trf.xlu0
    %v5021 = vpop.trf.xlu0
    %v5022 = vpop.trf.xlu0
    %v5023 = vpop.trf.xlu0
    %v5024 = vpop.trf.xlu0
    %v5025 = vpop.trf.xlu0
    %v5026 = vpop.trf.xlu0
    %v5027 = vpop.trf.xlu0
    %v5028 = vpop.trf.xlu0
    %v5029 = vpop.trf.xlu0
    %v5030 = vpop.trf.xlu0
    %v5031 = vpop.trf.xlu0
    %v5032 = vpop.trf.xlu0
    %v5033 = vpop.trf.xlu0
    %v5034 = vpop.trf.xlu0
    %5035 = vst [vmem:[#allocation3 + $0x8] sm:$0xff] %v5019
    // Predicated region
    $region14: #{tpu_custom_call.1} parent=1 // pred_check
      _
    $region15: #{tpu_custom_call.1} parent=1 // pred_check_branch
      %5037 = sbr.rel (0) target = $region17
    $region16: #{tpu_custom_call.1} parent=1 // pred_region
      %s5039 = ssub.s32 256, 256
      %5040 = vsyncadd [#allocation4], %s5039
      %s5042 = sshll.u32 [#allocation3], 4
      %s5043 = int_to_ptr.vmem [resolvable:$true] %s5042
      %5045 = dma.vmem_to_hbm [thread:$0]  %s5043, 256, %s3, [#allocation4]
    $region17: #{tpu_custom_call.1} parent=1 // pred_fallthru
      _
    // Predicated region
    $region18: #{tpu_custom_call.1} parent=1 // pred_check
      _
    $region19: #{tpu_custom_call.1} parent=1 // pred_check_branch
      %5047 = sbr.rel (0) target = $region21
    $region20: #{tpu_custom_call.1} parent=1 // pred_region
      %5048 = dma.done [#allocation4], 256
    $region21: #{tpu_custom_call.1} parent=1 // pred_fallthru
      _
    %5049 = vsyncpa [#allocation4], 1

</llo_original>
